<compile_context>
chip_gen: v7x
topology: tpu7x:2x2x1
jax: 0.10.0
libtpu: 0.0.40
codegen_flags: <defaults>
</compile_context>

<pallas_src>
import functools
import math

import jax
import jax.numpy as jnp
from jax.experimental import pallas as pl
from jax.experimental.pallas import tpu as pltpu


def _round_up(a, b):
    return ((a + b - 1) // b) * b


def _cdiv(a, b):
    return (a + b - 1) // b


def _vmem_limits():
    """Generation-aware VMEM sizing (v7x: 64 MiB/TC, v5e/v6e: 128 MiB)."""
    try:
        cap = int(pltpu.get_tpu_info().vmem_capacity_bytes)
    except Exception:  # interpret mode / old runtime
        cap = 128 * 1024 * 1024
    limit = min((cap * 3) // 4, 96 * 1024 * 1024)   # 48 MiB on v7x, 96 MiB v5e/v6e
    budget = limit // 2                             # headroom for compiler temps
    return limit, budget


def _choose_rows_chunk(n_rows, c_out_pad):
    """~128 KiB of f32 partials per chunk, clamped to [128, 512] rows, mult of 8."""
    target = (128 * 1024) // (c_out_pad * 4)
    target = max(128, min(512, target))
    target = max(8, (target // 8) * 8)
    return min(target, n_rows)


def _choose_tile_t(T_out, V, C_in, c_out_pad, K, halo_rows, in_bytes, out_bytes,
                   hint, vmem_budget):
    """Balanced T tile, multiple of the halo granule, fitting the VMEM budget."""
    lane = 128
    cin_p = _round_up(max(C_in, 1), lane)   # lane-padded VMEM footprint

    hint = max(halo_rows, min(int(hint), _round_up(T_out, halo_rows)))
    n_tiles = _cdiv(T_out, hint)
    tile = _round_up(_cdiv(T_out, n_tiles), halo_rows)

    def need(t):
        rows_m = t * V
        rows_h = halo_rows * V
        return (2 * rows_m * cin_p * in_bytes          # double-buffered main input
                + 2 * rows_h * cin_p * in_bytes        # double-buffered halo
                + 2 * rows_m * c_out_pad * out_bytes   # double-buffered output
                + 2 * K * cin_p * c_out_pad * in_bytes # resident weights
                + 2 * 512 * c_out_pad * 4)             # chunk accumulator temps

    while tile > halo_rows and need(tile) > vmem_budget:
        tile = max(halo_rows, _round_up(tile // 2, halo_rows))
    return tile


def _tcn_kernel(x_ref, h_ref, w_ref, b_ref, o_ref, *, K, V, tile_t, halo_rows,
                rows_chunk):
    """One (batch, T-tile) grid step of the stride-1 temporal convolution.

    x_ref : (1, tile_t*V, C_in)       main input block (channels-last)
    h_ref : (1, halo_rows*V, C_in)    temporal halo: the next frames after the tile
    w_ref : (K, C_in, C_out_pad)      BN-folded weights (lane dim = C_out_pad)
    b_ref : (1, C_out_pad)            BN-folded bias, float32
    o_ref : (1, tile_t*V, C_out_pad)  output block
    """
    n_rows = tile_t * V
    bias = b_ref[...].astype(jnp.float32)                     # (1, C_out_pad)

    # Row-chunked accumulation: per chunk, the K tap partials are produced
    # back-to-back and summed while hot, and the chunk is stored exactly once.
    for r0 in range(0, n_rows, rows_chunk):
        rows = min(rows_chunk, n_rows - r0)
        needs_halo = (r0 + (K - 1) * V + rows) > n_rows

        if needs_halo:
            # Tail chunk: stitch the end of the main block and the halo into a
            # small local window (<= rows + (K-1+pad)*V rows of VMEM).
            tail = jnp.concatenate([x_ref[0, r0:, :], h_ref[0]], axis=0)

            def tap(k, _tail=tail, _rows=rows):
                return _tail[k * V:k * V + _rows, :]
        else:
            # All taps of this chunk live in the main block: slice the ref
            # directly (view -> load), no staging copy.
            def tap(k, _r0=r0, _rows=rows):
                return x_ref[0, _r0 + k * V:_r0 + k * V + _rows, :]

        acc = None
        for k in range(K):
            # NOTE: tap starts (k*V) are not sublane(8)-aligned for V=25; the
            # realignment work is hidden under HBM-bound slack (padding V to 32
            # would cost ~28% extra HBM traffic, so it is not done).
            y = jnp.dot(tap(k), w_ref[k], preferred_element_type=jnp.float32)
            acc = y if acc is None else acc + y
        o_ref[0, r0:r0 + rows, :] = (acc + bias).astype(o_ref.dtype)


@functools.partial(
    jax.jit,
    static_argnames=("keep_prob", "stride", "eps", "compute_dtype", "out_dtype",
                     "tile_t_hint"))
def unit_tcn_forward(x, conv_w, conv_b, bn_gamma, bn_beta, bn_mean, bn_var,
                     A=None, *, keep_prob=1.0, stride=1, eps=1e-5,
                     compute_dtype=jnp.bfloat16, out_dtype=None,
                     tile_t_hint=256):
    """Forward pass of unit_tcn.

    x       : (N, C_in, T, V) float32 (NCHW, like the PyTorch module)
    conv_w  : (C_out, C_in, K, 1)
    conv_b, bn_* : (C_out,)
    Returns : (N, C_out, T_out, V), dtype out_dtype (default x.dtype).
    """
    N, C_in, T, V = x.shape
    C_out, _, K, _ = conv_w.shape
    pad = (K - 1) // 2
    out_dtype = x.dtype if out_dtype is None else out_dtype

    if keep_prob != 1.0:
        # TODO(synk): stochastic DropBlock_Ske / DropBlockT_1d masks are not
        # implemented (their class definitions are not in the module source).
        raise NotImplementedError("unit_tcn Pallas kernel supports keep_prob == 1.0 only")

    # Fold eval-mode BatchNorm into the conv weight / bias.
    inv_std = 1.0 / jnp.sqrt(bn_var + eps)
    scale = bn_gamma * inv_std                                  # (C_out,)
    w_eff = conv_w[:, :, :, 0] * scale[:, None, None]           # (C_out, C_in, K)
    b_eff = (conv_b - bn_mean) * scale + bn_beta                # (C_out,)

    if stride != 1:
        # TODO(synk): stride > 1 falls back to a fused XLA path (decimation in
        # the wrapper); the Pallas fast path covers the module default stride=1.
        x_pad = jnp.pad(x, ((0, 0), (0, 0), (pad, pad), (0, 0)))
        T_out = (T + 2 * pad - K) // stride + 1
        taps = jnp.stack(
            [x_pad[:, :, k:k + stride * (T_out - 1) + 1:stride, :]
             for k in range(K)], axis=2)
        out = jnp.einsum('ock,ncktv->notv', w_eff, taps)
        return (out + b_eff[None, :, None, None]).astype(out_dtype)

    T_out = T + 2 * pad - K + 1                                 # == T for odd K
    halo_rows = max(8, _round_up(K - 1, 8))
    C_out_pad = _round_up(C_out, 128)

    in_bytes = jnp.dtype(compute_dtype).itemsize
    out_bytes = jnp.dtype(out_dtype).itemsize
    vmem_limit, vmem_budget = _vmem_limits()
    tile_t = _choose_tile_t(T_out, V, C_in, C_out_pad, K, halo_rows, in_bytes,
                            out_bytes, tile_t_hint, vmem_budget)
    nT = _cdiv(T_out, tile_t)
    rows_chunk = _choose_rows_chunk(tile_t * V, C_out_pad)

    # BN-folded weights -> (K, C_in, C_out_pad) lane-dense; bias -> (1, C_out_pad) f32.
    w_kio = jnp.transpose(w_eff, (2, 1, 0)).astype(compute_dtype)
    w_kio = jnp.pad(w_kio, ((0, 0), (0, 0), (0, C_out_pad - C_out)))
    b_row = jnp.pad(b_eff.astype(jnp.float32),
                    (0, C_out_pad - C_out)).reshape(1, C_out_pad)

    # Channels-last padded input, flattened to (N, T_total*V, C_in).  The NCHW
    # -> channels-last transpose is one fused XLA pass; there is NO windowed
    # gather copy: overlapping windows are read in the kernel as one
    # non-overlapping main block plus a small blocked halo block per grid step.
    T_total = nT * tile_t + halo_rows
    x_cl = jnp.transpose(x.astype(compute_dtype), (0, 2, 3, 1))  # (N, T, V, C_in)
    x_cl = jnp.pad(x_cl, ((0, 0), (pad, T_total - T - pad), (0, 0), (0, 0)))
    x_flat = x_cl.reshape(N, T_total * V, C_in)

    halo_blk = tile_t // halo_rows                               # tile_t % halo_rows == 0

    kernel = functools.partial(_tcn_kernel, K=K, V=V, tile_t=tile_t,
                               halo_rows=halo_rows, rows_chunk=rows_chunk)

    out_blk = pl.pallas_call(
        kernel,
        out_shape=jax.ShapeDtypeStruct((N, nT * tile_t * V, C_out_pad), out_dtype),
        grid_spec=pltpu.PrefetchScalarGridSpec(
            num_scalar_prefetch=0,
            grid=(N, nT),
            in_specs=[
                # Main (non-overlapping) block of tile_t frames.
                pl.BlockSpec((1, tile_t * V, C_in), lambda n, t: (n, t, 0)),
                # Halo: the halo_rows frames immediately after the main block
                # (block index in units of halo_rows*V rows).
                pl.BlockSpec((1, halo_rows * V, C_in),
                             lambda n, t: (n, (t + 1) * halo_blk, 0)),
                # Resident BN-folded weights / bias.
                pl.BlockSpec((K, C_in, C_out_pad), lambda n, t: (0, 0, 0)),
                pl.BlockSpec((1, C_out_pad), lambda n, t: (0, 0)),
            ],
            out_specs=pl.BlockSpec((1, tile_t * V, C_out_pad),
                                   lambda n, t: (n, t, 0)),
        ),
        compiler_params=pltpu.CompilerParams(
            dimension_semantics=("parallel", "parallel"),
            vmem_limit_bytes=vmem_limit),
    )(x_flat, x_flat, w_kio, b_row)

    # Back to the module's NCHW contract; drop lane / tail padding.
    out = out_blk.reshape(N, nT * tile_t, V, C_out_pad)[:, :T_out, :, :C_out]
    out = jnp.transpose(out, (0, 3, 1, 2))                       # (N, C_out, T_out, V)
    # DropBlock_Ske / DropBlockT_1d are identity at keep_prob == 1.0 (A unused).
    return out


def _reference_forward(x, conv_w, conv_b, bn_gamma, bn_beta, bn_mean, bn_var,
                       *, stride=1, eps=1e-5):
    """Pure-jnp reference (NCHW math) for correctness checking."""
    N, C_in, T, V = x.shape
    C_out, _, K, _ = conv_w.shape
    pad = (K - 1) // 2
    inv_std = 1.0 / jnp.sqrt(bn_var + eps)
    scale = bn_gamma * inv_std
    w_eff = conv_w[:, :, :, 0] * scale[:, None, None]
    b_eff = (conv_b - bn_mean) * scale + bn_beta
    x_pad = jnp.pad(x, ((0, 0), (0, 0), (pad, pad), (0, 0)))
    T_out = (T + 2 * pad - K) // stride + 1
    taps = jnp.stack(
        [x_pad[:, :, k:k + stride * (T_out - 1) + 1:stride, :]
         for k in range(K)], axis=2)                             # (N, C_in, K, T_out, V)
    out = jnp.einsum('ock,ncktv->notv', w_eff, taps)
    return out + b_eff[None, :, None, None]


if __name__ == "__main__":
    # Small shapes: N=2, C_in=4, C_out=8, T=16, V=25 (num_point default), K=9.
    N, C_in, C_out, T, V, K = 2, 4, 8, 16, 25, 9

    key = jax.random.PRNGKey(0)
    kx, kw = jax.random.split(key)

    x = jax.random.normal(kx, (N, C_in, T, V), dtype=jnp.float32)
    A = jnp.eye(V, dtype=jnp.float32)   # adjacency; unused (DropBlock identity)

    # conv_init: kaiming_normal(mode='fan_out') -> std = sqrt(2/(C_out*K*1)), bias=0.
    fan_out = C_out * K * 1
    w_std = math.sqrt(2.0 / fan_out)
    conv_w = w_std * jax.random.normal(kw, (C_out, C_in, K, 1), dtype=jnp.float32)
    conv_b = jnp.zeros((C_out,), dtype=jnp.float32)

    # bn_init(bn, 1): gamma=1, beta=0; default running stats: mean=0, var=1.
    bn_gamma = jnp.ones((C_out,), dtype=jnp.float32)
    bn_beta = jnp.zeros((C_out,), dtype=jnp.float32)
    bn_mean = jnp.zeros((C_out,), dtype=jnp.float32)
    bn_var = jnp.ones((C_out,), dtype=jnp.float32)

    ref = _reference_forward(x, conv_w, conv_b, bn_gamma, bn_beta, bn_mean, bn_var)

    # 1) f32 compute, single T tile (exact parity with the module).
    out_f32 = unit_tcn_forward(x, conv_w, conv_b, bn_gamma, bn_beta, bn_mean,
                               bn_var, A, keep_prob=1.0,
                               compute_dtype=jnp.float32)
    out_f32 = jax.block_until_ready(out_f32)
    assert out_f32.shape == (N, C_out, T, V), out_f32.shape
    assert jnp.allclose(out_f32, ref, atol=1e-4, rtol=1e-4), "f32 mismatch vs reference"

    # 2) f32 compute, multiple T tiles (exercises the halo block + (N, T) grid).
    out_tiled = unit_tcn_forward(x, conv_w, conv_b, bn_gamma, bn_beta, bn_mean,
                                 bn_var, A, keep_prob=1.0,
                                 compute_dtype=jnp.float32, tile_t_hint=8)
    out_tiled = jax.block_until_ready(out_tiled)
    assert jnp.allclose(out_tiled, ref, atol=1e-4, rtol=1e-4), "tiled mismatch"

    # 3) default bf16 compute (f32 accumulation), looser tolerance.
    out_bf16 = unit_tcn_forward(x, conv_w, conv_b, bn_gamma, bn_beta, bn_mean,
                                bn_var, A, keep_prob=1.0)
    out_bf16 = jax.block_until_ready(out_bf16)
    assert jnp.allclose(out_bf16, ref, atol=5e-2, rtol=5e-2), "bf16 mismatch"

    print("KERNEL_OK")
</pallas_src>

<mosaic_0001>
module attributes {stable_mosaic.version = 11 : i64} {
  func.func @_tcn_kernel(%arg0: i32, %arg1: i32, %arg2: memref<1x400x4xf32, #tpu.memory_space<vmem>>, %arg3: memref<1x200x4xf32, #tpu.memory_space<vmem>>, %arg4: memref<9x4x128xf32, #tpu.memory_space<vmem>>, %arg5: memref<1x128xf32, #tpu.memory_space<vmem>>, %arg6: memref<1x400x128xf32, #tpu.memory_space<vmem>>) attributes {dimension_semantics = [#tpu.dimension_semantics<parallel>, #tpu.dimension_semantics<parallel>], iteration_bounds = array<i64: 2, 1>, scalar_prefetch = 0 : i64, scratch_operands = 0 : i64, tpu.core_type = #tpu.core_type<tc>, window_params = [{transform_indices = @transform_0, window_bounds = array<i64: 1, 400, 4>}, {transform_indices = @transform_1, window_bounds = array<i64: 1, 200, 4>}, {pipeline_mode = #tpu.pipeline_mode<synchronous>, transform_indices = @transform_2, window_bounds = array<i64: 9, 4, 128>}, {pipeline_mode = #tpu.pipeline_mode<synchronous>, transform_indices = @transform_3, window_bounds = array<i64: 1, 128>}, {transform_indices = @transform_4, window_bounds = array<i64: 1, 400, 128>}]} {
    %c0 = arith.constant 0 : index
    %c0_0 = arith.constant 0 : index
    %0 = vector.load %arg5[%c0, %c0_0] : memref<1x128xf32, #tpu.memory_space<vmem>>, vector<1x128xf32>
    %c0_1 = arith.constant 0 : index
    %c0_2 = arith.constant 0 : index
    %c0_3 = arith.constant 0 : index
    %1 = vector.load %arg2[%c0_1, %c0_2, %c0_3] : memref<1x400x4xf32, #tpu.memory_space<vmem>>, vector<1x400x4xf32>
    %2 = vector.shape_cast %1 : vector<1x400x4xf32> to vector<400x4xf32>
    %c0_4 = arith.constant 0 : index
    %c0_5 = arith.constant 0 : index
    %c0_6 = arith.constant 0 : index
    %3 = vector.load %arg3[%c0_4, %c0_5, %c0_6] : memref<1x200x4xf32, #tpu.memory_space<vmem>>, vector<1x200x4xf32>
    %4 = vector.shape_cast %3 : vector<1x200x4xf32> to vector<200x4xf32>
    %5 = tpu.concatenate %2, %4 in 0 : vector<400x4xf32>, vector<200x4xf32> -> vector<600x4xf32>
    %6 = vector.extract_strided_slice %5 {offsets = [0, 0], sizes = [256, 4], strides = [1, 1]} : vector<600x4xf32> to vector<256x4xf32>
    %c0_7 = arith.constant 0 : index
    %c0_8 = arith.constant 0 : index
    %c0_9 = arith.constant 0 : index
    %7 = vector.load %arg4[%c0_7, %c0_8, %c0_9] : memref<9x4x128xf32, #tpu.memory_space<vmem>>, vector<1x4x128xf32>
    %8 = vector.shape_cast %7 : vector<1x4x128xf32> to vector<4x128xf32>
    %cst = arith.constant dense<0.000000e+00> : vector<256x128xf32>
    %9 = tpu.matmul %6, %8, %cst {dimension_numbers = #tpu.dot_dimension_numbers<[1], [0], [0], [1], [0, 0, 1, 1], [], []>} : vector<256x4xf32>, vector<4x128xf32>, vector<256x128xf32> -> vector<256x128xf32>
    %10 = vector.extract_strided_slice %5 {offsets = [25, 0], sizes = [256, 4], strides = [1, 1]} : vector<600x4xf32> to vector<256x4xf32>
    %c1 = arith.constant 1 : index
    %c0_10 = arith.constant 0 : index
    %c0_11 = arith.constant 0 : index
    %11 = vector.load %arg4[%c1, %c0_10, %c0_11] : memref<9x4x128xf32, #tpu.memory_space<vmem>>, vector<1x4x128xf32>
    %12 = vector.shape_cast %11 : vector<1x4x128xf32> to vector<4x128xf32>
    %cst_12 = arith.constant dense<0.000000e+00> : vector<256x128xf32>
    %13 = tpu.matmul %10, %12, %cst_12 {dimension_numbers = #tpu.dot_dimension_numbers<[1], [0], [0], [1], [0, 0, 1, 1], [], []>} : vector<256x4xf32>, vector<4x128xf32>, vector<256x128xf32> -> vector<256x128xf32>
    %14 = arith.addf %9, %13 : vector<256x128xf32>
    %15 = vector.extract_strided_slice %5 {offsets = [50, 0], sizes = [256, 4], strides = [1, 1]} : vector<600x4xf32> to vector<256x4xf32>
    %c2 = arith.constant 2 : index
    %c0_13 = arith.constant 0 : index
    %c0_14 = arith.constant 0 : index
    %16 = vector.load %arg4[%c2, %c0_13, %c0_14] : memref<9x4x128xf32, #tpu.memory_space<vmem>>, vector<1x4x128xf32>
    %17 = vector.shape_cast %16 : vector<1x4x128xf32> to vector<4x128xf32>
    %cst_15 = arith.constant dense<0.000000e+00> : vector<256x128xf32>
    %18 = tpu.matmul %15, %17, %cst_15 {dimension_numbers = #tpu.dot_dimension_numbers<[1], [0], [0], [1], [0, 0, 1, 1], [], []>} : vector<256x4xf32>, vector<4x128xf32>, vector<256x128xf32> -> vector<256x128xf32>
    %19 = arith.addf %14, %18 : vector<256x128xf32>
    %20 = vector.extract_strided_slice %5 {offsets = [75, 0], sizes = [256, 4], strides = [1, 1]} : vector<600x4xf32> to vector<256x4xf32>
    %c3 = arith.constant 3 : index
    %c0_16 = arith.constant 0 : index
    %c0_17 = arith.constant 0 : index
    %21 = vector.load %arg4[%c3, %c0_16, %c0_17] : memref<9x4x128xf32, #tpu.memory_space<vmem>>, vector<1x4x128xf32>
    %22 = vector.shape_cast %21 : vector<1x4x128xf32> to vector<4x128xf32>
    %cst_18 = arith.constant dense<0.000000e+00> : vector<256x128xf32>
    %23 = tpu.matmul %20, %22, %cst_18 {dimension_numbers = #tpu.dot_dimension_numbers<[1], [0], [0], [1], [0, 0, 1, 1], [], []>} : vector<256x4xf32>, vector<4x128xf32>, vector<256x128xf32> -> vector<256x128xf32>
    %24 = arith.addf %19, %23 : vector<256x128xf32>
    %25 = vector.extract_strided_slice %5 {offsets = [100, 0], sizes = [256, 4], strides = [1, 1]} : vector<600x4xf32> to vector<256x4xf32>
    %c4 = arith.constant 4 : index
    %c0_19 = arith.constant 0 : index
    %c0_20 = arith.constant 0 : index
    %26 = vector.load %arg4[%c4, %c0_19, %c0_20] : memref<9x4x128xf32, #tpu.memory_space<vmem>>, vector<1x4x128xf32>
    %27 = vector.shape_cast %26 : vector<1x4x128xf32> to vector<4x128xf32>
    %cst_21 = arith.constant dense<0.000000e+00> : vector<256x128xf32>
    %28 = tpu.matmul %25, %27, %cst_21 {dimension_numbers = #tpu.dot_dimension_numbers<[1], [0], [0], [1], [0, 0, 1, 1], [], []>} : vector<256x4xf32>, vector<4x128xf32>, vector<256x128xf32> -> vector<256x128xf32>
    %29 = arith.addf %24, %28 : vector<256x128xf32>
    %30 = vector.extract_strided_slice %5 {offsets = [125, 0], sizes = [256, 4], strides = [1, 1]} : vector<600x4xf32> to vector<256x4xf32>
    %c5 = arith.constant 5 : index
    %c0_22 = arith.constant 0 : index
    %c0_23 = arith.constant 0 : index
    %31 = vector.load %arg4[%c5, %c0_22, %c0_23] : memref<9x4x128xf32, #tpu.memory_space<vmem>>, vector<1x4x128xf32>
    %32 = vector.shape_cast %31 : vector<1x4x128xf32> to vector<4x128xf32>
    %cst_24 = arith.constant dense<0.000000e+00> : vector<256x128xf32>
    %33 = tpu.matmul %30, %32, %cst_24 {dimension_numbers = #tpu.dot_dimension_numbers<[1], [0], [0], [1], [0, 0, 1, 1], [], []>} : vector<256x4xf32>, vector<4x128xf32>, vector<256x128xf32> -> vector<256x128xf32>
    %34 = arith.addf %29, %33 : vector<256x128xf32>
    %35 = vector.extract_strided_slice %5 {offsets = [150, 0], sizes = [256, 4], strides = [1, 1]} : vector<600x4xf32> to vector<256x4xf32>
    %c6 = arith.constant 6 : index
    %c0_25 = arith.constant 0 : index
    %c0_26 = arith.constant 0 : index
    %36 = vector.load %arg4[%c6, %c0_25, %c0_26] : memref<9x4x128xf32, #tpu.memory_space<vmem>>, vector<1x4x128xf32>
    %37 = vector.shape_cast %36 : vector<1x4x128xf32> to vector<4x128xf32>
    %cst_27 = arith.constant dense<0.000000e+00> : vector<256x128xf32>
    %38 = tpu.matmul %35, %37, %cst_27 {dimension_numbers = #tpu.dot_dimension_numbers<[1], [0], [0], [1], [0, 0, 1, 1], [], []>} : vector<256x4xf32>, vector<4x128xf32>, vector<256x128xf32> -> vector<256x128xf32>
    %39 = arith.addf %34, %38 : vector<256x128xf32>
    %40 = vector.extract_strided_slice %5 {offsets = [175, 0], sizes = [256, 4], strides = [1, 1]} : vector<600x4xf32> to vector<256x4xf32>
    %c7 = arith.constant 7 : index
    %c0_28 = arith.constant 0 : index
    %c0_29 = arith.constant 0 : index
    %41 = vector.load %arg4[%c7, %c0_28, %c0_29] : memref<9x4x128xf32, #tpu.memory_space<vmem>>, vector<1x4x128xf32>
    %42 = vector.shape_cast %41 : vector<1x4x128xf32> to vector<4x128xf32>
    %cst_30 = arith.constant dense<0.000000e+00> : vector<256x128xf32>
    %43 = tpu.matmul %40, %42, %cst_30 {dimension_numbers = #tpu.dot_dimension_numbers<[1], [0], [0], [1], [0, 0, 1, 1], [], []>} : vector<256x4xf32>, vector<4x128xf32>, vector<256x128xf32> -> vector<256x128xf32>
    %44 = arith.addf %39, %43 : vector<256x128xf32>
    %45 = vector.extract_strided_slice %5 {offsets = [200, 0], sizes = [256, 4], strides = [1, 1]} : vector<600x4xf32> to vector<256x4xf32>
    %c8 = arith.constant 8 : index
    %c0_31 = arith.constant 0 : index
    %c0_32 = arith.constant 0 : index
    %46 = vector.load %arg4[%c8, %c0_31, %c0_32] : memref<9x4x128xf32, #tpu.memory_space<vmem>>, vector<1x4x128xf32>
    %47 = vector.shape_cast %46 : vector<1x4x128xf32> to vector<4x128xf32>
    %cst_33 = arith.constant dense<0.000000e+00> : vector<256x128xf32>
    %48 = tpu.matmul %45, %47, %cst_33 {dimension_numbers = #tpu.dot_dimension_numbers<[1], [0], [0], [1], [0, 0, 1, 1], [], []>} : vector<256x4xf32>, vector<4x128xf32>, vector<256x128xf32> -> vector<256x128xf32>
    %49 = arith.addf %44, %48 : vector<256x128xf32>
    %50 = vector.broadcast %0 : vector<1x128xf32> to vector<256x128xf32>
    %51 = arith.addf %49, %50 : vector<256x128xf32>
    %c0_34 = arith.constant 0 : index
    %c0_35 = arith.constant 0 : index
    %c0_36 = arith.constant 0 : index
    %52 = vector.load %arg6[%c0_34, %c0_35, %c0_36] : memref<1x400x128xf32, #tpu.memory_space<vmem>>, vector<1x256x128xf32>
    %53 = vector.shape_cast %52 : vector<1x256x128xf32> to vector<256x128xf32>
    %54 = vector.shape_cast %51 : vector<256x128xf32> to vector<1x256x128xf32>
    tpu.vector_store %arg6[%c0_34, %c0_35, %c0_36], %54 {strides = array<i32>} : memref<1x400x128xf32, #tpu.memory_space<vmem>>, vector<1x256x128xf32>,
    %c0_37 = arith.constant 0 : index
    %c256 = arith.constant 256 : index
    %c0_38 = arith.constant 0 : index
    %55 = vector.load %arg2[%c0_37, %c256, %c0_38] : memref<1x400x4xf32, #tpu.memory_space<vmem>>, vector<1x144x4xf32>
    %56 = vector.shape_cast %55 : vector<1x144x4xf32> to vector<144x4xf32>
    %c0_39 = arith.constant 0 : index
    %c0_40 = arith.constant 0 : index
    %c0_41 = arith.constant 0 : index
    %57 = vector.load %arg3[%c0_39, %c0_40, %c0_41] : memref<1x200x4xf32, #tpu.memory_space<vmem>>, vector<1x200x4xf32>
    %58 = vector.shape_cast %57 : vector<1x200x4xf32> to vector<200x4xf32>
    %59 = tpu.concatenate %56, %58 in 0 : vector<144x4xf32>, vector<200x4xf32> -> vector<344x4xf32>
    %60 = vector.extract_strided_slice %59 {offsets = [0, 0], sizes = [144, 4], strides = [1, 1]} : vector<344x4xf32> to vector<144x4xf32>
    %c0_42 = arith.constant 0 : index
    %c0_43 = arith.constant 0 : index
    %c0_44 = arith.constant 0 : index
    %61 = vector.load %arg4[%c0_42, %c0_43, %c0_44] : memref<9x4x128xf32, #tpu.memory_space<vmem>>, vector<1x4x128xf32>
    %62 = vector.shape_cast %61 : vector<1x4x128xf32> to vector<4x128xf32>
    %cst_45 = arith.constant dense<0.000000e+00> : vector<144x128xf32>
    %63 = tpu.matmul %60, %62, %cst_45 {dimension_numbers = #tpu.dot_dimension_numbers<[1], [0], [0], [1], [0, 0, 1, 1], [], []>} : vector<144x4xf32>, vector<4x128xf32>, vector<144x128xf32> -> vector<144x128xf32>
    %64 = vector.extract_strided_slice %59 {offsets = [25, 0], sizes = [144, 4], strides = [1, 1]} : vector<344x4xf32> to vector<144x4xf32>
    %c1_46 = arith.constant 1 : index
    %c0_47 = arith.constant 0 : index
    %c0_48 = arith.constant 0 : index
    %65 = vector.load %arg4[%c1_46, %c0_47, %c0_48] : memref<9x4x128xf32, #tpu.memory_space<vmem>>, vector<1x4x128xf32>
    %66 = vector.shape_cast %65 : vector<1x4x128xf32> to vector<4x128xf32>
    %cst_49 = arith.constant dense<0.000000e+00> : vector<144x128xf32>
    %67 = tpu.matmul %64, %66, %cst_49 {dimension_numbers = #tpu.dot_dimension_numbers<[1], [0], [0], [1], [0, 0, 1, 1], [], []>} : vector<144x4xf32>, vector<4x128xf32>, vector<144x128xf32> -> vector<144x128xf32>
    %68 = arith.addf %63, %67 : vector<144x128xf32>
    %69 = vector.extract_strided_slice %59 {offsets = [50, 0], sizes = [144, 4], strides = [1, 1]} : vector<344x4xf32> to vector<144x4xf32>
    %c2_50 = arith.constant 2 : index
    %c0_51 = arith.constant 0 : index
    %c0_52 = arith.constant 0 : index
    %70 = vector.load %arg4[%c2_50, %c0_51, %c0_52] : memref<9x4x128xf32, #tpu.memory_space<vmem>>, vector<1x4x128xf32>
    %71 = vector.shape_cast %70 : vector<1x4x128xf32> to vector<4x128xf32>
    %cst_53 = arith.constant dense<0.000000e+00> : vector<144x128xf32>
    %72 = tpu.matmul %69, %71, %cst_53 {dimension_numbers = #tpu.dot_dimension_numbers<[1], [0], [0], [1], [0, 0, 1, 1], [], []>} : vector<144x4xf32>, vector<4x128xf32>, vector<144x128xf32> -> vector<144x128xf32>
    %73 = arith.addf %68, %72 : vector<144x128xf32>
    %74 = vector.extract_strided_slice %59 {offsets = [75, 0], sizes = [144, 4], strides = [1, 1]} : vector<344x4xf32> to vector<144x4xf32>
    %c3_54 = arith.constant 3 : index
    %c0_55 = arith.constant 0 : index
    %c0_56 = arith.constant 0 : index
    %75 = vector.load %arg4[%c3_54, %c0_55, %c0_56] : memref<9x4x128xf32, #tpu.memory_space<vmem>>, vector<1x4x128xf32>
    %76 = vector.shape_cast %75 : vector<1x4x128xf32> to vector<4x128xf32>
    %cst_57 = arith.constant dense<0.000000e+00> : vector<144x128xf32>
    %77 = tpu.matmul %74, %76, %cst_57 {dimension_numbers = #tpu.dot_dimension_numbers<[1], [0], [0], [1], [0, 0, 1, 1], [], []>} : vector<144x4xf32>, vector<4x128xf32>, vector<144x128xf32> -> vector<144x128xf32>
    %78 = arith.addf %73, %77 : vector<144x128xf32>
    %79 = vector.extract_strided_slice %59 {offsets = [100, 0], sizes = [144, 4], strides = [1, 1]} : vector<344x4xf32> to vector<144x4xf32>
    %c4_58 = arith.constant 4 : index
    %c0_59 = arith.constant 0 : index
    %c0_60 = arith.constant 0 : index
    %80 = vector.load %arg4[%c4_58, %c0_59, %c0_60] : memref<9x4x128xf32, #tpu.memory_space<vmem>>, vector<1x4x128xf32>
    %81 = vector.shape_cast %80 : vector<1x4x128xf32> to vector<4x128xf32>
    %cst_61 = arith.constant dense<0.000000e+00> : vector<144x128xf32>
    %82 = tpu.matmul %79, %81, %cst_61 {dimension_numbers = #tpu.dot_dimension_numbers<[1], [0], [0], [1], [0, 0, 1, 1], [], []>} : vector<144x4xf32>, vector<4x128xf32>, vector<144x128xf32> -> vector<144x128xf32>
    %83 = arith.addf %78, %82 : vector<144x128xf32>
    %84 = vector.extract_strided_slice %59 {offsets = [125, 0], sizes = [144, 4], strides = [1, 1]} : vector<344x4xf32> to vector<144x4xf32>
    %c5_62 = arith.constant 5 : index
    %c0_63 = arith.constant 0 : index
    %c0_64 = arith.constant 0 : index
    %85 = vector.load %arg4[%c5_62, %c0_63, %c0_64] : memref<9x4x128xf32, #tpu.memory_space<vmem>>, vector<1x4x128xf32>
    %86 = vector.shape_cast %85 : vector<1x4x128xf32> to vector<4x128xf32>
    %cst_65 = arith.constant dense<0.000000e+00> : vector<144x128xf32>
    %87 = tpu.matmul %84, %86, %cst_65 {dimension_numbers = #tpu.dot_dimension_numbers<[1], [0], [0], [1], [0, 0, 1, 1], [], []>} : vector<144x4xf32>, vector<4x128xf32>, vector<144x128xf32> -> vector<144x128xf32>
    %88 = arith.addf %83, %87 : vector<144x128xf32>
    %89 = vector.extract_strided_slice %59 {offsets = [150, 0], sizes = [144, 4], strides = [1, 1]} : vector<344x4xf32> to vector<144x4xf32>
    %c6_66 = arith.constant 6 : index
    %c0_67 = arith.constant 0 : index
    %c0_68 = arith.constant 0 : index
    %90 = vector.load %arg4[%c6_66, %c0_67, %c0_68] : memref<9x4x128xf32, #tpu.memory_space<vmem>>, vector<1x4x128xf32>
    %91 = vector.shape_cast %90 : vector<1x4x128xf32> to vector<4x128xf32>
    %cst_69 = arith.constant dense<0.000000e+00> : vector<144x128xf32>
    %92 = tpu.matmul %89, %91, %cst_69 {dimension_numbers = #tpu.dot_dimension_numbers<[1], [0], [0], [1], [0, 0, 1, 1], [], []>} : vector<144x4xf32>, vector<4x128xf32>, vector<144x128xf32> -> vector<144x128xf32>
    %93 = arith.addf %88, %92 : vector<144x128xf32>
    %94 = vector.extract_strided_slice %59 {offsets = [175, 0], sizes = [144, 4], strides = [1, 1]} : vector<344x4xf32> to vector<144x4xf32>
    %c7_70 = arith.constant 7 : index
    %c0_71 = arith.constant 0 : index
    %c0_72 = arith.constant 0 : index
    %95 = vector.load %arg4[%c7_70, %c0_71, %c0_72] : memref<9x4x128xf32, #tpu.memory_space<vmem>>, vector<1x4x128xf32>
    %96 = vector.shape_cast %95 : vector<1x4x128xf32> to vector<4x128xf32>
    %cst_73 = arith.constant dense<0.000000e+00> : vector<144x128xf32>
    %97 = tpu.matmul %94, %96, %cst_73 {dimension_numbers = #tpu.dot_dimension_numbers<[1], [0], [0], [1], [0, 0, 1, 1], [], []>} : vector<144x4xf32>, vector<4x128xf32>, vector<144x128xf32> -> vector<144x128xf32>
    %98 = arith.addf %93, %97 : vector<144x128xf32>
    %99 = vector.extract_strided_slice %59 {offsets = [200, 0], sizes = [144, 4], strides = [1, 1]} : vector<344x4xf32> to vector<144x4xf32>
    %c8_74 = arith.constant 8 : index
    %c0_75 = arith.constant 0 : index
    %c0_76 = arith.constant 0 : index
    %100 = vector.load %arg4[%c8_74, %c0_75, %c0_76] : memref<9x4x128xf32, #tpu.memory_space<vmem>>, vector<1x4x128xf32>
    %101 = vector.shape_cast %100 : vector<1x4x128xf32> to vector<4x128xf32>
    %cst_77 = arith.constant dense<0.000000e+00> : vector<144x128xf32>
    %102 = tpu.matmul %99, %101, %cst_77 {dimension_numbers = #tpu.dot_dimension_numbers<[1], [0], [0], [1], [0, 0, 1, 1], [], []>} : vector<144x4xf32>, vector<4x128xf32>, vector<144x128xf32> -> vector<144x128xf32>
    %103 = arith.addf %98, %102 : vector<144x128xf32>
    %104 = vector.broadcast %0 : vector<1x128xf32> to vector<144x128xf32>
    %105 = arith.addf %103, %104 : vector<144x128xf32>
    %c0_78 = arith.constant 0 : index
    %c256_79 = arith.constant 256 : index
    %c0_80 = arith.constant 0 : index
    %106 = vector.load %arg6[%c0_78, %c256_79, %c0_80] : memref<1x400x128xf32, #tpu.memory_space<vmem>>, vector<1x144x128xf32>
    %107 = vector.shape_cast %106 : vector<1x144x128xf32> to vector<144x128xf32>
    %108 = vector.shape_cast %105 : vector<144x128xf32> to vector<1x144x128xf32>
    tpu.vector_store %arg6[%c0_78, %c256_79, %c0_80], %108 {strides = array<i32>} : memref<1x400x128xf32, #tpu.memory_space<vmem>>, vector<1x144x128xf32>,
    return
  }
  func.func @transform_0(%arg0: i32, %arg1: i32) -> (i32, i32, i32) {
    %c0_i32 = arith.constant 0 : i32
    %c0_i32_0 = arith.constant 0 : i32
    return %arg0, %arg1, %c0_i32 : i32, i32, i32
  }
  func.func @transform_1(%arg0: i32, %arg1: i32) -> (i32, i32, i32) {
    %c1_i32 = arith.constant 1 : i32
    %0 = arith.addi %arg1, %c1_i32 : i32
    %c2_i32 = arith.constant 2 : i32
    %1 = arith.muli %0, %c2_i32 : i32
    %c0_i32 = arith.constant 0 : i32
    %c0_i32_0 = arith.constant 0 : i32
    return %arg0, %1, %c0_i32 : i32, i32, i32
  }
  func.func @transform_2(%arg0: i32, %arg1: i32) -> (i32, i32, i32) {
    %c0_i32 = arith.constant 0 : i32
    %c0_i32_0 = arith.constant 0 : i32
    %c0_i32_1 = arith.constant 0 : i32
    %c0_i32_2 = arith.constant 0 : i32
    return %c0_i32, %c0_i32_0, %c0_i32_1 : i32, i32, i32
  }
  func.func @transform_3(%arg0: i32, %arg1: i32) -> (i32, i32) {
    %c0_i32 = arith.constant 0 : i32
    %c0_i32_0 = arith.constant 0 : i32
    %c0_i32_1 = arith.constant 0 : i32
    return %c0_i32, %c0_i32_0 : i32, i32
  }
  func.func @transform_4(%arg0: i32, %arg1: i32) -> (i32, i32, i32) {
    %c0_i32 = arith.constant 0 : i32
    %c0_i32_0 = arith.constant 0 : i32
    return %arg0, %arg1, %c0_i32 : i32, i32, i32
  }
}

</mosaic_0001>

<llo_original>
// kernel: unit_tcn_forward.1
$region0: #{unit_tcn_forward.1}
  #allocation0 [shape = 'u32[]', space=smem, size = 0x4, offset = 0x4, fixed_abs, tag = 'smem constant byte address 0x4 - core index']
  #allocation1 [shape = 'u32[144,128]{1,0:T(1,128)}', space=vmem, size = 0x12000, scoped, tag = 'internal scratch']
  %s0 = inlined_call_operand.hbm [shape: f32[2,600,4], index: 0, kind: input, shape index: {}, may-alias: {0,1}]
  %s1 = inlined_call_operand.hbm [shape: f32[2,600,4], index: 1, kind: input, shape index: {}, may-alias: {0,1}]
  %s2 = inlined_call_operand.hbm [shape: f32[9,4,128], index: 2, kind: input, shape index: {}]
  %s3 = inlined_call_operand.hbm [shape: f32[1,128], index: 3, kind: input, shape index: {}]
  %s4 = inlined_call_operand.hbm [shape: f32[2,400,128], index: 4, kind: output, shape index: {}]
  %s5 = sld [smem:[#allocation0]]
  $region65: #{unit_tcn_forward.1} parent=0
    _
  %s7 = ssub.s32 1, %s5
  %s8 = scalar_select 0, %s7, %s5
  $region1: #{unit_tcn_forward.1} parent=0
    #allocation2 [shape = 'u8[409600]{0}', space=vmem, size = 0x64000, scoped, tag = 'input window, operand 0']
    #allocation3 [shape = 's32[2]{0}', space=sflag, size = 0x8, scoped, tag = 'scoped memory for unit_tcn_forward.1']
    #allocation4 [shape = 's32[2]{0}', space=sflag, size = 0x8, scoped, tag = 'scoped memory for unit_tcn_forward.1']
    #allocation5 [shape = 'u8[204800]{0}', space=vmem, size = 0x32000, scoped, tag = 'input window, operand 1']
    #allocation6 [shape = 's32[2]{0}', space=sflag, size = 0x8, scoped, tag = 'scoped memory for unit_tcn_forward.1']
    #allocation7 [shape = 'u8[18432]{0}', space=vmem, size = 0x4800, scoped, tag = 'input window, operand 2, single buffered']
    #allocation8 [shape = 'u8[512]{0}', space=vmem, size = 0x400, scoped, tag = 'input window, operand 3, single buffered']
    #allocation9 [shape = 's32[1]{0}', space=sflag, size = 0x4, scoped, tag = 'scoped memory for unit_tcn_forward.1']
    #allocation10 [shape = 'u8[409600]{0}', space=vmem, size = 0x64000, scoped, tag = 'output window, operand 0']
    %9 = vsyncpa [#allocation3], 0
    %s10 = scalar_lea.sflag [#allocation3], 1
    %11 = vsyncpa %s10, 0
    %12 = vsyncpa [#allocation6], 0
    %s13 = scalar_lea.sflag [#allocation6], 1
    %14 = vsyncpa %s13, 0
    %15 = vsyncpa [#allocation9], 0
    %16 = vsyncpa [#allocation4], 0
    %s17 = scalar_lea.sflag [#allocation4], 1
    %18 = vsyncpa %s17, 0
    loop: start=0, step=1, limit=4
    $region2: #{unit_tcn_forward.1} parent=1 // loop_pre_header
      _
    $region3: #{unit_tcn_forward.1} parent=1 // loop_header
      %s20 = sphi 0, %s24
      %p21 = scmp.ge.s32.totalorder %s20, 4
      %s27 = sphi 0, %s39
      %s28 = sphi 0, %s35
      %s29 = sphi 0, %s27
      %s30 = sphi 0, %s28
      %s31 = sphi 0, %s29
      %s32 = sphi 0, %s30
      %s44 = sphi 0, %s46
      %s47 = sphi 0, %s44
      %s48 = sphi 0, %s47
      %s64 = sphi 0, %s48
      %s76 = sphi 0, %s78
      %s79 = sphi 0, %s76
      %s80 = sphi 0, %s79
      %s96 = sphi 0, %s80
      %s100 = sphi 0, %s100
      %s102 = sphi 0, %s100
      %s103 = sphi 0, %s102
      %s117 = sphi 0, %s103
      %s121 = sphi 0, %s121
      %s123 = sphi 0, %s121
      %s124 = sphi 0, %s123
      %s138 = sphi 0, %s124
      %s146 = sphi 0, %s148
      %s149 = sphi 0, %s146
      %s150 = sphi 0, %s149
      %s166 = sphi 0, %s150
    $region4: #{unit_tcn_forward.1} parent=1 // loop_header_branch
      %23 = sbr.rel (%p21) target = $region8
    $region5: #{unit_tcn_forward.1} parent=1 // loop_body
      %s25 = ssub.s32 %s20, 1
      %s26 = ssub.s32 %s20, 2
      %s33 = sadd.s32 1, %s28
      %p34 = scmp.ge.s32.totalorder %s33, 1
      %s35 = scalar_select %p34, 0, %s33
      %s36 = sadd.s32 1, %s27
      %s37 = scalar_select %p34, %s36, %s27
      %p38 = scmp.ge.s32.totalorder %s37, 2
      %s39 = scalar_select %p38, 0, %s37
      %s40 = ssub.s32 %s27, %s39
      %s41 = ssub.s32 %s28, %s35
      %s42 = sor.u32 %s40, %s41
      %p43 = scmp.eq.s32.totalorder %s42, 0
      %s45 = sadd.s32 %s44, 1
      %s46 = scalar_select %p43, %s44, %s45
      %p49 = pneg %p43
      %p50 = scmp.eq.s32.totalorder %s20, 1
      %p51 = por %p49, %p50
      %p52 = scmp.ne.s32.totalorder %s44, %s47
      %p53 = scmp.eq.s32.totalorder %s20, 0
      %p54 = por %p52, %p53
      %p55 = scmp.ne.s32.totalorder %s44, %s47
      %p56 = scmp.eq.s32.totalorder %s25, 1
      %p57 = por %p55, %p56
      %p58 = scmp.ne.s32.totalorder %s47, %s48
      %p59 = scmp.eq.s32.totalorder %s25, 0
      %p60 = por %p58, %p59
      %p61 = scmp.ne.s32.totalorder %s47, %s48
      %p62 = scmp.eq.s32.totalorder %s26, 1
      %p63 = por %p61, %p62
      %p65 = scmp.ne.s32.totalorder %s48, %s64
      %p66 = scmp.eq.s32.totalorder %s26, 0
      %p67 = por %p65, %p66
      %s68 = sadd.s32 %s28, 1
      %s69 = smul.u32 %s68, 2
      %s70 = sadd.s32 %s35, 1
      %s71 = smul.u32 %s70, 2
      %s72 = ssub.s32 %s27, %s39
      %s73 = ssub.s32 %s69, %s71
      %s74 = sor.u32 %s72, %s73
      %p75 = scmp.eq.s32.totalorder %s74, 0
      %s77 = sadd.s32 %s76, 1
      %s78 = scalar_select %p75, %s76, %s77
      %p81 = pneg %p75
      %p82 = scmp.eq.s32.totalorder %s20, 1
      %p83 = por %p81, %p82
      %p84 = scmp.ne.s32.totalorder %s76, %s79
      %p85 = scmp.eq.s32.totalorder %s20, 0
      %p86 = por %p84, %p85
      %p87 = scmp.ne.s32.totalorder %s76, %s79
      %p88 = scmp.eq.s32.totalorder %s25, 1
      %p89 = por %p87, %p88
      %p90 = scmp.ne.s32.totalorder %s79, %s80
      %p91 = scmp.eq.s32.totalorder %s25, 0
      %p92 = por %p90, %p91
      %p93 = scmp.ne.s32.totalorder %s79, %s80
      %p94 = scmp.eq.s32.totalorder %s26, 1
      %p95 = por %p93, %p94
      %p97 = scmp.ne.s32.totalorder %s80, %s96
      %p98 = scmp.eq.s32.totalorder %s26, 0
      %p99 = por %p97, %p98
      %s101 = sadd.s32 %s100, 1
      %p104 = scmp.eq.s32.totalorder %s20, 1
      %p105 = scmp.ne.s32.totalorder %s100, %s102
      %p106 = scmp.eq.s32.totalorder %s20, 0
      %p107 = por %p105, %p106
      %p108 = scmp.ne.s32.totalorder %s100, %s102
      %p109 = scmp.eq.s32.totalorder %s25, 1
      %p110 = por %p108, %p109
      %p111 = scmp.ne.s32.totalorder %s102, %s103
      %p112 = scmp.eq.s32.totalorder %s25, 0
      %p113 = por %p111, %p112
      %p114 = scmp.ne.s32.totalorder %s102, %s103
      %p115 = scmp.eq.s32.totalorder %s26, 1
      %p116 = por %p114, %p115
      %p118 = scmp.ne.s32.totalorder %s103, %s117
      %p119 = scmp.eq.s32.totalorder %s26, 0
      %p120 = por %p118, %p119
      %s122 = sadd.s32 %s121, 1
      %p125 = scmp.eq.s32.totalorder %s20, 1
      %p126 = scmp.ne.s32.totalorder %s121, %s123
      %p127 = scmp.eq.s32.totalorder %s20, 0
      %p128 = por %p126, %p127
      %p129 = scmp.ne.s32.totalorder %s121, %s123
      %p130 = scmp.eq.s32.totalorder %s25, 1
      %p131 = por %p129, %p130
      %p132 = scmp.ne.s32.totalorder %s123, %s124
      %p133 = scmp.eq.s32.totalorder %s25, 0
      %p134 = por %p132, %p133
      %p135 = scmp.ne.s32.totalorder %s123, %s124
      %p136 = scmp.eq.s32.totalorder %s26, 1
      %p137 = por %p135, %p136
      %p139 = scmp.ne.s32.totalorder %s124, %s138
      %p140 = scmp.eq.s32.totalorder %s26, 0
      %p141 = por %p139, %p140
      %s142 = ssub.s32 %s27, %s39
      %s143 = ssub.s32 %s28, %s35
      %s144 = sor.u32 %s142, %s143
      %p145 = scmp.eq.s32.totalorder %s144, 0
      %s147 = sadd.s32 %s146, 1
      %s148 = scalar_select %p145, %s146, %s147
      %p151 = pneg %p145
      %p152 = scmp.eq.s32.totalorder %s20, 1
      %p153 = por %p151, %p152
      %p154 = scmp.ne.s32.totalorder %s146, %s149
      %p155 = scmp.eq.s32.totalorder %s20, 0
      %p156 = por %p154, %p155
      %p157 = scmp.ne.s32.totalorder %s146, %s149
      %p158 = scmp.eq.s32.totalorder %s25, 1
      %p159 = por %p157, %p158
      %p160 = scmp.ne.s32.totalorder %s149, %s150
      %p161 = scmp.eq.s32.totalorder %s25, 0
      %p162 = por %p160, %p161
      %p163 = scmp.ne.s32.totalorder %s149, %s150
      %p164 = scmp.eq.s32.totalorder %s26, 1
      %p165 = por %p163, %p164
      %p167 = scmp.ne.s32.totalorder %s150, %s166
      %p168 = scmp.eq.s32.totalorder %s26, 0
      %p169 = por %p167, %p168
      %p170 = scmp.le.s32.totalorder 1, %s20
      %p171 = scmp.lt.s32.totalorder %s20, 3
      %p172 = pnand %p170, %p171
      %p173 = pneg %p172
      // Predicated region
      $region9: #{unit_tcn_forward.1} parent=5 // pred_check
        _
      $region10: #{unit_tcn_forward.1} parent=5 // pred_check_branch
        %175 = sbr.rel (%p172) target = $region12
      $region11: #{unit_tcn_forward.1} parent=5 // pred_region
        %s176 = ssub.s32 %s20, 1
        // Predicated region
        $region13: #{unit_tcn_forward.1} parent=11 // pred_check
          %p177 = pneg %p113
        $region14: #{unit_tcn_forward.1} parent=11 // pred_check_branch
          %179 = sbr.rel (%p177) target = $region16
        $region15: #{unit_tcn_forward.1} parent=11 // pred_region
          %s181 = ssub.s32 576, 576
          %182 = vsyncadd [#allocation6], %s181
          %s183 = sshll.u32 [#allocation7], 4
          %s184 = int_to_ptr.vmem [resolvable:$true] %s183
          %189 = dma.hbm_to_vmem [thread:$0]  %s2, 576, %s184, [#allocation6], 64, 64, 4
        $region16: #{unit_tcn_forward.1} parent=11 // pred_fallthru
          _
        // Predicated region
        $region17: #{unit_tcn_forward.1} parent=11 // pred_check
          %p190 = pneg %p134
        $region18: #{unit_tcn_forward.1} parent=11 // pred_check_branch
          %192 = sbr.rel (%p190) target = $region20
        $region19: #{unit_tcn_forward.1} parent=11 // pred_region
          %s194 = ssub.s32 16, 16
          %195 = vsyncadd [#allocation9], %s194
          %s197 = sshll.u32 [#allocation8], 4
          %s198 = int_to_ptr.vmem [resolvable:$true] %s197
          %200 = dma.hbm_to_vmem [thread:$0]  %s3, 16, %s198, [#allocation9]
        $region20: #{unit_tcn_forward.1} parent=11 // pred_fallthru
          _
      $region12: #{unit_tcn_forward.1} parent=5 // pred_fallthru
        _
      %p201 = scmp.lt.s32.totalorder %s20, 2
      // Predicated region
      $region21: #{unit_tcn_forward.1} parent=5 // pred_check
        %p202 = pneg %p201
      $region22: #{unit_tcn_forward.1} parent=5 // pred_check_branch
        %204 = sbr.rel (%p202) target = $region24
      $region23: #{unit_tcn_forward.1} parent=5 // pred_region
        // Predicated region
        $region25: #{unit_tcn_forward.1} parent=23 // pred_check
          %p205 = pneg %p54
        $region26: #{unit_tcn_forward.1} parent=23 // pred_check_branch
          %207 = sbr.rel (%p205) target = $region28
        $region27: #{unit_tcn_forward.1} parent=23 // pred_region
          %s208 = sand.u32 %s44, 1
          %s209 = scalar_lea.sflag [#allocation3], %s208
          %s210 = sand.u32 %s44, 1
          %s211 = smul.addr %s210, 400
          %s212 = scalar_lea.vmem [#allocation2], %s211
          %s213 = smul.u32 50, %s28
          %s214 = ssub.s32 75, %s213
          %p215 = scmp.lt.s32.totalorder %s214, 50
          %s216 = scalar_select %p215, %s214, 50
          %s217 = smul.u32 128, %s216
          %s219 = ssub.s32 6400, %s217
          %220 = vsyncadd %s209, %s219
          %p221 = scmp.ne.s32.totalorder 0, %s217
          %s222 = smul.addr %s27, 75
          %s223 = sadd.s32 %s213, %s222
          %s224 = smul.addr %s223, 128
          %s225 = scalar_lea.hbm %s0, %s224
          %s226 = smul.u32 8, %s216
          %s227 = sshll.u32 %s212, 4
          %s228 = int_to_ptr.vmem [resolvable:$true] %s227
          %s229 = sshll.u32 %s226, 4
          %233 = dma.hbm_to_vmem [thread:$0]  (%p221), %s225, %s229, %s228, %s209, 128, 128, 8
        $region28: #{unit_tcn_forward.1} parent=23 // pred_fallthru
          _
        // Predicated region
        $region29: #{unit_tcn_forward.1} parent=23 // pred_check
          %p234 = pneg %p86
        $region30: #{unit_tcn_forward.1} parent=23 // pred_check_branch
          %236 = sbr.rel (%p234) target = $region32
        $region31: #{unit_tcn_forward.1} parent=23 // pred_region
          %s237 = sand.u32 %s20, 1
          %s238 = scalar_lea.sflag [#allocation6], %s237
          %s239 = sand.u32 %s76, 1
          %s240 = smul.addr %s239, 200
          %s241 = scalar_lea.vmem [#allocation5], %s240
          %s242 = sadd.s32 %s28, 1
          %s243 = smul.u32 %s242, 2
          %s244 = smul.u32 25, %s243
          %s246 = ssub.s32 3200, 3200
          %247 = vsyncadd %s238, %s246
          %s248 = smul.addr %s27, 75
          %s249 = sadd.s32 %s244, %s248
          %s250 = smul.addr %s249, 128
          %s251 = scalar_lea.hbm %s1, %s250
          %s252 = sshll.u32 %s241, 4
          %s253 = int_to_ptr.vmem [resolvable:$true] %s252
          %258 = dma.hbm_to_vmem [thread:$0]  %s251, 3200, %s253, %s238, 128, 128, 8
        $region32: #{unit_tcn_forward.1} parent=23 // pred_fallthru
          _
      $region24: #{unit_tcn_forward.1} parent=5 // pred_fallthru
        _
      %p259 = scmp.le.s32.totalorder 1, %s20
      %p260 = scmp.lt.s32.totalorder %s20, 3
      %p261 = pnand %p259, %p260
      %p262 = pneg %p261
      // Predicated region
      $region33: #{unit_tcn_forward.1} parent=5 // pred_check
        _
      $region34: #{unit_tcn_forward.1} parent=5 // pred_check_branch
        %264 = sbr.rel (%p261) target = $region36
      $region35: #{unit_tcn_forward.1} parent=5 // pred_region
        %s265 = ssub.s32 %s20, 1
        %s266 = sand.u32 %s47, 1
        %s267 = scalar_lea.sflag [#allocation3], %s266
        %s268 = sand.u32 %s47, 1
        %s269 = smul.addr %s268, 400
        %s270 = scalar_lea.vmem [#allocation2], %s269
        // Predicated region
        $region37: #{unit_tcn_forward.1} parent=35 // pred_check
          %p271 = pneg %p60
        $region38: #{unit_tcn_forward.1} parent=35 // pred_check_branch
          %273 = sbr.rel (%p271) target = $region40
        $region39: #{unit_tcn_forward.1} parent=35 // pred_region
          %274 = dma.done %s267, 6400
        $region40: #{unit_tcn_forward.1} parent=35 // pred_fallthru
          _
        %s275 = sand.u32 %s25, 1
        %s276 = scalar_lea.sflag [#allocation6], %s275
        %s277 = sand.u32 %s79, 1
        %s278 = smul.addr %s277, 200
        %s279 = scalar_lea.vmem [#allocation5], %s278
        // Predicated region
        $region41: #{unit_tcn_forward.1} parent=35 // pred_check
          %p280 = pneg %p92
        $region42: #{unit_tcn_forward.1} parent=35 // pred_check_branch
          %282 = sbr.rel (%p280) target = $region44
        $region43: #{unit_tcn_forward.1} parent=35 // pred_region
          %283 = dma.done %s276, 3200
        $region44: #{unit_tcn_forward.1} parent=35 // pred_fallthru
          _
        // Predicated region
        $region45: #{unit_tcn_forward.1} parent=35 // pred_check
          %p284 = pneg %p113
        $region46: #{unit_tcn_forward.1} parent=35 // pred_check_branch
          %286 = sbr.rel (%p284) target = $region48
        $region47: #{unit_tcn_forward.1} parent=35 // pred_region
          %287 = dma.done [#allocation6], 576
        $region48: #{unit_tcn_forward.1} parent=35 // pred_fallthru
          _
        // Predicated region
        $region49: #{unit_tcn_forward.1} parent=35 // pred_check
          %p288 = pneg %p134
        $region50: #{unit_tcn_forward.1} parent=35 // pred_check_branch
          %290 = sbr.rel (%p288) target = $region52
        $region51: #{unit_tcn_forward.1} parent=35 // pred_region
          %291 = dma.done [#allocation9], 16
        $region52: #{unit_tcn_forward.1} parent=35 // pred_fallthru
          _
        %s292 = sand.u32 %s47, 1
        %s293 = scalar_lea.sflag [#allocation3], %s292
        %s294 = sand.u32 %s47, 1
        %s295 = smul.addr %s294, 400
        %s296 = scalar_lea.vmem [#allocation2], %s295
        %p297 = pneg %p60
        %p298 = pneg %p57
        %s299 = sand.u32 %s25, 1
        %s300 = scalar_lea.sflag [#allocation6], %s299
        %s301 = sand.u32 %s79, 1
        %s302 = smul.addr %s301, 200
        %s303 = scalar_lea.vmem [#allocation5], %s302
        %p304 = pneg %p92
        %p305 = pneg %p89
        %p306 = pneg %p113
        %p307 = pneg %p110
        %p308 = pneg %p134
        %p309 = pneg %p131
        %p310 = pneg %p162
        %p311 = pneg %p159
        %s312 = sand.u32 %s149, 1
        %s313 = scalar_lea.sflag [#allocation4], %s312
        %s314 = sand.u32 %s149, 1
        %s315 = smul.addr %s314, 400
        %s316 = scalar_lea.vmem [#allocation10], %s315
        %s317 = smul.u32 50, %s30
        %s318 = ssub.s32 75, %s317
        %p319 = scmp.lt.s32.totalorder %s318, 50
        %s320 = scalar_select %p319, %s318, 50
        %s321 = smul.u32 128, %s320
        %s322 = sadd.s32 %s30, 1
        %s323 = smul.u32 %s322, 2
        %s324 = smul.u32 25, %s323
        %s325 = smul.u32 50, %s30
        %v326 = vld [vmem:[#allocation8] sm:$0x1]
        %v327 = vld [vmem:[%s270] sm:$0xff]
        %v328 = vld [vmem:[%s270 + $0x8] sm:$0xff]
        %v329 = vld [vmem:[%s270 + $0x10] sm:$0xff]
        %v330 = vld [vmem:[%s270 + $0x18] sm:$0xff]
        %v331 = vld [vmem:[%s270 + $0x20] sm:$0xff]
        %v332 = vld [vmem:[%s270 + $0x28] sm:$0xff]
        %v333 = vld [vmem:[%s270 + $0x30] sm:$0xff]
        %v334 = vld [vmem:[%s270 + $0x38] sm:$0xff]
        %v335 = vld [vmem:[%s270 + $0x40] sm:$0xff]
        %v336 = vld [vmem:[%s270 + $0x48] sm:$0xff]
        %v337 = vld [vmem:[%s270 + $0x50] sm:$0xff]
        %v338 = vld [vmem:[%s270 + $0x58] sm:$0xff]
        %v339 = vld [vmem:[%s270 + $0x60] sm:$0xff]
        %v340 = vld [vmem:[%s270 + $0x68] sm:$0xff]
        %v341 = vld [vmem:[%s270 + $0x70] sm:$0xff]
        %v342 = vld [vmem:[%s270 + $0x78] sm:$0xff]
        %v343 = vld [vmem:[%s270 + $0x80] sm:$0xff]
        %v344 = vld [vmem:[%s270 + $0x88] sm:$0xff]
        %v345 = vld [vmem:[%s270 + $0x90] sm:$0xff]
        %v346 = vld [vmem:[%s270 + $0x98] sm:$0xff]
        %v347 = vld [vmem:[%s270 + $0xa0] sm:$0xff]
        %v348 = vld [vmem:[%s270 + $0xa8] sm:$0xff]
        %v349 = vld [vmem:[%s270 + $0xb0] sm:$0xff]
        %v350 = vld [vmem:[%s270 + $0xb8] sm:$0xff]
        %v351 = vld [vmem:[%s270 + $0xc0] sm:$0xff]
        %v352 = vld [vmem:[%s270 + $0xc8] sm:$0xff]
        %v353 = vld [vmem:[%s270 + $0xd0] sm:$0xff]
        %v354 = vld [vmem:[%s270 + $0xd8] sm:$0xff]
        %v355 = vld [vmem:[%s270 + $0xe0] sm:$0xff]
        %v356 = vld [vmem:[%s270 + $0xe8] sm:$0xff]
        %v357 = vld [vmem:[%s270 + $0xf0] sm:$0xff]
        %v358 = vld [vmem:[%s270 + $0xf8] sm:$0xff]
        %v359 = vld [vmem:[%s270 + $0x100] sm:$0xff]
        %v360 = vld [vmem:[%s270 + $0x108] sm:$0xff]
        %v361 = vld [vmem:[%s270 + $0x110] sm:$0xff]
        %v362 = vld [vmem:[%s270 + $0x118] sm:$0xff]
        %v363 = vld [vmem:[%s270 + $0x120] sm:$0xff]
        %v364 = vld [vmem:[%s270 + $0x128] sm:$0xff]
        %v365 = vld [vmem:[%s270 + $0x130] sm:$0xff]
        %v366 = vld [vmem:[%s270 + $0x138] sm:$0xff]
        %v367 = vld [vmem:[%s270 + $0x140] sm:$0xff]
        %v368 = vld [vmem:[%s270 + $0x148] sm:$0xff]
        %v369 = vld [vmem:[%s270 + $0x150] sm:$0xff]
        %v370 = vld [vmem:[%s270 + $0x158] sm:$0xff]
        %v371 = vld [vmem:[%s270 + $0x160] sm:$0xff]
        %v372 = vld [vmem:[%s270 + $0x168] sm:$0xff]
        %v373 = vld [vmem:[%s270 + $0x170] sm:$0xff]
        %v374 = vld [vmem:[%s270 + $0x178] sm:$0xff]
        %v375 = vld [vmem:[%s270 + $0x180] sm:$0xff]
        %v376 = vld [vmem:[%s270 + $0x188] sm:$0xff]
        %v377 = vld [vmem:[%s279] sm:$0xff]
        %v378 = vld [vmem:[%s279 + $0x8] sm:$0xff]
        %v379 = vld [vmem:[%s279 + $0x10] sm:$0xff]
        %v380 = vld [vmem:[%s279 + $0x18] sm:$0xff]
        %v381 = vld [vmem:[%s279 + $0x20] sm:$0xff]
        %v382 = vld [vmem:[%s279 + $0x28] sm:$0xff]
        %v383 = vld [vmem:[%s279 + $0x30] sm:$0xff]
        %v384 = vld [vmem:[#allocation7] sm:$0xf]
        %s385 = scalar_lea.vmem [#allocation7], 4
        %v386 = vld [vmem:[%s385] sm:$0xf]
        %vm420 = vcmask 1046528
        %v421 = vrot.slane %v330, 1
        %v422 = vrot.slane %v331, 1
        %v423 = vsel %vm420, %v421, %v422
        %v424 = vrot.slane %v332, 1
        %v425 = vsel %vm420, %v422, %v424
        %v426 = vrot.slane %v333, 1
        %v427 = vsel %vm420, %v424, %v426
        %v428 = vrot.slane %v334, 1
        %v429 = vsel %vm420, %v426, %v428
        %v430 = vrot.slane %v335, 1
        %v431 = vsel %vm420, %v428, %v430
        %v432 = vrot.slane %v336, 1
        %v433 = vsel %vm420, %v430, %v432
        %v434 = vrot.slane %v337, 1
        %v435 = vsel %vm420, %v432, %v434
        %v436 = vrot.slane %v338, 1
        %v437 = vsel %vm420, %v434, %v436
        %v438 = vrot.slane %v339, 1
        %v439 = vsel %vm420, %v436, %v438
        %v440 = vrot.slane %v340, 1
        %v441 = vsel %vm420, %v438, %v440
        %v442 = vrot.slane %v341, 1
        %v443 = vsel %vm420, %v440, %v442
        %v444 = vrot.slane %v342, 1
        %v445 = vsel %vm420, %v442, %v444
        %v446 = vrot.slane %v343, 1
        %v447 = vsel %vm420, %v444, %v446
        %v448 = vrot.slane %v344, 1
        %v449 = vsel %vm420, %v446, %v448
        %v450 = vrot.slane %v345, 1
        %v451 = vsel %vm420, %v448, %v450
        %v452 = vrot.slane %v346, 1
        %v453 = vsel %vm420, %v450, %v452
        %v454 = vrot.slane %v347, 1
        %v455 = vsel %vm420, %v452, %v454
        %v456 = vrot.slane %v348, 1
        %v457 = vsel %vm420, %v454, %v456
        %v458 = vrot.slane %v349, 1
        %v459 = vsel %vm420, %v456, %v458
        %v460 = vrot.slane %v350, 1
        %v461 = vsel %vm420, %v458, %v460
        %v462 = vrot.slane %v351, 1
        %v463 = vsel %vm420, %v460, %v462
        %v464 = vrot.slane %v352, 1
        %v465 = vsel %vm420, %v462, %v464
        %v466 = vrot.slane %v353, 1
        %v467 = vsel %vm420, %v464, %v466
        %v468 = vrot.slane %v354, 1
        %v469 = vsel %vm420, %v466, %v468
        %v470 = vrot.slane %v355, 1
        %v471 = vsel %vm420, %v468, %v470
        %v472 = vrot.slane %v356, 1
        %v473 = vsel %vm420, %v470, %v472
        %v474 = vrot.slane %v357, 1
        %v475 = vsel %vm420, %v472, %v474
        %v476 = vrot.slane %v358, 1
        %v477 = vsel %vm420, %v474, %v476
        %v478 = vrot.slane %v359, 1
        %v479 = vsel %vm420, %v476, %v478
        %v480 = vrot.slane %v360, 1
        %v481 = vsel %vm420, %v478, %v480
        %v482 = vrot.slane %v361, 1
        %v483 = vsel %vm420, %v480, %v482
        %v484 = vrot.slane %v362, 1
        %v485 = vsel %vm420, %v482, %v484
        %vm486 = vcmask 31744
        %v487 = vsel %vm486, %v423, 0
        %v489 = vsel %vm486, %v425, 0
        %v491 = vsel %vm486, %v427, 0
        %v493 = vsel %vm486, %v429, 0
        %v495 = vsel %vm486, %v431, 0
        %v497 = vsel %vm486, %v433, 0
        %v499 = vsel %vm486, %v435, 0
        %v501 = vsel %vm486, %v437, 0
        %v503 = vsel %vm486, %v439, 0
        %v505 = vsel %vm486, %v441, 0
        %v507 = vsel %vm486, %v443, 0
        %v509 = vsel %vm486, %v445, 0
        %v511 = vsel %vm486, %v447, 0
        %v513 = vsel %vm486, %v449, 0
        %v515 = vsel %vm486, %v451, 0
        %v517 = vsel %vm486, %v453, 0
        %v519 = vsel %vm486, %v455, 0
        %v521 = vsel %vm486, %v457, 0
        %v523 = vsel %vm486, %v459, 0
        %v525 = vsel %vm486, %v461, 0
        %v527 = vsel %vm486, %v463, 0
        %v529 = vsel %vm486, %v465, 0
        %v531 = vsel %vm486, %v467, 0
        %v533 = vsel %vm486, %v469, 0
        %v535 = vsel %vm486, %v471, 0
        %v537 = vsel %vm486, %v473, 0
        %v539 = vsel %vm486, %v475, 0
        %v541 = vsel %vm486, %v477, 0
        %v543 = vsel %vm486, %v479, 0
        %v545 = vsel %vm486, %v481, 0
        %v547 = vsel %vm486, %v483, 0
        %v549 = vsel %vm486, %v485, 0
        %vm551 = vcmask 1043456
        %v553 = vsel %vm551, %v386, 0
        %555 = vmatprep.subr.mxu0 0.0
        %556 = vmatpush1.msra.mxu0 %v553
        %557 = vmatprep.subr.mxu0 0.0
        %558 = vmatpush1.msra.mxu0 0.0
        %559 = vmatprep.subr.mxu0 0.0
        %560 = vmatpush1.msra.mxu0 0.0
        %561 = vmatprep.subr.mxu0 0.0
        %562 = vmatpush1.msra.mxu0 0.0
        %563 = vmatprep.subr.mxu0 0.0
        %564 = vmatpush1.msra.mxu0 0.0
        %565 = vmatprep.subr.mxu0 0.0
        %566 = vmatpush1.msra.mxu0 0.0
        %567 = vmatprep.subr.mxu0 0.0
        %568 = vmatpush1.msra.mxu0 0.0
        %569 = vmatprep.subr.mxu0 0.0
        %570 = vmatpush1.msra.mxu0 0.0
        %571 = vmatprep.subr.mxu0 0.0
        %572 = vmatpush1.msra.mxu0 0.0
        %573 = vmatprep.subr.mxu0 0.0
        %574 = vmatpush1.msra.mxu0 0.0
        %575 = vmatprep.subr.mxu0 0.0
        %576 = vmatpush1.msra.mxu0 0.0
        %577 = vmatprep.subr.mxu0 0.0
        %578 = vmatpush1.msra.mxu0 0.0
        %579 = vmatprep.subr.mxu0 0.0
        %580 = vmatpush1.msra.mxu0 0.0
        %581 = vmatprep.subr.mxu0 0.0
        %582 = vmatpush1.msra.mxu0 0.0
        %583 = vmatprep.subr.mxu0 0.0
        %584 = vmatpush1.msra.mxu0 0.0
        %585 = vmatprep.subr.mxu0 0.0
        %586 = vmatpush1.msra.mxu0 0.0
        %587 = vmatprep.subr.mxu0 0.0
        %588 = vmatpush1.msra.mxu0 0.0
        %589 = vmatprep.subr.mxu0 0.0
        %590 = vmatpush1.msra.mxu0 0.0
        %591 = vmatprep.subr.mxu0 0.0
        %592 = vmatpush1.msra.mxu0 0.0
        %593 = vmatprep.subr.mxu0 0.0
        %594 = vmatpush1.msra.mxu0 0.0
        %595 = vmatprep.subr.mxu0 0.0
        %596 = vmatpush1.msra.mxu0 0.0
        %597 = vmatprep.subr.mxu0 0.0
        %598 = vmatpush1.msra.mxu0 0.0
        %599 = vmatprep.subr.mxu0 0.0
        %600 = vmatpush1.msra.mxu0 0.0
        %601 = vmatprep.subr.mxu0 0.0
        %602 = vmatpush1.msra.mxu0 0.0
        %603 = vmatprep.subr.mxu0 0.0
        %604 = vmatpush1.msra.mxu0 0.0
        %605 = vmatprep.subr.mxu0 0.0
        %606 = vmatpush1.msra.mxu0 0.0
        %607 = vmatprep.subr.mxu0 0.0
        %608 = vmatpush1.msra.mxu0 0.0
        %609 = vmatprep.subr.mxu0 0.0
        %610 = vmatpush1.msra.mxu0 0.0
        %611 = vmatprep.subr.mxu0 0.0
        %612 = vmatpush1.msra.mxu0 0.0
        %613 = vmatprep.subr.mxu0 0.0
        %614 = vmatpush1.msra.mxu0 0.0
        %615 = vmatprep.subr.mxu0 0.0
        %616 = vmatpush1.msra.mxu0 0.0
        %617 = vmatprep.subr.mxu0 0.0
        %618 = vmatpush1.msra.mxu0 0.0
        %619 = vmatprep.mubr.f32.mxu0 0.0
        %620 = vmatmul.mubr.f32.gmra.mrb[0].mxu0 %v487
        %v621 = vpop.f32.mrb[0].mxu0
        %v622 = vadd.f32 0.0, %v621
        %v623 = vpop.f32.mrb[0].mxu0
        %624 = vmatprep.mubr.f32.mxu0 0.0
        %625 = vmatmul.mubr.f32.gmra.mrb[0].mxu0 %v489
        %v626 = vpop.f32.mrb[0].mxu0
        %v627 = vadd.f32 0.0, %v626
        %v628 = vpop.f32.mrb[0].mxu0
        %629 = vmatprep.mubr.f32.mxu0 0.0
        %630 = vmatmul.mubr.f32.gmra.mrb[0].mxu0 %v491
        %v631 = vpop.f32.mrb[0].mxu0
        %v632 = vadd.f32 0.0, %v631
        %v633 = vpop.f32.mrb[0].mxu0
        %634 = vmatprep.mubr.f32.mxu0 0.0
        %635 = vmatmul.mubr.f32.gmra.mrb[0].mxu0 %v493
        %v636 = vpop.f32.mrb[0].mxu0
        %v637 = vadd.f32 0.0, %v636
        %v638 = vpop.f32.mrb[0].mxu0
        %639 = vmatprep.mubr.f32.mxu0 0.0
        %640 = vmatmul.mubr.f32.gmra.mrb[0].mxu0 %v495
        %v641 = vpop.f32.mrb[0].mxu0
        %v642 = vadd.f32 0.0, %v641
        %v643 = vpop.f32.mrb[0].mxu0
        %644 = vmatprep.mubr.f32.mxu0 0.0
        %645 = vmatmul.mubr.f32.gmra.mrb[0].mxu0 %v497
        %v646 = vpop.f32.mrb[0].mxu0
        %v647 = vadd.f32 0.0, %v646
        %v648 = vpop.f32.mrb[0].mxu0
        %649 = vmatprep.mubr.f32.mxu0 0.0
        %650 = vmatmul.mubr.f32.gmra.mrb[0].mxu0 %v499
        %v651 = vpop.f32.mrb[0].mxu0
        %v652 = vadd.f32 0.0, %v651
        %v653 = vpop.f32.mrb[0].mxu0
        %654 = vmatprep.mubr.f32.mxu0 0.0
        %655 = vmatmul.mubr.f32.gmra.mrb[0].mxu0 %v501
        %v656 = vpop.f32.mrb[0].mxu0
        %v657 = vadd.f32 0.0, %v656
        %v658 = vpop.f32.mrb[0].mxu0
        %659 = vmatprep.mubr.f32.mxu0 0.0
        %660 = vmatmul.mubr.f32.gmra.mrb[0].mxu0 %v503
        %v661 = vpop.f32.mrb[0].mxu0
        %v662 = vadd.f32 0.0, %v661
        %v663 = vpop.f32.mrb[0].mxu0
        %664 = vmatprep.mubr.f32.mxu0 0.0
        %665 = vmatmul.mubr.f32.gmra.mrb[0].mxu0 %v505
        %v666 = vpop.f32.mrb[0].mxu0
        %v667 = vadd.f32 0.0, %v666
        %v668 = vpop.f32.mrb[0].mxu0
        %669 = vmatprep.mubr.f32.mxu0 0.0
        %670 = vmatmul.mubr.f32.gmra.mrb[0].mxu0 %v507
        %v671 = vpop.f32.mrb[0].mxu0
        %v672 = vadd.f32 0.0, %v671
        %v673 = vpop.f32.mrb[0].mxu0
        %674 = vmatprep.mubr.f32.mxu0 0.0
        %675 = vmatmul.mubr.f32.gmra.mrb[0].mxu0 %v509
        %v676 = vpop.f32.mrb[0].mxu0
        %v677 = vadd.f32 0.0, %v676
        %v678 = vpop.f32.mrb[0].mxu0
        %679 = vmatprep.mubr.f32.mxu0 0.0
        %680 = vmatmul.mubr.f32.gmra.mrb[0].mxu0 %v511
        %v681 = vpop.f32.mrb[0].mxu0
        %v682 = vadd.f32 0.0, %v681
        %v683 = vpop.f32.mrb[0].mxu0
        %684 = vmatprep.mubr.f32.mxu0 0.0
        %685 = vmatmul.mubr.f32.gmra.mrb[0].mxu0 %v513
        %v686 = vpop.f32.mrb[0].mxu0
        %v687 = vadd.f32 0.0, %v686
        %v688 = vpop.f32.mrb[0].mxu0
        %689 = vmatprep.mubr.f32.mxu0 0.0
        %690 = vmatmul.mubr.f32.gmra.mrb[0].mxu0 %v515
        %v691 = vpop.f32.mrb[0].mxu0
        %v692 = vadd.f32 0.0, %v691
        %v693 = vpop.f32.mrb[0].mxu0
        %694 = vmatprep.mubr.f32.mxu0 0.0
        %695 = vmatmul.mubr.f32.gmra.mrb[0].mxu0 %v517
        %v696 = vpop.f32.mrb[0].mxu0
        %v697 = vadd.f32 0.0, %v696
        %v698 = vpop.f32.mrb[0].mxu0
        %699 = vmatprep.mubr.f32.mxu0 0.0
        %700 = vmatmul.mubr.f32.gmra.mrb[0].mxu0 %v519
        %v701 = vpop.f32.mrb[0].mxu0
        %v702 = vadd.f32 0.0, %v701
        %v703 = vpop.f32.mrb[0].mxu0
        %704 = vmatprep.mubr.f32.mxu0 0.0
        %705 = vmatmul.mubr.f32.gmra.mrb[0].mxu0 %v521
        %v706 = vpop.f32.mrb[0].mxu0
        %v707 = vadd.f32 0.0, %v706
        %v708 = vpop.f32.mrb[0].mxu0
        %709 = vmatprep.mubr.f32.mxu0 0.0
        %710 = vmatmul.mubr.f32.gmra.mrb[0].mxu0 %v523
        %v711 = vpop.f32.mrb[0].mxu0
        %v712 = vadd.f32 0.0, %v711
        %v713 = vpop.f32.mrb[0].mxu0
        %714 = vmatprep.mubr.f32.mxu0 0.0
        %715 = vmatmul.mubr.f32.gmra.mrb[0].mxu0 %v525
        %v716 = vpop.f32.mrb[0].mxu0
        %v717 = vadd.f32 0.0, %v716
        %v718 = vpop.f32.mrb[0].mxu0
        %719 = vmatprep.mubr.f32.mxu0 0.0
        %720 = vmatmul.mubr.f32.gmra.mrb[0].mxu0 %v527
        %v721 = vpop.f32.mrb[0].mxu0
        %v722 = vadd.f32 0.0, %v721
        %v723 = vpop.f32.mrb[0].mxu0
        %724 = vmatprep.mubr.f32.mxu0 0.0
        %725 = vmatmul.mubr.f32.gmra.mrb[0].mxu0 %v529
        %v726 = vpop.f32.mrb[0].mxu0
        %v727 = vadd.f32 0.0, %v726
        %v728 = vpop.f32.mrb[0].mxu0
        %729 = vmatprep.mubr.f32.mxu0 0.0
        %730 = vmatmul.mubr.f32.gmra.mrb[0].mxu0 %v531
        %v731 = vpop.f32.mrb[0].mxu0
        %v732 = vadd.f32 0.0, %v731
        %v733 = vpop.f32.mrb[0].mxu0
        %734 = vmatprep.mubr.f32.mxu0 0.0
        %735 = vmatmul.mubr.f32.gmra.mrb[0].mxu0 %v533
        %v736 = vpop.f32.mrb[0].mxu0
        %v737 = vadd.f32 0.0, %v736
        %v738 = vpop.f32.mrb[0].mxu0
        %739 = vmatprep.mubr.f32.mxu0 0.0
        %740 = vmatmul.mubr.f32.gmra.mrb[0].mxu0 %v535
        %v741 = vpop.f32.mrb[0].mxu0
        %v742 = vadd.f32 0.0, %v741
        %v743 = vpop.f32.mrb[0].mxu0
        %744 = vmatprep.mubr.f32.mxu0 0.0
        %745 = vmatmul.mubr.f32.gmra.mrb[0].mxu0 %v537
        %v746 = vpop.f32.mrb[0].mxu0
        %v747 = vadd.f32 0.0, %v746
        %v748 = vpop.f32.mrb[0].mxu0
        %749 = vmatprep.mubr.f32.mxu0 0.0
        %750 = vmatmul.mubr.f32.gmra.mrb[0].mxu0 %v539
        %v751 = vpop.f32.mrb[0].mxu0
        %v752 = vadd.f32 0.0, %v751
        %v753 = vpop.f32.mrb[0].mxu0
        %754 = vmatprep.mubr.f32.mxu0 0.0
        %755 = vmatmul.mubr.f32.gmra.mrb[0].mxu0 %v541
        %v756 = vpop.f32.mrb[0].mxu0
        %v757 = vadd.f32 0.0, %v756
        %v758 = vpop.f32.mrb[0].mxu0
        %759 = vmatprep.mubr.f32.mxu0 0.0
        %760 = vmatmul.mubr.f32.gmra.mrb[0].mxu0 %v543
        %v761 = vpop.f32.mrb[0].mxu0
        %v762 = vadd.f32 0.0, %v761
        %v763 = vpop.f32.mrb[0].mxu0
        %764 = vmatprep.mubr.f32.mxu0 0.0
        %765 = vmatmul.mubr.f32.gmra.mrb[0].mxu0 %v545
        %v766 = vpop.f32.mrb[0].mxu0
        %v767 = vadd.f32 0.0, %v766
        %v768 = vpop.f32.mrb[0].mxu0
        %769 = vmatprep.mubr.f32.mxu0 0.0
        %770 = vmatmul.mubr.f32.gmra.mrb[0].mxu0 %v547
        %v771 = vpop.f32.mrb[0].mxu0
        %v772 = vadd.f32 0.0, %v771
        %v773 = vpop.f32.mrb[0].mxu0
        %774 = vmatprep.mubr.f32.mxu0 0.0
        %775 = vmatmul.mubr.f32.gmra.mrb[0].mxu0 %v549
        %v776 = vpop.f32.mrb[0].mxu0
        %v777 = vadd.f32 0.0, %v776
        %v778 = vpop.f32.mrb[0].mxu0
        %779 = vdwg.mxu0
        %v781 = vsel %vm486, %v327, 0
        %v784 = vsel %vm486, %v328, 0
        %v787 = vsel %vm486, %v329, 0
        %v789 = vsel %vm486, %v330, 0
        %v791 = vsel %vm486, %v331, 0
        %v793 = vsel %vm486, %v332, 0
        %v795 = vsel %vm486, %v333, 0
        %v797 = vsel %vm486, %v334, 0
        %v799 = vsel %vm486, %v335, 0
        %v801 = vsel %vm486, %v336, 0
        %v803 = vsel %vm486, %v337, 0
        %v805 = vsel %vm486, %v338, 0
        %v807 = vsel %vm486, %v339, 0
        %v809 = vsel %vm486, %v340, 0
        %v811 = vsel %vm486, %v341, 0
        %v813 = vsel %vm486, %v342, 0
        %v815 = vsel %vm486, %v343, 0
        %v817 = vsel %vm486, %v344, 0
        %v819 = vsel %vm486, %v345, 0
        %v821 = vsel %vm486, %v346, 0
        %v823 = vsel %vm486, %v347, 0
        %v825 = vsel %vm486, %v348, 0
        %v827 = vsel %vm486, %v349, 0
        %v829 = vsel %vm486, %v350, 0
        %v831 = vsel %vm486, %v351, 0
        %v833 = vsel %vm486, %v352, 0
        %v835 = vsel %vm486, %v353, 0
        %v837 = vsel %vm486, %v354, 0
        %v839 = vsel %vm486, %v355, 0
        %v841 = vsel %vm486, %v356, 0
        %v843 = vsel %vm486, %v357, 0
        %v845 = vsel %vm486, %v358, 0
        %v848 = vsel %vm551, %v384, 0
        %850 = vmatprep.subr.mxu0 0.0
        %851 = vmatpush1.msra.mxu0 %v848
        %852 = vmatprep.subr.mxu0 0.0
        %853 = vmatpush1.msra.mxu0 0.0
        %854 = vmatprep.subr.mxu0 0.0
        %855 = vmatpush1.msra.mxu0 0.0
        %856 = vmatprep.subr.mxu0 0.0
        %857 = vmatpush1.msra.mxu0 0.0
        %858 = vmatprep.subr.mxu0 0.0
        %859 = vmatpush1.msra.mxu0 0.0
        %860 = vmatprep.subr.mxu0 0.0
        %861 = vmatpush1.msra.mxu0 0.0
        %862 = vmatprep.subr.mxu0 0.0
        %863 = vmatpush1.msra.mxu0 0.0
        %864 = vmatprep.subr.mxu0 0.0
        %865 = vmatpush1.msra.mxu0 0.0
        %866 = vmatprep.subr.mxu0 0.0
        %867 = vmatpush1.msra.mxu0 0.0
        %868 = vmatprep.subr.mxu0 0.0
        %869 = vmatpush1.msra.mxu0 0.0
        %870 = vmatprep.subr.mxu0 0.0
        %871 = vmatpush1.msra.mxu0 0.0
        %872 = vmatprep.subr.mxu0 0.0
        %873 = vmatpush1.msra.mxu0 0.0
        %874 = vmatprep.subr.mxu0 0.0
        %875 = vmatpush1.msra.mxu0 0.0
        %876 = vmatprep.subr.mxu0 0.0
        %877 = vmatpush1.msra.mxu0 0.0
        %878 = vmatprep.subr.mxu0 0.0
        %879 = vmatpush1.msra.mxu0 0.0
        %880 = vmatprep.subr.mxu0 0.0
        %881 = vmatpush1.msra.mxu0 0.0
        %882 = vmatprep.subr.mxu0 0.0
        %883 = vmatpush1.msra.mxu0 0.0
        %884 = vmatprep.subr.mxu0 0.0
        %885 = vmatpush1.msra.mxu0 0.0
        %886 = vmatprep.subr.mxu0 0.0
        %887 = vmatpush1.msra.mxu0 0.0
        %888 = vmatprep.subr.mxu0 0.0
        %889 = vmatpush1.msra.mxu0 0.0
        %890 = vmatprep.subr.mxu0 0.0
        %891 = vmatpush1.msra.mxu0 0.0
        %892 = vmatprep.subr.mxu0 0.0
        %893 = vmatpush1.msra.mxu0 0.0
        %894 = vmatprep.subr.mxu0 0.0
        %895 = vmatpush1.msra.mxu0 0.0
        %896 = vmatprep.subr.mxu0 0.0
        %897 = vmatpush1.msra.mxu0 0.0
        %898 = vmatprep.subr.mxu0 0.0
        %899 = vmatpush1.msra.mxu0 0.0
        %900 = vmatprep.subr.mxu0 0.0
        %901 = vmatpush1.msra.mxu0 0.0
        %902 = vmatprep.subr.mxu0 0.0
        %903 = vmatpush1.msra.mxu0 0.0
        %904 = vmatprep.subr.mxu0 0.0
        %905 = vmatpush1.msra.mxu0 0.0
        %906 = vmatprep.subr.mxu0 0.0
        %907 = vmatpush1.msra.mxu0 0.0
        %908 = vmatprep.subr.mxu0 0.0
        %909 = vmatpush1.msra.mxu0 0.0
        %910 = vmatprep.subr.mxu0 0.0
        %911 = vmatpush1.msra.mxu0 0.0
        %912 = vmatprep.subr.mxu0 0.0
        %913 = vmatpush1.msra.mxu0 0.0
        %914 = vmatprep.mubr.f32.mxu0 0.0
        %915 = vmatmul.mubr.f32.gmra.mrb[0].mxu0 %v781
        %v916 = vpop.f32.mrb[0].mxu0
        %v917 = vadd.f32 %v622, %v916
        %v918 = vpop.f32.mrb[0].mxu0
        %919 = vmatprep.mubr.f32.mxu0 0.0
        %920 = vmatmul.mubr.f32.gmra.mrb[0].mxu0 %v784
        %v921 = vpop.f32.mrb[0].mxu0
        %v922 = vadd.f32 %v627, %v921
        %v923 = vpop.f32.mrb[0].mxu0
        %924 = vmatprep.mubr.f32.mxu0 0.0
        %925 = vmatmul.mubr.f32.gmra.mrb[0].mxu0 %v787
        %v926 = vpop.f32.mrb[0].mxu0
        %v927 = vadd.f32 %v632, %v926
        %v928 = vpop.f32.mrb[0].mxu0
        %929 = vmatprep.mubr.f32.mxu0 0.0
        %930 = vmatmul.mubr.f32.gmra.mrb[0].mxu0 %v789
        %v931 = vpop.f32.mrb[0].mxu0
        %v932 = vadd.f32 %v637, %v931
        %v933 = vpop.f32.mrb[0].mxu0
        %934 = vmatprep.mubr.f32.mxu0 0.0
        %935 = vmatmul.mubr.f32.gmra.mrb[0].mxu0 %v791
        %v936 = vpop.f32.mrb[0].mxu0
        %v937 = vadd.f32 %v642, %v936
        %v938 = vpop.f32.mrb[0].mxu0
        %939 = vmatprep.mubr.f32.mxu0 0.0
        %940 = vmatmul.mubr.f32.gmra.mrb[0].mxu0 %v793
        %v941 = vpop.f32.mrb[0].mxu0
        %v942 = vadd.f32 %v647, %v941
        %v943 = vpop.f32.mrb[0].mxu0
        %944 = vmatprep.mubr.f32.mxu0 0.0
        %945 = vmatmul.mubr.f32.gmra.mrb[0].mxu0 %v795
        %v946 = vpop.f32.mrb[0].mxu0
        %v947 = vadd.f32 %v652, %v946
        %v948 = vpop.f32.mrb[0].mxu0
        %949 = vmatprep.mubr.f32.mxu0 0.0
        %950 = vmatmul.mubr.f32.gmra.mrb[0].mxu0 %v797
        %v951 = vpop.f32.mrb[0].mxu0
        %v952 = vadd.f32 %v657, %v951
        %v953 = vpop.f32.mrb[0].mxu0
        %954 = vmatprep.mubr.f32.mxu0 0.0
        %955 = vmatmul.mubr.f32.gmra.mrb[0].mxu0 %v799
        %v956 = vpop.f32.mrb[0].mxu0
        %v957 = vadd.f32 %v662, %v956
        %v958 = vpop.f32.mrb[0].mxu0
        %959 = vmatprep.mubr.f32.mxu0 0.0
        %960 = vmatmul.mubr.f32.gmra.mrb[0].mxu0 %v801
        %v961 = vpop.f32.mrb[0].mxu0
        %v962 = vadd.f32 %v667, %v961
        %v963 = vpop.f32.mrb[0].mxu0
        %964 = vmatprep.mubr.f32.mxu0 0.0
        %965 = vmatmul.mubr.f32.gmra.mrb[0].mxu0 %v803
        %v966 = vpop.f32.mrb[0].mxu0
        %v967 = vadd.f32 %v672, %v966
        %v968 = vpop.f32.mrb[0].mxu0
        %969 = vmatprep.mubr.f32.mxu0 0.0
        %970 = vmatmul.mubr.f32.gmra.mrb[0].mxu0 %v805
        %v971 = vpop.f32.mrb[0].mxu0
        %v972 = vadd.f32 %v677, %v971
        %v973 = vpop.f32.mrb[0].mxu0
        %974 = vmatprep.mubr.f32.mxu0 0.0
        %975 = vmatmul.mubr.f32.gmra.mrb[0].mxu0 %v807
        %v976 = vpop.f32.mrb[0].mxu0
        %v977 = vadd.f32 %v682, %v976
        %v978 = vpop.f32.mrb[0].mxu0
        %979 = vmatprep.mubr.f32.mxu0 0.0
        %980 = vmatmul.mubr.f32.gmra.mrb[0].mxu0 %v809
        %v981 = vpop.f32.mrb[0].mxu0
        %v982 = vadd.f32 %v687, %v981
        %v983 = vpop.f32.mrb[0].mxu0
        %984 = vmatprep.mubr.f32.mxu0 0.0
        %985 = vmatmul.mubr.f32.gmra.mrb[0].mxu0 %v811
        %v986 = vpop.f32.mrb[0].mxu0
        %v987 = vadd.f32 %v692, %v986
        %v988 = vpop.f32.mrb[0].mxu0
        %989 = vmatprep.mubr.f32.mxu0 0.0
        %990 = vmatmul.mubr.f32.gmra.mrb[0].mxu0 %v813
        %v991 = vpop.f32.mrb[0].mxu0
        %v992 = vadd.f32 %v697, %v991
        %v993 = vpop.f32.mrb[0].mxu0
        %994 = vmatprep.mubr.f32.mxu0 0.0
        %995 = vmatmul.mubr.f32.gmra.mrb[0].mxu0 %v815
        %v996 = vpop.f32.mrb[0].mxu0
        %v997 = vadd.f32 %v702, %v996
        %v998 = vpop.f32.mrb[0].mxu0
        %999 = vmatprep.mubr.f32.mxu0 0.0
        %1000 = vmatmul.mubr.f32.gmra.mrb[0].mxu0 %v817
        %v1001 = vpop.f32.mrb[0].mxu0
        %v1002 = vadd.f32 %v707, %v1001
        %v1003 = vpop.f32.mrb[0].mxu0
        %1004 = vmatprep.mubr.f32.mxu0 0.0
        %1005 = vmatmul.mubr.f32.gmra.mrb[0].mxu0 %v819
        %v1006 = vpop.f32.mrb[0].mxu0
        %v1007 = vadd.f32 %v712, %v1006
        %v1008 = vpop.f32.mrb[0].mxu0
        %1009 = vmatprep.mubr.f32.mxu0 0.0
        %1010 = vmatmul.mubr.f32.gmra.mrb[0].mxu0 %v821
        %v1011 = vpop.f32.mrb[0].mxu0
        %v1012 = vadd.f32 %v717, %v1011
        %v1013 = vpop.f32.mrb[0].mxu0
        %1014 = vmatprep.mubr.f32.mxu0 0.0
        %1015 = vmatmul.mubr.f32.gmra.mrb[0].mxu0 %v823
        %v1016 = vpop.f32.mrb[0].mxu0
        %v1017 = vadd.f32 %v722, %v1016
        %v1018 = vpop.f32.mrb[0].mxu0
        %1019 = vmatprep.mubr.f32.mxu0 0.0
        %1020 = vmatmul.mubr.f32.gmra.mrb[0].mxu0 %v825
        %v1021 = vpop.f32.mrb[0].mxu0
        %v1022 = vadd.f32 %v727, %v1021
        %v1023 = vpop.f32.mrb[0].mxu0
        %1024 = vmatprep.mubr.f32.mxu0 0.0
        %1025 = vmatmul.mubr.f32.gmra.mrb[0].mxu0 %v827
        %v1026 = vpop.f32.mrb[0].mxu0
        %v1027 = vadd.f32 %v732, %v1026
        %v1028 = vpop.f32.mrb[0].mxu0
        %1029 = vmatprep.mubr.f32.mxu0 0.0
        %1030 = vmatmul.mubr.f32.gmra.mrb[0].mxu0 %v829
        %v1031 = vpop.f32.mrb[0].mxu0
        %v1032 = vadd.f32 %v737, %v1031
        %v1033 = vpop.f32.mrb[0].mxu0
        %1034 = vmatprep.mubr.f32.mxu0 0.0
        %1035 = vmatmul.mubr.f32.gmra.mrb[0].mxu0 %v831
        %v1036 = vpop.f32.mrb[0].mxu0
        %v1037 = vadd.f32 %v742, %v1036
        %v1038 = vpop.f32.mrb[0].mxu0
        %1039 = vmatprep.mubr.f32.mxu0 0.0
        %1040 = vmatmul.mubr.f32.gmra.mrb[0].mxu0 %v833
        %v1041 = vpop.f32.mrb[0].mxu0
        %v1042 = vadd.f32 %v747, %v1041
        %v1043 = vpop.f32.mrb[0].mxu0
        %1044 = vmatprep.mubr.f32.mxu0 0.0
        %1045 = vmatmul.mubr.f32.gmra.mrb[0].mxu0 %v835
        %v1046 = vpop.f32.mrb[0].mxu0
        %v1047 = vadd.f32 %v752, %v1046
        %v1048 = vpop.f32.mrb[0].mxu0
        %1049 = vmatprep.mubr.f32.mxu0 0.0
        %1050 = vmatmul.mubr.f32.gmra.mrb[0].mxu0 %v837
        %v1051 = vpop.f32.mrb[0].mxu0
        %v1052 = vadd.f32 %v757, %v1051
        %v1053 = vpop.f32.mrb[0].mxu0
        %1054 = vmatprep.mubr.f32.mxu0 0.0
        %1055 = vmatmul.mubr.f32.gmra.mrb[0].mxu0 %v839
        %v1056 = vpop.f32.mrb[0].mxu0
        %v1057 = vadd.f32 %v762, %v1056
        %v1058 = vpop.f32.mrb[0].mxu0
        %1059 = vmatprep.mubr.f32.mxu0 0.0
        %1060 = vmatmul.mubr.f32.gmra.mrb[0].mxu0 %v841
        %v1061 = vpop.f32.mrb[0].mxu0
        %v1062 = vadd.f32 %v767, %v1061
        %v1063 = vpop.f32.mrb[0].mxu0
        %1064 = vmatprep.mubr.f32.mxu0 0.0
        %1065 = vmatmul.mubr.f32.gmra.mrb[0].mxu0 %v843
        %v1066 = vpop.f32.mrb[0].mxu0
        %v1067 = vadd.f32 %v772, %v1066
        %v1068 = vpop.f32.mrb[0].mxu0
        %1069 = vmatprep.mubr.f32.mxu0 0.0
        %1070 = vmatmul.mubr.f32.gmra.mrb[0].mxu0 %v845
        %v1071 = vpop.f32.mrb[0].mxu0
        %v1072 = vadd.f32 %v777, %v1071
        %v1073 = vpop.f32.mrb[0].mxu0
        %1074 = vdwg.mxu0
        %s1075 = scalar_lea.vmem [#allocation7], 8
        %v1076 = vld [vmem:[%s1075] sm:$0xf]
        %vm1080 = vcmask 1045504
        %v1081 = vrot.slane %v333, 2
        %v1082 = vrot.slane %v334, 2
        %v1083 = vsel %vm1080, %v1081, %v1082
        %v1084 = vrot.slane %v335, 2
        %v1085 = vsel %vm1080, %v1082, %v1084
        %v1086 = vrot.slane %v336, 2
        %v1087 = vsel %vm1080, %v1084, %v1086
        %v1088 = vrot.slane %v337, 2
        %v1089 = vsel %vm1080, %v1086, %v1088
        %v1090 = vrot.slane %v338, 2
        %v1091 = vsel %vm1080, %v1088, %v1090
        %v1092 = vrot.slane %v339, 2
        %v1093 = vsel %vm1080, %v1090, %v1092
        %v1094 = vrot.slane %v340, 2
        %v1095 = vsel %vm1080, %v1092, %v1094
        %v1096 = vrot.slane %v341, 2
        %v1097 = vsel %vm1080, %v1094, %v1096
        %v1098 = vrot.slane %v342, 2
        %v1099 = vsel %vm1080, %v1096, %v1098
        %v1100 = vrot.slane %v343, 2
        %v1101 = vsel %vm1080, %v1098, %v1100
        %v1102 = vrot.slane %v344, 2
        %v1103 = vsel %vm1080, %v1100, %v1102
        %v1104 = vrot.slane %v345, 2
        %v1105 = vsel %vm1080, %v1102, %v1104
        %v1106 = vrot.slane %v346, 2
        %v1107 = vsel %vm1080, %v1104, %v1106
        %v1108 = vrot.slane %v347, 2
        %v1109 = vsel %vm1080, %v1106, %v1108
        %v1110 = vrot.slane %v348, 2
        %v1111 = vsel %vm1080, %v1108, %v1110
        %v1112 = vrot.slane %v349, 2
        %v1113 = vsel %vm1080, %v1110, %v1112
        %v1114 = vrot.slane %v350, 2
        %v1115 = vsel %vm1080, %v1112, %v1114
        %v1116 = vrot.slane %v351, 2
        %v1117 = vsel %vm1080, %v1114, %v1116
        %v1118 = vrot.slane %v352, 2
        %v1119 = vsel %vm1080, %v1116, %v1118
        %v1120 = vrot.slane %v353, 2
        %v1121 = vsel %vm1080, %v1118, %v1120
        %v1122 = vrot.slane %v354, 2
        %v1123 = vsel %vm1080, %v1120, %v1122
        %v1124 = vrot.slane %v355, 2
        %v1125 = vsel %vm1080, %v1122, %v1124
        %v1126 = vrot.slane %v356, 2
        %v1127 = vsel %vm1080, %v1124, %v1126
        %v1128 = vrot.slane %v357, 2
        %v1129 = vsel %vm1080, %v1126, %v1128
        %v1130 = vrot.slane %v358, 2
        %v1131 = vsel %vm1080, %v1128, %v1130
        %v1132 = vrot.slane %v359, 2
        %v1133 = vsel %vm1080, %v1130, %v1132
        %v1134 = vrot.slane %v360, 2
        %v1135 = vsel %vm1080, %v1132, %v1134
        %v1136 = vrot.slane %v361, 2
        %v1137 = vsel %vm1080, %v1134, %v1136
        %v1138 = vrot.slane %v362, 2
        %v1139 = vsel %vm1080, %v1136, %v1138
        %v1140 = vrot.slane %v363, 2
        %v1141 = vsel %vm1080, %v1138, %v1140
        %v1142 = vrot.slane %v364, 2
        %v1143 = vsel %vm1080, %v1140, %v1142
        %v1144 = vrot.slane %v365, 2
        %v1145 = vsel %vm1080, %v1142, %v1144
        %v1146 = vsel %vm486, %v1083, 0
        %v1148 = vsel %vm486, %v1085, 0
        %v1150 = vsel %vm486, %v1087, 0
        %v1152 = vsel %vm486, %v1089, 0
        %v1154 = vsel %vm486, %v1091, 0
        %v1156 = vsel %vm486, %v1093, 0
        %v1158 = vsel %vm486, %v1095, 0
        %v1160 = vsel %vm486, %v1097, 0
        %v1162 = vsel %vm486, %v1099, 0
        %v1164 = vsel %vm486, %v1101, 0
        %v1166 = vsel %vm486, %v1103, 0
        %v1168 = vsel %vm486, %v1105, 0
        %v1170 = vsel %vm486, %v1107, 0
        %v1172 = vsel %vm486, %v1109, 0
        %v1174 = vsel %vm486, %v1111, 0
        %v1176 = vsel %vm486, %v1113, 0
        %v1178 = vsel %vm486, %v1115, 0
        %v1180 = vsel %vm486, %v1117, 0
        %v1182 = vsel %vm486, %v1119, 0
        %v1184 = vsel %vm486, %v1121, 0
        %v1186 = vsel %vm486, %v1123, 0
        %v1188 = vsel %vm486, %v1125, 0
        %v1190 = vsel %vm486, %v1127, 0
        %v1192 = vsel %vm486, %v1129, 0
        %v1194 = vsel %vm486, %v1131, 0
        %v1196 = vsel %vm486, %v1133, 0
        %v1198 = vsel %vm486, %v1135, 0
        %v1200 = vsel %vm486, %v1137, 0
        %v1202 = vsel %vm486, %v1139, 0
        %v1204 = vsel %vm486, %v1141, 0
        %v1206 = vsel %vm486, %v1143, 0
        %v1208 = vsel %vm486, %v1145, 0
        %v1211 = vsel %vm551, %v1076, 0
        %1213 = vmatprep.subr.mxu0 0.0
        %1214 = vmatpush1.msra.mxu0 %v1211
        %1215 = vmatprep.subr.mxu0 0.0
        %1216 = vmatpush1.msra.mxu0 0.0
        %1217 = vmatprep.subr.mxu0 0.0
        %1218 = vmatpush1.msra.mxu0 0.0
        %1219 = vmatprep.subr.mxu0 0.0
        %1220 = vmatpush1.msra.mxu0 0.0
        %1221 = vmatprep.subr.mxu0 0.0
        %1222 = vmatpush1.msra.mxu0 0.0
        %1223 = vmatprep.subr.mxu0 0.0
        %1224 = vmatpush1.msra.mxu0 0.0
        %1225 = vmatprep.subr.mxu0 0.0
        %1226 = vmatpush1.msra.mxu0 0.0
        %1227 = vmatprep.subr.mxu0 0.0
        %1228 = vmatpush1.msra.mxu0 0.0
        %1229 = vmatprep.subr.mxu0 0.0
        %1230 = vmatpush1.msra.mxu0 0.0
        %1231 = vmatprep.subr.mxu0 0.0
        %1232 = vmatpush1.msra.mxu0 0.0
        %1233 = vmatprep.subr.mxu0 0.0
        %1234 = vmatpush1.msra.mxu0 0.0
        %1235 = vmatprep.subr.mxu0 0.0
        %1236 = vmatpush1.msra.mxu0 0.0
        %1237 = vmatprep.subr.mxu0 0.0
        %1238 = vmatpush1.msra.mxu0 0.0
        %1239 = vmatprep.subr.mxu0 0.0
        %1240 = vmatpush1.msra.mxu0 0.0
        %1241 = vmatprep.subr.mxu0 0.0
        %1242 = vmatpush1.msra.mxu0 0.0
        %1243 = vmatprep.subr.mxu0 0.0
        %1244 = vmatpush1.msra.mxu0 0.0
        %1245 = vmatprep.subr.mxu0 0.0
        %1246 = vmatpush1.msra.mxu0 0.0
        %1247 = vmatprep.subr.mxu0 0.0
        %1248 = vmatpush1.msra.mxu0 0.0
        %1249 = vmatprep.subr.mxu0 0.0
        %1250 = vmatpush1.msra.mxu0 0.0
        %1251 = vmatprep.subr.mxu0 0.0
        %1252 = vmatpush1.msra.mxu0 0.0
        %1253 = vmatprep.subr.mxu0 0.0
        %1254 = vmatpush1.msra.mxu0 0.0
        %1255 = vmatprep.subr.mxu0 0.0
        %1256 = vmatpush1.msra.mxu0 0.0
        %1257 = vmatprep.subr.mxu0 0.0
        %1258 = vmatpush1.msra.mxu0 0.0
        %1259 = vmatprep.subr.mxu0 0.0
        %1260 = vmatpush1.msra.mxu0 0.0
        %1261 = vmatprep.subr.mxu0 0.0
        %1262 = vmatpush1.msra.mxu0 0.0
        %1263 = vmatprep.subr.mxu0 0.0
        %1264 = vmatpush1.msra.mxu0 0.0
        %1265 = vmatprep.subr.mxu0 0.0
        %1266 = vmatpush1.msra.mxu0 0.0
        %1267 = vmatprep.subr.mxu0 0.0
        %1268 = vmatpush1.msra.mxu0 0.0
        %1269 = vmatprep.subr.mxu0 0.0
        %1270 = vmatpush1.msra.mxu0 0.0
        %1271 = vmatprep.subr.mxu0 0.0
        %1272 = vmatpush1.msra.mxu0 0.0
        %1273 = vmatprep.subr.mxu0 0.0
        %1274 = vmatpush1.msra.mxu0 0.0
        %1275 = vmatprep.subr.mxu0 0.0
        %1276 = vmatpush1.msra.mxu0 0.0
        %1277 = vmatprep.mubr.f32.mxu0 0.0
        %1278 = vmatmul.mubr.f32.gmra.mrb[0].mxu0 %v1146
        %v1279 = vpop.f32.mrb[0].mxu0
        %v1280 = vadd.f32 0.0, %v1279
        %v1281 = vpop.f32.mrb[0].mxu0
        %1282 = vmatprep.mubr.f32.mxu0 0.0
        %1283 = vmatmul.mubr.f32.gmra.mrb[0].mxu0 %v1148
        %v1284 = vpop.f32.mrb[0].mxu0
        %v1285 = vadd.f32 0.0, %v1284
        %v1286 = vpop.f32.mrb[0].mxu0
        %1287 = vmatprep.mubr.f32.mxu0 0.0
        %1288 = vmatmul.mubr.f32.gmra.mrb[0].mxu0 %v1150
        %v1289 = vpop.f32.mrb[0].mxu0
        %v1290 = vadd.f32 0.0, %v1289
        %v1291 = vpop.f32.mrb[0].mxu0
        %1292 = vmatprep.mubr.f32.mxu0 0.0
        %1293 = vmatmul.mubr.f32.gmra.mrb[0].mxu0 %v1152
        %v1294 = vpop.f32.mrb[0].mxu0
        %v1295 = vadd.f32 0.0, %v1294
        %v1296 = vpop.f32.mrb[0].mxu0
        %1297 = vmatprep.mubr.f32.mxu0 0.0
        %1298 = vmatmul.mubr.f32.gmra.mrb[0].mxu0 %v1154
        %v1299 = vpop.f32.mrb[0].mxu0
        %v1300 = vadd.f32 0.0, %v1299
        %v1301 = vpop.f32.mrb[0].mxu0
        %1302 = vmatprep.mubr.f32.mxu0 0.0
        %1303 = vmatmul.mubr.f32.gmra.mrb[0].mxu0 %v1156
        %v1304 = vpop.f32.mrb[0].mxu0
        %v1305 = vadd.f32 0.0, %v1304
        %v1306 = vpop.f32.mrb[0].mxu0
        %1307 = vmatprep.mubr.f32.mxu0 0.0
        %1308 = vmatmul.mubr.f32.gmra.mrb[0].mxu0 %v1158
        %v1309 = vpop.f32.mrb[0].mxu0
        %v1310 = vadd.f32 0.0, %v1309
        %v1311 = vpop.f32.mrb[0].mxu0
        %1312 = vmatprep.mubr.f32.mxu0 0.0
        %1313 = vmatmul.mubr.f32.gmra.mrb[0].mxu0 %v1160
        %v1314 = vpop.f32.mrb[0].mxu0
        %v1315 = vadd.f32 0.0, %v1314
        %v1316 = vpop.f32.mrb[0].mxu0
        %1317 = vmatprep.mubr.f32.mxu0 0.0
        %1318 = vmatmul.mubr.f32.gmra.mrb[0].mxu0 %v1162
        %v1319 = vpop.f32.mrb[0].mxu0
        %v1320 = vadd.f32 0.0, %v1319
        %v1321 = vpop.f32.mrb[0].mxu0
        %1322 = vmatprep.mubr.f32.mxu0 0.0
        %1323 = vmatmul.mubr.f32.gmra.mrb[0].mxu0 %v1164
        %v1324 = vpop.f32.mrb[0].mxu0
        %v1325 = vadd.f32 0.0, %v1324
        %v1326 = vpop.f32.mrb[0].mxu0
        %1327 = vmatprep.mubr.f32.mxu0 0.0
        %1328 = vmatmul.mubr.f32.gmra.mrb[0].mxu0 %v1166
        %v1329 = vpop.f32.mrb[0].mxu0
        %v1330 = vadd.f32 0.0, %v1329
        %v1331 = vpop.f32.mrb[0].mxu0
        %1332 = vmatprep.mubr.f32.mxu0 0.0
        %1333 = vmatmul.mubr.f32.gmra.mrb[0].mxu0 %v1168
        %v1334 = vpop.f32.mrb[0].mxu0
        %v1335 = vadd.f32 0.0, %v1334
        %v1336 = vpop.f32.mrb[0].mxu0
        %1337 = vmatprep.mubr.f32.mxu0 0.0
        %1338 = vmatmul.mubr.f32.gmra.mrb[0].mxu0 %v1170
        %v1339 = vpop.f32.mrb[0].mxu0
        %v1340 = vadd.f32 0.0, %v1339
        %v1341 = vpop.f32.mrb[0].mxu0
        %1342 = vmatprep.mubr.f32.mxu0 0.0
        %1343 = vmatmul.mubr.f32.gmra.mrb[0].mxu0 %v1172
        %v1344 = vpop.f32.mrb[0].mxu0
        %v1345 = vadd.f32 0.0, %v1344
        %v1346 = vpop.f32.mrb[0].mxu0
        %1347 = vmatprep.mubr.f32.mxu0 0.0
        %1348 = vmatmul.mubr.f32.gmra.mrb[0].mxu0 %v1174
        %v1349 = vpop.f32.mrb[0].mxu0
        %v1350 = vadd.f32 0.0, %v1349
        %v1351 = vpop.f32.mrb[0].mxu0
        %1352 = vmatprep.mubr.f32.mxu0 0.0
        %1353 = vmatmul.mubr.f32.gmra.mrb[0].mxu0 %v1176
        %v1354 = vpop.f32.mrb[0].mxu0
        %v1355 = vadd.f32 0.0, %v1354
        %v1356 = vpop.f32.mrb[0].mxu0
        %1357 = vmatprep.mubr.f32.mxu0 0.0
        %1358 = vmatmul.mubr.f32.gmra.mrb[0].mxu0 %v1178
        %v1359 = vpop.f32.mrb[0].mxu0
        %v1360 = vadd.f32 0.0, %v1359
        %v1361 = vpop.f32.mrb[0].mxu0
        %1362 = vmatprep.mubr.f32.mxu0 0.0
        %1363 = vmatmul.mubr.f32.gmra.mrb[0].mxu0 %v1180
        %v1364 = vpop.f32.mrb[0].mxu0
        %v1365 = vadd.f32 0.0, %v1364
        %v1366 = vpop.f32.mrb[0].mxu0
        %1367 = vmatprep.mubr.f32.mxu0 0.0
        %1368 = vmatmul.mubr.f32.gmra.mrb[0].mxu0 %v1182
        %v1369 = vpop.f32.mrb[0].mxu0
        %v1370 = vadd.f32 0.0, %v1369
        %v1371 = vpop.f32.mrb[0].mxu0
        %1372 = vmatprep.mubr.f32.mxu0 0.0
        %1373 = vmatmul.mubr.f32.gmra.mrb[0].mxu0 %v1184
        %v1374 = vpop.f32.mrb[0].mxu0
        %v1375 = vadd.f32 0.0, %v1374
        %v1376 = vpop.f32.mrb[0].mxu0
        %1377 = vmatprep.mubr.f32.mxu0 0.0
        %1378 = vmatmul.mubr.f32.gmra.mrb[0].mxu0 %v1186
        %v1379 = vpop.f32.mrb[0].mxu0
        %v1380 = vadd.f32 0.0, %v1379
        %v1381 = vpop.f32.mrb[0].mxu0
        %1382 = vmatprep.mubr.f32.mxu0 0.0
        %1383 = vmatmul.mubr.f32.gmra.mrb[0].mxu0 %v1188
        %v1384 = vpop.f32.mrb[0].mxu0
        %v1385 = vadd.f32 0.0, %v1384
        %v1386 = vpop.f32.mrb[0].mxu0
        %1387 = vmatprep.mubr.f32.mxu0 0.0
        %1388 = vmatmul.mubr.f32.gmra.mrb[0].mxu0 %v1190
        %v1389 = vpop.f32.mrb[0].mxu0
        %v1390 = vadd.f32 0.0, %v1389
        %v1391 = vpop.f32.mrb[0].mxu0
        %1392 = vmatprep.mubr.f32.mxu0 0.0
        %1393 = vmatmul.mubr.f32.gmra.mrb[0].mxu0 %v1192
        %v1394 = vpop.f32.mrb[0].mxu0
        %v1395 = vadd.f32 0.0, %v1394
        %v1396 = vpop.f32.mrb[0].mxu0
        %1397 = vmatprep.mubr.f32.mxu0 0.0
        %1398 = vmatmul.mubr.f32.gmra.mrb[0].mxu0 %v1194
        %v1399 = vpop.f32.mrb[0].mxu0
        %v1400 = vadd.f32 0.0, %v1399
        %v1401 = vpop.f32.mrb[0].mxu0
        %1402 = vmatprep.mubr.f32.mxu0 0.0
        %1403 = vmatmul.mubr.f32.gmra.mrb[0].mxu0 %v1196
        %v1404 = vpop.f32.mrb[0].mxu0
        %v1405 = vadd.f32 0.0, %v1404
        %v1406 = vpop.f32.mrb[0].mxu0
        %1407 = vmatprep.mubr.f32.mxu0 0.0
        %1408 = vmatmul.mubr.f32.gmra.mrb[0].mxu0 %v1198
        %v1409 = vpop.f32.mrb[0].mxu0
        %v1410 = vadd.f32 0.0, %v1409
        %v1411 = vpop.f32.mrb[0].mxu0
        %1412 = vmatprep.mubr.f32.mxu0 0.0
        %1413 = vmatmul.mubr.f32.gmra.mrb[0].mxu0 %v1200
        %v1414 = vpop.f32.mrb[0].mxu0
        %v1415 = vadd.f32 0.0, %v1414
        %v1416 = vpop.f32.mrb[0].mxu0
        %1417 = vmatprep.mubr.f32.mxu0 0.0
        %1418 = vmatmul.mubr.f32.gmra.mrb[0].mxu0 %v1202
        %v1419 = vpop.f32.mrb[0].mxu0
        %v1420 = vadd.f32 0.0, %v1419
        %v1421 = vpop.f32.mrb[0].mxu0
        %1422 = vmatprep.mubr.f32.mxu0 0.0
        %1423 = vmatmul.mubr.f32.gmra.mrb[0].mxu0 %v1204
        %v1424 = vpop.f32.mrb[0].mxu0
        %v1425 = vadd.f32 0.0, %v1424
        %v1426 = vpop.f32.mrb[0].mxu0
        %1427 = vmatprep.mubr.f32.mxu0 0.0
        %1428 = vmatmul.mubr.f32.gmra.mrb[0].mxu0 %v1206
        %v1429 = vpop.f32.mrb[0].mxu0
        %v1430 = vadd.f32 0.0, %v1429
        %v1431 = vpop.f32.mrb[0].mxu0
        %1432 = vmatprep.mubr.f32.mxu0 0.0
        %1433 = vmatmul.mubr.f32.gmra.mrb[0].mxu0 %v1208
        %v1434 = vpop.f32.mrb[0].mxu0
        %v1435 = vadd.f32 0.0, %v1434
        %v1436 = vpop.f32.mrb[0].mxu0
        %1437 = vdwg.mxu0
        %v1438 = vadd.f32 %v917, %v1280
        %v1439 = vadd.f32 %v922, %v1285
        %v1440 = vadd.f32 %v927, %v1290
        %v1441 = vadd.f32 %v932, %v1295
        %v1442 = vadd.f32 %v937, %v1300
        %v1443 = vadd.f32 %v942, %v1305
        %v1444 = vadd.f32 %v947, %v1310
        %v1445 = vadd.f32 %v952, %v1315
        %v1446 = vadd.f32 %v957, %v1320
        %v1447 = vadd.f32 %v962, %v1325
        %v1448 = vadd.f32 %v967, %v1330
        %v1449 = vadd.f32 %v972, %v1335
        %v1450 = vadd.f32 %v977, %v1340
        %v1451 = vadd.f32 %v982, %v1345
        %v1452 = vadd.f32 %v987, %v1350
        %v1453 = vadd.f32 %v992, %v1355
        %v1454 = vadd.f32 %v997, %v1360
        %v1455 = vadd.f32 %v1002, %v1365
        %v1456 = vadd.f32 %v1007, %v1370
        %v1457 = vadd.f32 %v1012, %v1375
        %v1458 = vadd.f32 %v1017, %v1380
        %v1459 = vadd.f32 %v1022, %v1385
        %v1460 = vadd.f32 %v1027, %v1390
        %v1461 = vadd.f32 %v1032, %v1395
        %v1462 = vadd.f32 %v1037, %v1400
        %v1463 = vadd.f32 %v1042, %v1405
        %v1464 = vadd.f32 %v1047, %v1410
        %v1465 = vadd.f32 %v1052, %v1415
        %v1466 = vadd.f32 %v1057, %v1420
        %v1467 = vadd.f32 %v1062, %v1425
        %v1468 = vadd.f32 %v1067, %v1430
        %v1469 = vadd.f32 %v1072, %v1435
        %s1470 = scalar_lea.vmem [#allocation7], 12
        %v1471 = vld [vmem:[%s1470] sm:$0xf]
        %vm1475 = vcmask 1044480
        %v1476 = vrot.slane %v336, 3
        %v1477 = vrot.slane %v337, 3
        %v1478 = vsel %vm1475, %v1476, %v1477
        %v1479 = vrot.slane %v338, 3
        %v1480 = vsel %vm1475, %v1477, %v1479
        %v1481 = vrot.slane %v339, 3
        %v1482 = vsel %vm1475, %v1479, %v1481
        %v1483 = vrot.slane %v340, 3
        %v1484 = vsel %vm1475, %v1481, %v1483
        %v1485 = vrot.slane %v341, 3
        %v1486 = vsel %vm1475, %v1483, %v1485
        %v1487 = vrot.slane %v342, 3
        %v1488 = vsel %vm1475, %v1485, %v1487
        %v1489 = vrot.slane %v343, 3
        %v1490 = vsel %vm1475, %v1487, %v1489
        %v1491 = vrot.slane %v344, 3
        %v1492 = vsel %vm1475, %v1489, %v1491
        %v1493 = vrot.slane %v345, 3
        %v1494 = vsel %vm1475, %v1491, %v1493
        %v1495 = vrot.slane %v346, 3
        %v1496 = vsel %vm1475, %v1493, %v1495
        %v1497 = vrot.slane %v347, 3
        %v1498 = vsel %vm1475, %v1495, %v1497
        %v1499 = vrot.slane %v348, 3
        %v1500 = vsel %vm1475, %v1497, %v1499
        %v1501 = vrot.slane %v349, 3
        %v1502 = vsel %vm1475, %v1499, %v1501
        %v1503 = vrot.slane %v350, 3
        %v1504 = vsel %vm1475, %v1501, %v1503
        %v1505 = vrot.slane %v351, 3
        %v1506 = vsel %vm1475, %v1503, %v1505
        %v1507 = vrot.slane %v352, 3
        %v1508 = vsel %vm1475, %v1505, %v1507
        %v1509 = vrot.slane %v353, 3
        %v1510 = vsel %vm1475, %v1507, %v1509
        %v1511 = vrot.slane %v354, 3
        %v1512 = vsel %vm1475, %v1509, %v1511
        %v1513 = vrot.slane %v355, 3
        %v1514 = vsel %vm1475, %v1511, %v1513
        %v1515 = vrot.slane %v356, 3
        %v1516 = vsel %vm1475, %v1513, %v1515
        %v1517 = vrot.slane %v357, 3
        %v1518 = vsel %vm1475, %v1515, %v1517
        %v1519 = vrot.slane %v358, 3
        %v1520 = vsel %vm1475, %v1517, %v1519
        %v1521 = vrot.slane %v359, 3
        %v1522 = vsel %vm1475, %v1519, %v1521
        %v1523 = vrot.slane %v360, 3
        %v1524 = vsel %vm1475, %v1521, %v1523
        %v1525 = vrot.slane %v361, 3
        %v1526 = vsel %vm1475, %v1523, %v1525
        %v1527 = vrot.slane %v362, 3
        %v1528 = vsel %vm1475, %v1525, %v1527
        %v1529 = vrot.slane %v363, 3
        %v1530 = vsel %vm1475, %v1527, %v1529
        %v1531 = vrot.slane %v364, 3
        %v1532 = vsel %vm1475, %v1529, %v1531
        %v1533 = vrot.slane %v365, 3
        %v1534 = vsel %vm1475, %v1531, %v1533
        %v1535 = vrot.slane %v366, 3
        %v1536 = vsel %vm1475, %v1533, %v1535
        %v1537 = vrot.slane %v367, 3
        %v1538 = vsel %vm1475, %v1535, %v1537
        %v1539 = vrot.slane %v368, 3
        %v1540 = vsel %vm1475, %v1537, %v1539
        %v1541 = vsel %vm486, %v1478, 0
        %v1543 = vsel %vm486, %v1480, 0
        %v1545 = vsel %vm486, %v1482, 0
        %v1547 = vsel %vm486, %v1484, 0
        %v1549 = vsel %vm486, %v1486, 0
        %v1551 = vsel %vm486, %v1488, 0
        %v1553 = vsel %vm486, %v1490, 0
        %v1555 = vsel %vm486, %v1492, 0
        %v1557 = vsel %vm486, %v1494, 0
        %v1559 = vsel %vm486, %v1496, 0
        %v1561 = vsel %vm486, %v1498, 0
        %v1563 = vsel %vm486, %v1500, 0
        %v1565 = vsel %vm486, %v1502, 0
        %v1567 = vsel %vm486, %v1504, 0
        %v1569 = vsel %vm486, %v1506, 0
        %v1571 = vsel %vm486, %v1508, 0
        %v1573 = vsel %vm486, %v1510, 0
        %v1575 = vsel %vm486, %v1512, 0
        %v1577 = vsel %vm486, %v1514, 0
        %v1579 = vsel %vm486, %v1516, 0
        %v1581 = vsel %vm486, %v1518, 0
        %v1583 = vsel %vm486, %v1520, 0
        %v1585 = vsel %vm486, %v1522, 0
        %v1587 = vsel %vm486, %v1524, 0
        %v1589 = vsel %vm486, %v1526, 0
        %v1591 = vsel %vm486, %v1528, 0
        %v1593 = vsel %vm486, %v1530, 0
        %v1595 = vsel %vm486, %v1532, 0
        %v1597 = vsel %vm486, %v1534, 0
        %v1599 = vsel %vm486, %v1536, 0
        %v1601 = vsel %vm486, %v1538, 0
        %v1603 = vsel %vm486, %v1540, 0
        %v1606 = vsel %vm551, %v1471, 0
        %1608 = vmatprep.subr.mxu0 0.0
        %1609 = vmatpush1.msra.mxu0 %v1606
        %1610 = vmatprep.subr.mxu0 0.0
        %1611 = vmatpush1.msra.mxu0 0.0
        %1612 = vmatprep.subr.mxu0 0.0
        %1613 = vmatpush1.msra.mxu0 0.0
        %1614 = vmatprep.subr.mxu0 0.0
        %1615 = vmatpush1.msra.mxu0 0.0
        %1616 = vmatprep.subr.mxu0 0.0
        %1617 = vmatpush1.msra.mxu0 0.0
        %1618 = vmatprep.subr.mxu0 0.0
        %1619 = vmatpush1.msra.mxu0 0.0
        %1620 = vmatprep.subr.mxu0 0.0
        %1621 = vmatpush1.msra.mxu0 0.0
        %1622 = vmatprep.subr.mxu0 0.0
        %1623 = vmatpush1.msra.mxu0 0.0
        %1624 = vmatprep.subr.mxu0 0.0
        %1625 = vmatpush1.msra.mxu0 0.0
        %1626 = vmatprep.subr.mxu0 0.0
        %1627 = vmatpush1.msra.mxu0 0.0
        %1628 = vmatprep.subr.mxu0 0.0
        %1629 = vmatpush1.msra.mxu0 0.0
        %1630 = vmatprep.subr.mxu0 0.0
        %1631 = vmatpush1.msra.mxu0 0.0
        %1632 = vmatprep.subr.mxu0 0.0
        %1633 = vmatpush1.msra.mxu0 0.0
        %1634 = vmatprep.subr.mxu0 0.0
        %1635 = vmatpush1.msra.mxu0 0.0
        %1636 = vmatprep.subr.mxu0 0.0
        %1637 = vmatpush1.msra.mxu0 0.0
        %1638 = vmatprep.subr.mxu0 0.0
        %1639 = vmatpush1.msra.mxu0 0.0
        %1640 = vmatprep.subr.mxu0 0.0
        %1641 = vmatpush1.msra.mxu0 0.0
        %1642 = vmatprep.subr.mxu0 0.0
        %1643 = vmatpush1.msra.mxu0 0.0
        %1644 = vmatprep.subr.mxu0 0.0
        %1645 = vmatpush1.msra.mxu0 0.0
        %1646 = vmatprep.subr.mxu0 0.0
        %1647 = vmatpush1.msra.mxu0 0.0
        %1648 = vmatprep.subr.mxu0 0.0
        %1649 = vmatpush1.msra.mxu0 0.0
        %1650 = vmatprep.subr.mxu0 0.0
        %1651 = vmatpush1.msra.mxu0 0.0
        %1652 = vmatprep.subr.mxu0 0.0
        %1653 = vmatpush1.msra.mxu0 0.0
        %1654 = vmatprep.subr.mxu0 0.0
        %1655 = vmatpush1.msra.mxu0 0.0
        %1656 = vmatprep.subr.mxu0 0.0
        %1657 = vmatpush1.msra.mxu0 0.0
        %1658 = vmatprep.subr.mxu0 0.0
        %1659 = vmatpush1.msra.mxu0 0.0
        %1660 = vmatprep.subr.mxu0 0.0
        %1661 = vmatpush1.msra.mxu0 0.0
        %1662 = vmatprep.subr.mxu0 0.0
        %1663 = vmatpush1.msra.mxu0 0.0
        %1664 = vmatprep.subr.mxu0 0.0
        %1665 = vmatpush1.msra.mxu0 0.0
        %1666 = vmatprep.subr.mxu0 0.0
        %1667 = vmatpush1.msra.mxu0 0.0
        %1668 = vmatprep.subr.mxu0 0.0
        %1669 = vmatpush1.msra.mxu0 0.0
        %1670 = vmatprep.subr.mxu0 0.0
        %1671 = vmatpush1.msra.mxu0 0.0
        %1672 = vmatprep.mubr.f32.mxu0 0.0
        %1673 = vmatmul.mubr.f32.gmra.mrb[0].mxu0 %v1541
        %v1674 = vpop.f32.mrb[0].mxu0
        %v1675 = vadd.f32 0.0, %v1674
        %v1676 = vpop.f32.mrb[0].mxu0
        %1677 = vmatprep.mubr.f32.mxu0 0.0
        %1678 = vmatmul.mubr.f32.gmra.mrb[0].mxu0 %v1543
        %v1679 = vpop.f32.mrb[0].mxu0
        %v1680 = vadd.f32 0.0, %v1679
        %v1681 = vpop.f32.mrb[0].mxu0
        %1682 = vmatprep.mubr.f32.mxu0 0.0
        %1683 = vmatmul.mubr.f32.gmra.mrb[0].mxu0 %v1545
        %v1684 = vpop.f32.mrb[0].mxu0
        %v1685 = vadd.f32 0.0, %v1684
        %v1686 = vpop.f32.mrb[0].mxu0
        %1687 = vmatprep.mubr.f32.mxu0 0.0
        %1688 = vmatmul.mubr.f32.gmra.mrb[0].mxu0 %v1547
        %v1689 = vpop.f32.mrb[0].mxu0
        %v1690 = vadd.f32 0.0, %v1689
        %v1691 = vpop.f32.mrb[0].mxu0
        %1692 = vmatprep.mubr.f32.mxu0 0.0
        %1693 = vmatmul.mubr.f32.gmra.mrb[0].mxu0 %v1549
        %v1694 = vpop.f32.mrb[0].mxu0
        %v1695 = vadd.f32 0.0, %v1694
        %v1696 = vpop.f32.mrb[0].mxu0
        %1697 = vmatprep.mubr.f32.mxu0 0.0
        %1698 = vmatmul.mubr.f32.gmra.mrb[0].mxu0 %v1551
        %v1699 = vpop.f32.mrb[0].mxu0
        %v1700 = vadd.f32 0.0, %v1699
        %v1701 = vpop.f32.mrb[0].mxu0
        %1702 = vmatprep.mubr.f32.mxu0 0.0
        %1703 = vmatmul.mubr.f32.gmra.mrb[0].mxu0 %v1553
        %v1704 = vpop.f32.mrb[0].mxu0
        %v1705 = vadd.f32 0.0, %v1704
        %v1706 = vpop.f32.mrb[0].mxu0
        %1707 = vmatprep.mubr.f32.mxu0 0.0
        %1708 = vmatmul.mubr.f32.gmra.mrb[0].mxu0 %v1555
        %v1709 = vpop.f32.mrb[0].mxu0
        %v1710 = vadd.f32 0.0, %v1709
        %v1711 = vpop.f32.mrb[0].mxu0
        %1712 = vmatprep.mubr.f32.mxu0 0.0
        %1713 = vmatmul.mubr.f32.gmra.mrb[0].mxu0 %v1557
        %v1714 = vpop.f32.mrb[0].mxu0
        %v1715 = vadd.f32 0.0, %v1714
        %v1716 = vpop.f32.mrb[0].mxu0
        %1717 = vmatprep.mubr.f32.mxu0 0.0
        %1718 = vmatmul.mubr.f32.gmra.mrb[0].mxu0 %v1559
        %v1719 = vpop.f32.mrb[0].mxu0
        %v1720 = vadd.f32 0.0, %v1719
        %v1721 = vpop.f32.mrb[0].mxu0
        %1722 = vmatprep.mubr.f32.mxu0 0.0
        %1723 = vmatmul.mubr.f32.gmra.mrb[0].mxu0 %v1561
        %v1724 = vpop.f32.mrb[0].mxu0
        %v1725 = vadd.f32 0.0, %v1724
        %v1726 = vpop.f32.mrb[0].mxu0
        %1727 = vmatprep.mubr.f32.mxu0 0.0
        %1728 = vmatmul.mubr.f32.gmra.mrb[0].mxu0 %v1563
        %v1729 = vpop.f32.mrb[0].mxu0
        %v1730 = vadd.f32 0.0, %v1729
        %v1731 = vpop.f32.mrb[0].mxu0
        %1732 = vmatprep.mubr.f32.mxu0 0.0
        %1733 = vmatmul.mubr.f32.gmra.mrb[0].mxu0 %v1565
        %v1734 = vpop.f32.mrb[0].mxu0
        %v1735 = vadd.f32 0.0, %v1734
        %v1736 = vpop.f32.mrb[0].mxu0
        %1737 = vmatprep.mubr.f32.mxu0 0.0
        %1738 = vmatmul.mubr.f32.gmra.mrb[0].mxu0 %v1567
        %v1739 = vpop.f32.mrb[0].mxu0
        %v1740 = vadd.f32 0.0, %v1739
        %v1741 = vpop.f32.mrb[0].mxu0
        %1742 = vmatprep.mubr.f32.mxu0 0.0
        %1743 = vmatmul.mubr.f32.gmra.mrb[0].mxu0 %v1569
        %v1744 = vpop.f32.mrb[0].mxu0
        %v1745 = vadd.f32 0.0, %v1744
        %v1746 = vpop.f32.mrb[0].mxu0
        %1747 = vmatprep.mubr.f32.mxu0 0.0
        %1748 = vmatmul.mubr.f32.gmra.mrb[0].mxu0 %v1571
        %v1749 = vpop.f32.mrb[0].mxu0
        %v1750 = vadd.f32 0.0, %v1749
        %v1751 = vpop.f32.mrb[0].mxu0
        %1752 = vmatprep.mubr.f32.mxu0 0.0
        %1753 = vmatmul.mubr.f32.gmra.mrb[0].mxu0 %v1573
        %v1754 = vpop.f32.mrb[0].mxu0
        %v1755 = vadd.f32 0.0, %v1754
        %v1756 = vpop.f32.mrb[0].mxu0
        %1757 = vmatprep.mubr.f32.mxu0 0.0
        %1758 = vmatmul.mubr.f32.gmra.mrb[0].mxu0 %v1575
        %v1759 = vpop.f32.mrb[0].mxu0
        %v1760 = vadd.f32 0.0, %v1759
        %v1761 = vpop.f32.mrb[0].mxu0
        %1762 = vmatprep.mubr.f32.mxu0 0.0
        %1763 = vmatmul.mubr.f32.gmra.mrb[0].mxu0 %v1577
        %v1764 = vpop.f32.mrb[0].mxu0
        %v1765 = vadd.f32 0.0, %v1764
        %v1766 = vpop.f32.mrb[0].mxu0
        %1767 = vmatprep.mubr.f32.mxu0 0.0
        %1768 = vmatmul.mubr.f32.gmra.mrb[0].mxu0 %v1579
        %v1769 = vpop.f32.mrb[0].mxu0
        %v1770 = vadd.f32 0.0, %v1769
        %v1771 = vpop.f32.mrb[0].mxu0
        %1772 = vmatprep.mubr.f32.mxu0 0.0
        %1773 = vmatmul.mubr.f32.gmra.mrb[0].mxu0 %v1581
        %v1774 = vpop.f32.mrb[0].mxu0
        %v1775 = vadd.f32 0.0, %v1774
        %v1776 = vpop.f32.mrb[0].mxu0
        %1777 = vmatprep.mubr.f32.mxu0 0.0
        %1778 = vmatmul.mubr.f32.gmra.mrb[0].mxu0 %v1583
        %v1779 = vpop.f32.mrb[0].mxu0
        %v1780 = vadd.f32 0.0, %v1779
        %v1781 = vpop.f32.mrb[0].mxu0
        %1782 = vmatprep.mubr.f32.mxu0 0.0
        %1783 = vmatmul.mubr.f32.gmra.mrb[0].mxu0 %v1585
        %v1784 = vpop.f32.mrb[0].mxu0
        %v1785 = vadd.f32 0.0, %v1784
        %v1786 = vpop.f32.mrb[0].mxu0
        %1787 = vmatprep.mubr.f32.mxu0 0.0
        %1788 = vmatmul.mubr.f32.gmra.mrb[0].mxu0 %v1587
        %v1789 = vpop.f32.mrb[0].mxu0
        %v1790 = vadd.f32 0.0, %v1789
        %v1791 = vpop.f32.mrb[0].mxu0
        %1792 = vmatprep.mubr.f32.mxu0 0.0
        %1793 = vmatmul.mubr.f32.gmra.mrb[0].mxu0 %v1589
        %v1794 = vpop.f32.mrb[0].mxu0
        %v1795 = vadd.f32 0.0, %v1794
        %v1796 = vpop.f32.mrb[0].mxu0
        %1797 = vmatprep.mubr.f32.mxu0 0.0
        %1798 = vmatmul.mubr.f32.gmra.mrb[0].mxu0 %v1591
        %v1799 = vpop.f32.mrb[0].mxu0
        %v1800 = vadd.f32 0.0, %v1799
        %v1801 = vpop.f32.mrb[0].mxu0
        %1802 = vmatprep.mubr.f32.mxu0 0.0
        %1803 = vmatmul.mubr.f32.gmra.mrb[0].mxu0 %v1593
        %v1804 = vpop.f32.mrb[0].mxu0
        %v1805 = vadd.f32 0.0, %v1804
        %v1806 = vpop.f32.mrb[0].mxu0
        %1807 = vmatprep.mubr.f32.mxu0 0.0
        %1808 = vmatmul.mubr.f32.gmra.mrb[0].mxu0 %v1595
        %v1809 = vpop.f32.mrb[0].mxu0
        %v1810 = vadd.f32 0.0, %v1809
        %v1811 = vpop.f32.mrb[0].mxu0
        %1812 = vmatprep.mubr.f32.mxu0 0.0
        %1813 = vmatmul.mubr.f32.gmra.mrb[0].mxu0 %v1597
        %v1814 = vpop.f32.mrb[0].mxu0
        %v1815 = vadd.f32 0.0, %v1814
        %v1816 = vpop.f32.mrb[0].mxu0
        %1817 = vmatprep.mubr.f32.mxu0 0.0
        %1818 = vmatmul.mubr.f32.gmra.mrb[0].mxu0 %v1599
        %v1819 = vpop.f32.mrb[0].mxu0
        %v1820 = vadd.f32 0.0, %v1819
        %v1821 = vpop.f32.mrb[0].mxu0
        %1822 = vmatprep.mubr.f32.mxu0 0.0
        %1823 = vmatmul.mubr.f32.gmra.mrb[0].mxu0 %v1601
        %v1824 = vpop.f32.mrb[0].mxu0
        %v1825 = vadd.f32 0.0, %v1824
        %v1826 = vpop.f32.mrb[0].mxu0
        %1827 = vmatprep.mubr.f32.mxu0 0.0
        %1828 = vmatmul.mubr.f32.gmra.mrb[0].mxu0 %v1603
        %v1829 = vpop.f32.mrb[0].mxu0
        %v1830 = vadd.f32 0.0, %v1829
        %v1831 = vpop.f32.mrb[0].mxu0
        %1832 = vdwg.mxu0
        %v1833 = vadd.f32 %v1438, %v1675
        %v1834 = vadd.f32 %v1439, %v1680
        %v1835 = vadd.f32 %v1440, %v1685
        %v1836 = vadd.f32 %v1441, %v1690
        %v1837 = vadd.f32 %v1442, %v1695
        %v1838 = vadd.f32 %v1443, %v1700
        %v1839 = vadd.f32 %v1444, %v1705
        %v1840 = vadd.f32 %v1445, %v1710
        %v1841 = vadd.f32 %v1446, %v1715
        %v1842 = vadd.f32 %v1447, %v1720
        %v1843 = vadd.f32 %v1448, %v1725
        %v1844 = vadd.f32 %v1449, %v1730
        %v1845 = vadd.f32 %v1450, %v1735
        %v1846 = vadd.f32 %v1451, %v1740
        %v1847 = vadd.f32 %v1452, %v1745
        %v1848 = vadd.f32 %v1453, %v1750
        %v1849 = vadd.f32 %v1454, %v1755
        %v1850 = vadd.f32 %v1455, %v1760
        %v1851 = vadd.f32 %v1456, %v1765
        %v1852 = vadd.f32 %v1457, %v1770
        %v1853 = vadd.f32 %v1458, %v1775
        %v1854 = vadd.f32 %v1459, %v1780
        %v1855 = vadd.f32 %v1460, %v1785
        %v1856 = vadd.f32 %v1461, %v1790
        %v1857 = vadd.f32 %v1462, %v1795
        %v1858 = vadd.f32 %v1463, %v1800
        %v1859 = vadd.f32 %v1464, %v1805
        %v1860 = vadd.f32 %v1465, %v1810
        %v1861 = vadd.f32 %v1466, %v1815
        %v1862 = vadd.f32 %v1467, %v1820
        %v1863 = vadd.f32 %v1468, %v1825
        %v1864 = vadd.f32 %v1469, %v1830
        %s1865 = scalar_lea.vmem [#allocation7], 16
        %v1866 = vld [vmem:[%s1865] sm:$0xf]
        %v1870 = vrot.slane %v339, 4
        %v1871 = vrot.slane %v340, 4
        %v1872 = vsel %vm551, %v1870, %v1871
        %v1873 = vrot.slane %v341, 4
        %v1874 = vsel %vm551, %v1871, %v1873
        %v1875 = vrot.slane %v342, 4
        %v1876 = vsel %vm551, %v1873, %v1875
        %v1877 = vrot.slane %v343, 4
        %v1878 = vsel %vm551, %v1875, %v1877
        %v1879 = vrot.slane %v344, 4
        %v1880 = vsel %vm551, %v1877, %v1879
        %v1881 = vrot.slane %v345, 4
        %v1882 = vsel %vm551, %v1879, %v1881
        %v1883 = vrot.slane %v346, 4
        %v1884 = vsel %vm551, %v1881, %v1883
        %v1885 = vrot.slane %v347, 4
        %v1886 = vsel %vm551, %v1883, %v1885
        %v1887 = vrot.slane %v348, 4
        %v1888 = vsel %vm551, %v1885, %v1887
        %v1889 = vrot.slane %v349, 4
        %v1890 = vsel %vm551, %v1887, %v1889
        %v1891 = vrot.slane %v350, 4
        %v1892 = vsel %vm551, %v1889, %v1891
        %v1893 = vrot.slane %v351, 4
        %v1894 = vsel %vm551, %v1891, %v1893
        %v1895 = vrot.slane %v352, 4
        %v1896 = vsel %vm551, %v1893, %v1895
        %v1897 = vrot.slane %v353, 4
        %v1898 = vsel %vm551, %v1895, %v1897
        %v1899 = vrot.slane %v354, 4
        %v1900 = vsel %vm551, %v1897, %v1899
        %v1901 = vrot.slane %v355, 4
        %v1902 = vsel %vm551, %v1899, %v1901
        %v1903 = vrot.slane %v356, 4
        %v1904 = vsel %vm551, %v1901, %v1903
        %v1905 = vrot.slane %v357, 4
        %v1906 = vsel %vm551, %v1903, %v1905
        %v1907 = vrot.slane %v358, 4
        %v1908 = vsel %vm551, %v1905, %v1907
        %v1909 = vrot.slane %v359, 4
        %v1910 = vsel %vm551, %v1907, %v1909
        %v1911 = vrot.slane %v360, 4
        %v1912 = vsel %vm551, %v1909, %v1911
        %v1913 = vrot.slane %v361, 4
        %v1914 = vsel %vm551, %v1911, %v1913
        %v1915 = vrot.slane %v362, 4
        %v1916 = vsel %vm551, %v1913, %v1915
        %v1917 = vrot.slane %v363, 4
        %v1918 = vsel %vm551, %v1915, %v1917
        %v1919 = vrot.slane %v364, 4
        %v1920 = vsel %vm551, %v1917, %v1919
        %v1921 = vrot.slane %v365, 4
        %v1922 = vsel %vm551, %v1919, %v1921
        %v1923 = vrot.slane %v366, 4
        %v1924 = vsel %vm551, %v1921, %v1923
        %v1925 = vrot.slane %v367, 4
        %v1926 = vsel %vm551, %v1923, %v1925
        %v1927 = vrot.slane %v368, 4
        %v1928 = vsel %vm551, %v1925, %v1927
        %v1929 = vrot.slane %v369, 4
        %v1930 = vsel %vm551, %v1927, %v1929
        %v1931 = vrot.slane %v370, 4
        %v1932 = vsel %vm551, %v1929, %v1931
        %v1933 = vrot.slane %v371, 4
        %v1934 = vsel %vm551, %v1931, %v1933
        %v1935 = vsel %vm486, %v1872, 0
        %v1937 = vsel %vm486, %v1874, 0
        %v1939 = vsel %vm486, %v1876, 0
        %v1941 = vsel %vm486, %v1878, 0
        %v1943 = vsel %vm486, %v1880, 0
        %v1945 = vsel %vm486, %v1882, 0
        %v1947 = vsel %vm486, %v1884, 0
        %v1949 = vsel %vm486, %v1886, 0
        %v1951 = vsel %vm486, %v1888, 0
        %v1953 = vsel %vm486, %v1890, 0
        %v1955 = vsel %vm486, %v1892, 0
        %v1957 = vsel %vm486, %v1894, 0
        %v1959 = vsel %vm486, %v1896, 0
        %v1961 = vsel %vm486, %v1898, 0
        %v1963 = vsel %vm486, %v1900, 0
        %v1965 = vsel %vm486, %v1902, 0
        %v1967 = vsel %vm486, %v1904, 0
        %v1969 = vsel %vm486, %v1906, 0
        %v1971 = vsel %vm486, %v1908, 0
        %v1973 = vsel %vm486, %v1910, 0
        %v1975 = vsel %vm486, %v1912, 0
        %v1977 = vsel %vm486, %v1914, 0
        %v1979 = vsel %vm486, %v1916, 0
        %v1981 = vsel %vm486, %v1918, 0
        %v1983 = vsel %vm486, %v1920, 0
        %v1985 = vsel %vm486, %v1922, 0
        %v1987 = vsel %vm486, %v1924, 0
        %v1989 = vsel %vm486, %v1926, 0
        %v1991 = vsel %vm486, %v1928, 0
        %v1993 = vsel %vm486, %v1930, 0
        %v1995 = vsel %vm486, %v1932, 0
        %v1997 = vsel %vm486, %v1934, 0
        %v2000 = vsel %vm551, %v1866, 0
        %2002 = vmatprep.subr.mxu0 0.0
        %2003 = vmatpush1.msra.mxu0 %v2000
        %2004 = vmatprep.subr.mxu0 0.0
        %2005 = vmatpush1.msra.mxu0 0.0
        %2006 = vmatprep.subr.mxu0 0.0
        %2007 = vmatpush1.msra.mxu0 0.0
        %2008 = vmatprep.subr.mxu0 0.0
        %2009 = vmatpush1.msra.mxu0 0.0
        %2010 = vmatprep.subr.mxu0 0.0
        %2011 = vmatpush1.msra.mxu0 0.0
        %2012 = vmatprep.subr.mxu0 0.0
        %2013 = vmatpush1.msra.mxu0 0.0
        %2014 = vmatprep.subr.mxu0 0.0
        %2015 = vmatpush1.msra.mxu0 0.0
        %2016 = vmatprep.subr.mxu0 0.0
        %2017 = vmatpush1.msra.mxu0 0.0
        %2018 = vmatprep.subr.mxu0 0.0
        %2019 = vmatpush1.msra.mxu0 0.0
        %2020 = vmatprep.subr.mxu0 0.0
        %2021 = vmatpush1.msra.mxu0 0.0
        %2022 = vmatprep.subr.mxu0 0.0
        %2023 = vmatpush1.msra.mxu0 0.0
        %2024 = vmatprep.subr.mxu0 0.0
        %2025 = vmatpush1.msra.mxu0 0.0
        %2026 = vmatprep.subr.mxu0 0.0
        %2027 = vmatpush1.msra.mxu0 0.0
        %2028 = vmatprep.subr.mxu0 0.0
        %2029 = vmatpush1.msra.mxu0 0.0
        %2030 = vmatprep.subr.mxu0 0.0
        %2031 = vmatpush1.msra.mxu0 0.0
        %2032 = vmatprep.subr.mxu0 0.0
        %2033 = vmatpush1.msra.mxu0 0.0
        %2034 = vmatprep.subr.mxu0 0.0
        %2035 = vmatpush1.msra.mxu0 0.0
        %2036 = vmatprep.subr.mxu0 0.0
        %2037 = vmatpush1.msra.mxu0 0.0
        %2038 = vmatprep.subr.mxu0 0.0
        %2039 = vmatpush1.msra.mxu0 0.0
        %2040 = vmatprep.subr.mxu0 0.0
        %2041 = vmatpush1.msra.mxu0 0.0
        %2042 = vmatprep.subr.mxu0 0.0
        %2043 = vmatpush1.msra.mxu0 0.0
        %2044 = vmatprep.subr.mxu0 0.0
        %2045 = vmatpush1.msra.mxu0 0.0
        %2046 = vmatprep.subr.mxu0 0.0
        %2047 = vmatpush1.msra.mxu0 0.0
        %2048 = vmatprep.subr.mxu0 0.0
        %2049 = vmatpush1.msra.mxu0 0.0
        %2050 = vmatprep.subr.mxu0 0.0
        %2051 = vmatpush1.msra.mxu0 0.0
        %2052 = vmatprep.subr.mxu0 0.0
        %2053 = vmatpush1.msra.mxu0 0.0
        %2054 = vmatprep.subr.mxu0 0.0
        %2055 = vmatpush1.msra.mxu0 0.0
        %2056 = vmatprep.subr.mxu0 0.0
        %2057 = vmatpush1.msra.mxu0 0.0
        %2058 = vmatprep.subr.mxu0 0.0
        %2059 = vmatpush1.msra.mxu0 0.0
        %2060 = vmatprep.subr.mxu0 0.0
        %2061 = vmatpush1.msra.mxu0 0.0
        %2062 = vmatprep.subr.mxu0 0.0
        %2063 = vmatpush1.msra.mxu0 0.0
        %2064 = vmatprep.subr.mxu0 0.0
        %2065 = vmatpush1.msra.mxu0 0.0
        %2066 = vmatprep.mubr.f32.mxu0 0.0
        %2067 = vmatmul.mubr.f32.gmra.mrb[0].mxu0 %v1935
        %v2068 = vpop.f32.mrb[0].mxu0
        %v2069 = vadd.f32 0.0, %v2068
        %v2070 = vpop.f32.mrb[0].mxu0
        %2071 = vmatprep.mubr.f32.mxu0 0.0
        %2072 = vmatmul.mubr.f32.gmra.mrb[0].mxu0 %v1937
        %v2073 = vpop.f32.mrb[0].mxu0
        %v2074 = vadd.f32 0.0, %v2073
        %v2075 = vpop.f32.mrb[0].mxu0
        %2076 = vmatprep.mubr.f32.mxu0 0.0
        %2077 = vmatmul.mubr.f32.gmra.mrb[0].mxu0 %v1939
        %v2078 = vpop.f32.mrb[0].mxu0
        %v2079 = vadd.f32 0.0, %v2078
        %v2080 = vpop.f32.mrb[0].mxu0
        %2081 = vmatprep.mubr.f32.mxu0 0.0
        %2082 = vmatmul.mubr.f32.gmra.mrb[0].mxu0 %v1941
        %v2083 = vpop.f32.mrb[0].mxu0
        %v2084 = vadd.f32 0.0, %v2083
        %v2085 = vpop.f32.mrb[0].mxu0
        %2086 = vmatprep.mubr.f32.mxu0 0.0
        %2087 = vmatmul.mubr.f32.gmra.mrb[0].mxu0 %v1943
        %v2088 = vpop.f32.mrb[0].mxu0
        %v2089 = vadd.f32 0.0, %v2088
        %v2090 = vpop.f32.mrb[0].mxu0
        %2091 = vmatprep.mubr.f32.mxu0 0.0
        %2092 = vmatmul.mubr.f32.gmra.mrb[0].mxu0 %v1945
        %v2093 = vpop.f32.mrb[0].mxu0
        %v2094 = vadd.f32 0.0, %v2093
        %v2095 = vpop.f32.mrb[0].mxu0
        %2096 = vmatprep.mubr.f32.mxu0 0.0
        %2097 = vmatmul.mubr.f32.gmra.mrb[0].mxu0 %v1947
        %v2098 = vpop.f32.mrb[0].mxu0
        %v2099 = vadd.f32 0.0, %v2098
        %v2100 = vpop.f32.mrb[0].mxu0
        %2101 = vmatprep.mubr.f32.mxu0 0.0
        %2102 = vmatmul.mubr.f32.gmra.mrb[0].mxu0 %v1949
        %v2103 = vpop.f32.mrb[0].mxu0
        %v2104 = vadd.f32 0.0, %v2103
        %v2105 = vpop.f32.mrb[0].mxu0
        %2106 = vmatprep.mubr.f32.mxu0 0.0
        %2107 = vmatmul.mubr.f32.gmra.mrb[0].mxu0 %v1951
        %v2108 = vpop.f32.mrb[0].mxu0
        %v2109 = vadd.f32 0.0, %v2108
        %v2110 = vpop.f32.mrb[0].mxu0
        %2111 = vmatprep.mubr.f32.mxu0 0.0
        %2112 = vmatmul.mubr.f32.gmra.mrb[0].mxu0 %v1953
        %v2113 = vpop.f32.mrb[0].mxu0
        %v2114 = vadd.f32 0.0, %v2113
        %v2115 = vpop.f32.mrb[0].mxu0
        %2116 = vmatprep.mubr.f32.mxu0 0.0
        %2117 = vmatmul.mubr.f32.gmra.mrb[0].mxu0 %v1955
        %v2118 = vpop.f32.mrb[0].mxu0
        %v2119 = vadd.f32 0.0, %v2118
        %v2120 = vpop.f32.mrb[0].mxu0
        %2121 = vmatprep.mubr.f32.mxu0 0.0
        %2122 = vmatmul.mubr.f32.gmra.mrb[0].mxu0 %v1957
        %v2123 = vpop.f32.mrb[0].mxu0
        %v2124 = vadd.f32 0.0, %v2123
        %v2125 = vpop.f32.mrb[0].mxu0
        %2126 = vmatprep.mubr.f32.mxu0 0.0
        %2127 = vmatmul.mubr.f32.gmra.mrb[0].mxu0 %v1959
        %v2128 = vpop.f32.mrb[0].mxu0
        %v2129 = vadd.f32 0.0, %v2128
        %v2130 = vpop.f32.mrb[0].mxu0
        %2131 = vmatprep.mubr.f32.mxu0 0.0
        %2132 = vmatmul.mubr.f32.gmra.mrb[0].mxu0 %v1961
        %v2133 = vpop.f32.mrb[0].mxu0
        %v2134 = vadd.f32 0.0, %v2133
        %v2135 = vpop.f32.mrb[0].mxu0
        %2136 = vmatprep.mubr.f32.mxu0 0.0
        %2137 = vmatmul.mubr.f32.gmra.mrb[0].mxu0 %v1963
        %v2138 = vpop.f32.mrb[0].mxu0
        %v2139 = vadd.f32 0.0, %v2138
        %v2140 = vpop.f32.mrb[0].mxu0
        %2141 = vmatprep.mubr.f32.mxu0 0.0
        %2142 = vmatmul.mubr.f32.gmra.mrb[0].mxu0 %v1965
        %v2143 = vpop.f32.mrb[0].mxu0
        %v2144 = vadd.f32 0.0, %v2143
        %v2145 = vpop.f32.mrb[0].mxu0
        %2146 = vmatprep.mubr.f32.mxu0 0.0
        %2147 = vmatmul.mubr.f32.gmra.mrb[0].mxu0 %v1967
        %v2148 = vpop.f32.mrb[0].mxu0
        %v2149 = vadd.f32 0.0, %v2148
        %v2150 = vpop.f32.mrb[0].mxu0
        %2151 = vmatprep.mubr.f32.mxu0 0.0
        %2152 = vmatmul.mubr.f32.gmra.mrb[0].mxu0 %v1969
        %v2153 = vpop.f32.mrb[0].mxu0
        %v2154 = vadd.f32 0.0, %v2153
        %v2155 = vpop.f32.mrb[0].mxu0
        %2156 = vmatprep.mubr.f32.mxu0 0.0
        %2157 = vmatmul.mubr.f32.gmra.mrb[0].mxu0 %v1971
        %v2158 = vpop.f32.mrb[0].mxu0
        %v2159 = vadd.f32 0.0, %v2158
        %v2160 = vpop.f32.mrb[0].mxu0
        %2161 = vmatprep.mubr.f32.mxu0 0.0
        %2162 = vmatmul.mubr.f32.gmra.mrb[0].mxu0 %v1973
        %v2163 = vpop.f32.mrb[0].mxu0
        %v2164 = vadd.f32 0.0, %v2163
        %v2165 = vpop.f32.mrb[0].mxu0
        %2166 = vmatprep.mubr.f32.mxu0 0.0
        %2167 = vmatmul.mubr.f32.gmra.mrb[0].mxu0 %v1975
        %v2168 = vpop.f32.mrb[0].mxu0
        %v2169 = vadd.f32 0.0, %v2168
        %v2170 = vpop.f32.mrb[0].mxu0
        %2171 = vmatprep.mubr.f32.mxu0 0.0
        %2172 = vmatmul.mubr.f32.gmra.mrb[0].mxu0 %v1977
        %v2173 = vpop.f32.mrb[0].mxu0
        %v2174 = vadd.f32 0.0, %v2173
        %v2175 = vpop.f32.mrb[0].mxu0
        %2176 = vmatprep.mubr.f32.mxu0 0.0
        %2177 = vmatmul.mubr.f32.gmra.mrb[0].mxu0 %v1979
        %v2178 = vpop.f32.mrb[0].mxu0
        %v2179 = vadd.f32 0.0, %v2178
        %v2180 = vpop.f32.mrb[0].mxu0
        %2181 = vmatprep.mubr.f32.mxu0 0.0
        %2182 = vmatmul.mubr.f32.gmra.mrb[0].mxu0 %v1981
        %v2183 = vpop.f32.mrb[0].mxu0
        %v2184 = vadd.f32 0.0, %v2183
        %v2185 = vpop.f32.mrb[0].mxu0
        %2186 = vmatprep.mubr.f32.mxu0 0.0
        %2187 = vmatmul.mubr.f32.gmra.mrb[0].mxu0 %v1983
        %v2188 = vpop.f32.mrb[0].mxu0
        %v2189 = vadd.f32 0.0, %v2188
        %v2190 = vpop.f32.mrb[0].mxu0
        %2191 = vmatprep.mubr.f32.mxu0 0.0
        %2192 = vmatmul.mubr.f32.gmra.mrb[0].mxu0 %v1985
        %v2193 = vpop.f32.mrb[0].mxu0
        %v2194 = vadd.f32 0.0, %v2193
        %v2195 = vpop.f32.mrb[0].mxu0
        %2196 = vmatprep.mubr.f32.mxu0 0.0
        %2197 = vmatmul.mubr.f32.gmra.mrb[0].mxu0 %v1987
        %v2198 = vpop.f32.mrb[0].mxu0
        %v2199 = vadd.f32 0.0, %v2198
        %v2200 = vpop.f32.mrb[0].mxu0
        %2201 = vmatprep.mubr.f32.mxu0 0.0
        %2202 = vmatmul.mubr.f32.gmra.mrb[0].mxu0 %v1989
        %v2203 = vpop.f32.mrb[0].mxu0
        %v2204 = vadd.f32 0.0, %v2203
        %v2205 = vpop.f32.mrb[0].mxu0
        %2206 = vmatprep.mubr.f32.mxu0 0.0
        %2207 = vmatmul.mubr.f32.gmra.mrb[0].mxu0 %v1991
        %v2208 = vpop.f32.mrb[0].mxu0
        %v2209 = vadd.f32 0.0, %v2208
        %v2210 = vpop.f32.mrb[0].mxu0
        %2211 = vmatprep.mubr.f32.mxu0 0.0
        %2212 = vmatmul.mubr.f32.gmra.mrb[0].mxu0 %v1993
        %v2213 = vpop.f32.mrb[0].mxu0
        %v2214 = vadd.f32 0.0, %v2213
        %v2215 = vpop.f32.mrb[0].mxu0
        %2216 = vmatprep.mubr.f32.mxu0 0.0
        %2217 = vmatmul.mubr.f32.gmra.mrb[0].mxu0 %v1995
        %v2218 = vpop.f32.mrb[0].mxu0
        %v2219 = vadd.f32 0.0, %v2218
        %v2220 = vpop.f32.mrb[0].mxu0
        %2221 = vmatprep.mubr.f32.mxu0 0.0
        %2222 = vmatmul.mubr.f32.gmra.mrb[0].mxu0 %v1997
        %v2223 = vpop.f32.mrb[0].mxu0
        %v2224 = vadd.f32 0.0, %v2223
        %v2225 = vpop.f32.mrb[0].mxu0
        %2226 = vdwg.mxu0
        %v2227 = vadd.f32 %v1833, %v2069
        %v2228 = vadd.f32 %v1834, %v2074
        %v2229 = vadd.f32 %v1835, %v2079
        %v2230 = vadd.f32 %v1836, %v2084
        %v2231 = vadd.f32 %v1837, %v2089
        %v2232 = vadd.f32 %v1838, %v2094
        %v2233 = vadd.f32 %v1839, %v2099
        %v2234 = vadd.f32 %v1840, %v2104
        %v2235 = vadd.f32 %v1841, %v2109
        %v2236 = vadd.f32 %v1842, %v2114
        %v2237 = vadd.f32 %v1843, %v2119
        %v2238 = vadd.f32 %v1844, %v2124
        %v2239 = vadd.f32 %v1845, %v2129
        %v2240 = vadd.f32 %v1846, %v2134
        %v2241 = vadd.f32 %v1847, %v2139
        %v2242 = vadd.f32 %v1848, %v2144
        %v2243 = vadd.f32 %v1849, %v2149
        %v2244 = vadd.f32 %v1850, %v2154
        %v2245 = vadd.f32 %v1851, %v2159
        %v2246 = vadd.f32 %v1852, %v2164
        %v2247 = vadd.f32 %v1853, %v2169
        %v2248 = vadd.f32 %v1854, %v2174
        %v2249 = vadd.f32 %v1855, %v2179
        %v2250 = vadd.f32 %v1856, %v2184
        %v2251 = vadd.f32 %v1857, %v2189
        %v2252 = vadd.f32 %v1858, %v2194
        %v2253 = vadd.f32 %v1859, %v2199
        %v2254 = vadd.f32 %v1860, %v2204
        %v2255 = vadd.f32 %v1861, %v2209
        %v2256 = vadd.f32 %v1862, %v2214
        %v2257 = vadd.f32 %v1863, %v2219
        %v2258 = vadd.f32 %v1864, %v2224
        %s2259 = scalar_lea.vmem [#allocation7], 20
        %v2260 = vld [vmem:[%s2259] sm:$0xf]
        %vm2264 = vcmask 1042432
        %v2265 = vrot.slane %v342, 5
        %v2266 = vrot.slane %v343, 5
        %v2267 = vsel %vm2264, %v2265, %v2266
        %v2268 = vrot.slane %v344, 5
        %v2269 = vsel %vm2264, %v2266, %v2268
        %v2270 = vrot.slane %v345, 5
        %v2271 = vsel %vm2264, %v2268, %v2270
        %v2272 = vrot.slane %v346, 5
        %v2273 = vsel %vm2264, %v2270, %v2272
        %v2274 = vrot.slane %v347, 5
        %v2275 = vsel %vm2264, %v2272, %v2274
        %v2276 = vrot.slane %v348, 5
        %v2277 = vsel %vm2264, %v2274, %v2276
        %v2278 = vrot.slane %v349, 5
        %v2279 = vsel %vm2264, %v2276, %v2278
        %v2280 = vrot.slane %v350, 5
        %v2281 = vsel %vm2264, %v2278, %v2280
        %v2282 = vrot.slane %v351, 5
        %v2283 = vsel %vm2264, %v2280, %v2282
        %v2284 = vrot.slane %v352, 5
        %v2285 = vsel %vm2264, %v2282, %v2284
        %v2286 = vrot.slane %v353, 5
        %v2287 = vsel %vm2264, %v2284, %v2286
        %v2288 = vrot.slane %v354, 5
        %v2289 = vsel %vm2264, %v2286, %v2288
        %v2290 = vrot.slane %v355, 5
        %v2291 = vsel %vm2264, %v2288, %v2290
        %v2292 = vrot.slane %v356, 5
        %v2293 = vsel %vm2264, %v2290, %v2292
        %v2294 = vrot.slane %v357, 5
        %v2295 = vsel %vm2264, %v2292, %v2294
        %v2296 = vrot.slane %v358, 5
        %v2297 = vsel %vm2264, %v2294, %v2296
        %v2298 = vrot.slane %v359, 5
        %v2299 = vsel %vm2264, %v2296, %v2298
        %v2300 = vrot.slane %v360, 5
        %v2301 = vsel %vm2264, %v2298, %v2300
        %v2302 = vrot.slane %v361, 5
        %v2303 = vsel %vm2264, %v2300, %v2302
        %v2304 = vrot.slane %v362, 5
        %v2305 = vsel %vm2264, %v2302, %v2304
        %v2306 = vrot.slane %v363, 5
        %v2307 = vsel %vm2264, %v2304, %v2306
        %v2308 = vrot.slane %v364, 5
        %v2309 = vsel %vm2264, %v2306, %v2308
        %v2310 = vrot.slane %v365, 5
        %v2311 = vsel %vm2264, %v2308, %v2310
        %v2312 = vrot.slane %v366, 5
        %v2313 = vsel %vm2264, %v2310, %v2312
        %v2314 = vrot.slane %v367, 5
        %v2315 = vsel %vm2264, %v2312, %v2314
        %v2316 = vrot.slane %v368, 5
        %v2317 = vsel %vm2264, %v2314, %v2316
        %v2318 = vrot.slane %v369, 5
        %v2319 = vsel %vm2264, %v2316, %v2318
        %v2320 = vrot.slane %v370, 5
        %v2321 = vsel %vm2264, %v2318, %v2320
        %v2322 = vrot.slane %v371, 5
        %v2323 = vsel %vm2264, %v2320, %v2322
        %v2324 = vrot.slane %v372, 5
        %v2325 = vsel %vm2264, %v2322, %v2324
        %v2326 = vrot.slane %v373, 5
        %v2327 = vsel %vm2264, %v2324, %v2326
        %v2328 = vrot.slane %v374, 5
        %v2329 = vsel %vm2264, %v2326, %v2328
        %v2330 = vsel %vm486, %v2267, 0
        %v2332 = vsel %vm486, %v2269, 0
        %v2334 = vsel %vm486, %v2271, 0
        %v2336 = vsel %vm486, %v2273, 0
        %v2338 = vsel %vm486, %v2275, 0
        %v2340 = vsel %vm486, %v2277, 0
        %v2342 = vsel %vm486, %v2279, 0
        %v2344 = vsel %vm486, %v2281, 0
        %v2346 = vsel %vm486, %v2283, 0
        %v2348 = vsel %vm486, %v2285, 0
        %v2350 = vsel %vm486, %v2287, 0
        %v2352 = vsel %vm486, %v2289, 0
        %v2354 = vsel %vm486, %v2291, 0
        %v2356 = vsel %vm486, %v2293, 0
        %v2358 = vsel %vm486, %v2295, 0
        %v2360 = vsel %vm486, %v2297, 0
        %v2362 = vsel %vm486, %v2299, 0
        %v2364 = vsel %vm486, %v2301, 0
        %v2366 = vsel %vm486, %v2303, 0
        %v2368 = vsel %vm486, %v2305, 0
        %v2370 = vsel %vm486, %v2307, 0
        %v2372 = vsel %vm486, %v2309, 0
        %v2374 = vsel %vm486, %v2311, 0
        %v2376 = vsel %vm486, %v2313, 0
        %v2378 = vsel %vm486, %v2315, 0
        %v2380 = vsel %vm486, %v2317, 0
        %v2382 = vsel %vm486, %v2319, 0
        %v2384 = vsel %vm486, %v2321, 0
        %v2386 = vsel %vm486, %v2323, 0
        %v2388 = vsel %vm486, %v2325, 0
        %v2390 = vsel %vm486, %v2327, 0
        %v2392 = vsel %vm486, %v2329, 0
        %v2395 = vsel %vm551, %v2260, 0
        %2397 = vmatprep.subr.mxu0 0.0
        %2398 = vmatpush1.msra.mxu0 %v2395
        %2399 = vmatprep.subr.mxu0 0.0
        %2400 = vmatpush1.msra.mxu0 0.0
        %2401 = vmatprep.subr.mxu0 0.0
        %2402 = vmatpush1.msra.mxu0 0.0
        %2403 = vmatprep.subr.mxu0 0.0
        %2404 = vmatpush1.msra.mxu0 0.0
        %2405 = vmatprep.subr.mxu0 0.0
        %2406 = vmatpush1.msra.mxu0 0.0
        %2407 = vmatprep.subr.mxu0 0.0
        %2408 = vmatpush1.msra.mxu0 0.0
        %2409 = vmatprep.subr.mxu0 0.0
        %2410 = vmatpush1.msra.mxu0 0.0
        %2411 = vmatprep.subr.mxu0 0.0
        %2412 = vmatpush1.msra.mxu0 0.0
        %2413 = vmatprep.subr.mxu0 0.0
        %2414 = vmatpush1.msra.mxu0 0.0
        %2415 = vmatprep.subr.mxu0 0.0
        %2416 = vmatpush1.msra.mxu0 0.0
        %2417 = vmatprep.subr.mxu0 0.0
        %2418 = vmatpush1.msra.mxu0 0.0
        %2419 = vmatprep.subr.mxu0 0.0
        %2420 = vmatpush1.msra.mxu0 0.0
        %2421 = vmatprep.subr.mxu0 0.0
        %2422 = vmatpush1.msra.mxu0 0.0
        %2423 = vmatprep.subr.mxu0 0.0
        %2424 = vmatpush1.msra.mxu0 0.0
        %2425 = vmatprep.subr.mxu0 0.0
        %2426 = vmatpush1.msra.mxu0 0.0
        %2427 = vmatprep.subr.mxu0 0.0
        %2428 = vmatpush1.msra.mxu0 0.0
        %2429 = vmatprep.subr.mxu0 0.0
        %2430 = vmatpush1.msra.mxu0 0.0
        %2431 = vmatprep.subr.mxu0 0.0
        %2432 = vmatpush1.msra.mxu0 0.0
        %2433 = vmatprep.subr.mxu0 0.0
        %2434 = vmatpush1.msra.mxu0 0.0
        %2435 = vmatprep.subr.mxu0 0.0
        %2436 = vmatpush1.msra.mxu0 0.0
        %2437 = vmatprep.subr.mxu0 0.0
        %2438 = vmatpush1.msra.mxu0 0.0
        %2439 = vmatprep.subr.mxu0 0.0
        %2440 = vmatpush1.msra.mxu0 0.0
        %2441 = vmatprep.subr.mxu0 0.0
        %2442 = vmatpush1.msra.mxu0 0.0
        %2443 = vmatprep.subr.mxu0 0.0
        %2444 = vmatpush1.msra.mxu0 0.0
        %2445 = vmatprep.subr.mxu0 0.0
        %2446 = vmatpush1.msra.mxu0 0.0
        %2447 = vmatprep.subr.mxu0 0.0
        %2448 = vmatpush1.msra.mxu0 0.0
        %2449 = vmatprep.subr.mxu0 0.0
        %2450 = vmatpush1.msra.mxu0 0.0
        %2451 = vmatprep.subr.mxu0 0.0
        %2452 = vmatpush1.msra.mxu0 0.0
        %2453 = vmatprep.subr.mxu0 0.0
        %2454 = vmatpush1.msra.mxu0 0.0
        %2455 = vmatprep.subr.mxu0 0.0
        %2456 = vmatpush1.msra.mxu0 0.0
        %2457 = vmatprep.subr.mxu0 0.0
        %2458 = vmatpush1.msra.mxu0 0.0
        %2459 = vmatprep.subr.mxu0 0.0
        %2460 = vmatpush1.msra.mxu0 0.0
        %2461 = vmatprep.mubr.f32.mxu0 0.0
        %2462 = vmatmul.mubr.f32.gmra.mrb[0].mxu0 %v2330
        %v2463 = vpop.f32.mrb[0].mxu0
        %v2464 = vadd.f32 0.0, %v2463
        %v2465 = vpop.f32.mrb[0].mxu0
        %2466 = vmatprep.mubr.f32.mxu0 0.0
        %2467 = vmatmul.mubr.f32.gmra.mrb[0].mxu0 %v2332
        %v2468 = vpop.f32.mrb[0].mxu0
        %v2469 = vadd.f32 0.0, %v2468
        %v2470 = vpop.f32.mrb[0].mxu0
        %2471 = vmatprep.mubr.f32.mxu0 0.0
        %2472 = vmatmul.mubr.f32.gmra.mrb[0].mxu0 %v2334
        %v2473 = vpop.f32.mrb[0].mxu0
        %v2474 = vadd.f32 0.0, %v2473
        %v2475 = vpop.f32.mrb[0].mxu0
        %2476 = vmatprep.mubr.f32.mxu0 0.0
        %2477 = vmatmul.mubr.f32.gmra.mrb[0].mxu0 %v2336
        %v2478 = vpop.f32.mrb[0].mxu0
        %v2479 = vadd.f32 0.0, %v2478
        %v2480 = vpop.f32.mrb[0].mxu0
        %2481 = vmatprep.mubr.f32.mxu0 0.0
        %2482 = vmatmul.mubr.f32.gmra.mrb[0].mxu0 %v2338
        %v2483 = vpop.f32.mrb[0].mxu0
        %v2484 = vadd.f32 0.0, %v2483
        %v2485 = vpop.f32.mrb[0].mxu0
        %2486 = vmatprep.mubr.f32.mxu0 0.0
        %2487 = vmatmul.mubr.f32.gmra.mrb[0].mxu0 %v2340
        %v2488 = vpop.f32.mrb[0].mxu0
        %v2489 = vadd.f32 0.0, %v2488
        %v2490 = vpop.f32.mrb[0].mxu0
        %2491 = vmatprep.mubr.f32.mxu0 0.0
        %2492 = vmatmul.mubr.f32.gmra.mrb[0].mxu0 %v2342
        %v2493 = vpop.f32.mrb[0].mxu0
        %v2494 = vadd.f32 0.0, %v2493
        %v2495 = vpop.f32.mrb[0].mxu0
        %2496 = vmatprep.mubr.f32.mxu0 0.0
        %2497 = vmatmul.mubr.f32.gmra.mrb[0].mxu0 %v2344
        %v2498 = vpop.f32.mrb[0].mxu0
        %v2499 = vadd.f32 0.0, %v2498
        %v2500 = vpop.f32.mrb[0].mxu0
        %2501 = vmatprep.mubr.f32.mxu0 0.0
        %2502 = vmatmul.mubr.f32.gmra.mrb[0].mxu0 %v2346
        %v2503 = vpop.f32.mrb[0].mxu0
        %v2504 = vadd.f32 0.0, %v2503
        %v2505 = vpop.f32.mrb[0].mxu0
        %2506 = vmatprep.mubr.f32.mxu0 0.0
        %2507 = vmatmul.mubr.f32.gmra.mrb[0].mxu0 %v2348
        %v2508 = vpop.f32.mrb[0].mxu0
        %v2509 = vadd.f32 0.0, %v2508
        %v2510 = vpop.f32.mrb[0].mxu0
        %2511 = vmatprep.mubr.f32.mxu0 0.0
        %2512 = vmatmul.mubr.f32.gmra.mrb[0].mxu0 %v2350
        %v2513 = vpop.f32.mrb[0].mxu0
        %v2514 = vadd.f32 0.0, %v2513
        %v2515 = vpop.f32.mrb[0].mxu0
        %2516 = vmatprep.mubr.f32.mxu0 0.0
        %2517 = vmatmul.mubr.f32.gmra.mrb[0].mxu0 %v2352
        %v2518 = vpop.f32.mrb[0].mxu0
        %v2519 = vadd.f32 0.0, %v2518
        %v2520 = vpop.f32.mrb[0].mxu0
        %2521 = vmatprep.mubr.f32.mxu0 0.0
        %2522 = vmatmul.mubr.f32.gmra.mrb[0].mxu0 %v2354
        %v2523 = vpop.f32.mrb[0].mxu0
        %v2524 = vadd.f32 0.0, %v2523
        %v2525 = vpop.f32.mrb[0].mxu0
        %2526 = vmatprep.mubr.f32.mxu0 0.0
        %2527 = vmatmul.mubr.f32.gmra.mrb[0].mxu0 %v2356
        %v2528 = vpop.f32.mrb[0].mxu0
        %v2529 = vadd.f32 0.0, %v2528
        %v2530 = vpop.f32.mrb[0].mxu0
        %2531 = vmatprep.mubr.f32.mxu0 0.0
        %2532 = vmatmul.mubr.f32.gmra.mrb[0].mxu0 %v2358
        %v2533 = vpop.f32.mrb[0].mxu0
        %v2534 = vadd.f32 0.0, %v2533
        %v2535 = vpop.f32.mrb[0].mxu0
        %2536 = vmatprep.mubr.f32.mxu0 0.0
        %2537 = vmatmul.mubr.f32.gmra.mrb[0].mxu0 %v2360
        %v2538 = vpop.f32.mrb[0].mxu0
        %v2539 = vadd.f32 0.0, %v2538
        %v2540 = vpop.f32.mrb[0].mxu0
        %2541 = vmatprep.mubr.f32.mxu0 0.0
        %2542 = vmatmul.mubr.f32.gmra.mrb[0].mxu0 %v2362
        %v2543 = vpop.f32.mrb[0].mxu0
        %v2544 = vadd.f32 0.0, %v2543
        %v2545 = vpop.f32.mrb[0].mxu0
        %2546 = vmatprep.mubr.f32.mxu0 0.0
        %2547 = vmatmul.mubr.f32.gmra.mrb[0].mxu0 %v2364
        %v2548 = vpop.f32.mrb[0].mxu0
        %v2549 = vadd.f32 0.0, %v2548
        %v2550 = vpop.f32.mrb[0].mxu0
        %2551 = vmatprep.mubr.f32.mxu0 0.0
        %2552 = vmatmul.mubr.f32.gmra.mrb[0].mxu0 %v2366
        %v2553 = vpop.f32.mrb[0].mxu0
        %v2554 = vadd.f32 0.0, %v2553
        %v2555 = vpop.f32.mrb[0].mxu0
        %2556 = vmatprep.mubr.f32.mxu0 0.0
        %2557 = vmatmul.mubr.f32.gmra.mrb[0].mxu0 %v2368
        %v2558 = vpop.f32.mrb[0].mxu0
        %v2559 = vadd.f32 0.0, %v2558
        %v2560 = vpop.f32.mrb[0].mxu0
        %2561 = vmatprep.mubr.f32.mxu0 0.0
        %2562 = vmatmul.mubr.f32.gmra.mrb[0].mxu0 %v2370
        %v2563 = vpop.f32.mrb[0].mxu0
        %v2564 = vadd.f32 0.0, %v2563
        %v2565 = vpop.f32.mrb[0].mxu0
        %2566 = vmatprep.mubr.f32.mxu0 0.0
        %2567 = vmatmul.mubr.f32.gmra.mrb[0].mxu0 %v2372
        %v2568 = vpop.f32.mrb[0].mxu0
        %v2569 = vadd.f32 0.0, %v2568
        %v2570 = vpop.f32.mrb[0].mxu0
        %2571 = vmatprep.mubr.f32.mxu0 0.0
        %2572 = vmatmul.mubr.f32.gmra.mrb[0].mxu0 %v2374
        %v2573 = vpop.f32.mrb[0].mxu0
        %v2574 = vadd.f32 0.0, %v2573
        %v2575 = vpop.f32.mrb[0].mxu0
        %2576 = vmatprep.mubr.f32.mxu0 0.0
        %2577 = vmatmul.mubr.f32.gmra.mrb[0].mxu0 %v2376
        %v2578 = vpop.f32.mrb[0].mxu0
        %v2579 = vadd.f32 0.0, %v2578
        %v2580 = vpop.f32.mrb[0].mxu0
        %2581 = vmatprep.mubr.f32.mxu0 0.0
        %2582 = vmatmul.mubr.f32.gmra.mrb[0].mxu0 %v2378
        %v2583 = vpop.f32.mrb[0].mxu0
        %v2584 = vadd.f32 0.0, %v2583
        %v2585 = vpop.f32.mrb[0].mxu0
        %2586 = vmatprep.mubr.f32.mxu0 0.0
        %2587 = vmatmul.mubr.f32.gmra.mrb[0].mxu0 %v2380
        %v2588 = vpop.f32.mrb[0].mxu0
        %v2589 = vadd.f32 0.0, %v2588
        %v2590 = vpop.f32.mrb[0].mxu0
        %2591 = vmatprep.mubr.f32.mxu0 0.0
        %2592 = vmatmul.mubr.f32.gmra.mrb[0].mxu0 %v2382
        %v2593 = vpop.f32.mrb[0].mxu0
        %v2594 = vadd.f32 0.0, %v2593
        %v2595 = vpop.f32.mrb[0].mxu0
        %2596 = vmatprep.mubr.f32.mxu0 0.0
        %2597 = vmatmul.mubr.f32.gmra.mrb[0].mxu0 %v2384
        %v2598 = vpop.f32.mrb[0].mxu0
        %v2599 = vadd.f32 0.0, %v2598
        %v2600 = vpop.f32.mrb[0].mxu0
        %2601 = vmatprep.mubr.f32.mxu0 0.0
        %2602 = vmatmul.mubr.f32.gmra.mrb[0].mxu0 %v2386
        %v2603 = vpop.f32.mrb[0].mxu0
        %v2604 = vadd.f32 0.0, %v2603
        %v2605 = vpop.f32.mrb[0].mxu0
        %2606 = vmatprep.mubr.f32.mxu0 0.0
        %2607 = vmatmul.mubr.f32.gmra.mrb[0].mxu0 %v2388
        %v2608 = vpop.f32.mrb[0].mxu0
        %v2609 = vadd.f32 0.0, %v2608
        %v2610 = vpop.f32.mrb[0].mxu0
        %2611 = vmatprep.mubr.f32.mxu0 0.0
        %2612 = vmatmul.mubr.f32.gmra.mrb[0].mxu0 %v2390
        %v2613 = vpop.f32.mrb[0].mxu0
        %v2614 = vadd.f32 0.0, %v2613
        %v2615 = vpop.f32.mrb[0].mxu0
        %2616 = vmatprep.mubr.f32.mxu0 0.0
        %2617 = vmatmul.mubr.f32.gmra.mrb[0].mxu0 %v2392
        %v2618 = vpop.f32.mrb[0].mxu0
        %v2619 = vadd.f32 0.0, %v2618
        %v2620 = vpop.f32.mrb[0].mxu0
        %2621 = vdwg.mxu0
        %v2622 = vadd.f32 %v2227, %v2464
        %v2623 = vadd.f32 %v2228, %v2469
        %v2624 = vadd.f32 %v2229, %v2474
        %v2625 = vadd.f32 %v2230, %v2479
        %v2626 = vadd.f32 %v2231, %v2484
        %v2627 = vadd.f32 %v2232, %v2489
        %v2628 = vadd.f32 %v2233, %v2494
        %v2629 = vadd.f32 %v2234, %v2499
        %v2630 = vadd.f32 %v2235, %v2504
        %v2631 = vadd.f32 %v2236, %v2509
        %v2632 = vadd.f32 %v2237, %v2514
        %v2633 = vadd.f32 %v2238, %v2519
        %v2634 = vadd.f32 %v2239, %v2524
        %v2635 = vadd.f32 %v2240, %v2529
        %v2636 = vadd.f32 %v2241, %v2534
        %v2637 = vadd.f32 %v2242, %v2539
        %v2638 = vadd.f32 %v2243, %v2544
        %v2639 = vadd.f32 %v2244, %v2549
        %v2640 = vadd.f32 %v2245, %v2554
        %v2641 = vadd.f32 %v2246, %v2559
        %v2642 = vadd.f32 %v2247, %v2564
        %v2643 = vadd.f32 %v2248, %v2569
        %v2644 = vadd.f32 %v2249, %v2574
        %v2645 = vadd.f32 %v2250, %v2579
        %v2646 = vadd.f32 %v2251, %v2584
        %v2647 = vadd.f32 %v2252, %v2589
        %v2648 = vadd.f32 %v2253, %v2594
        %v2649 = vadd.f32 %v2254, %v2599
        %v2650 = vadd.f32 %v2255, %v2604
        %v2651 = vadd.f32 %v2256, %v2609
        %v2652 = vadd.f32 %v2257, %v2614
        %v2653 = vadd.f32 %v2258, %v2619
        %s2654 = scalar_lea.vmem [#allocation7], 24
        %v2655 = vld [vmem:[%s2654] sm:$0xf]
        %vm2659 = vcmask 1041408
        %v2660 = vrot.slane %v345, 6
        %v2661 = vrot.slane %v346, 6
        %v2662 = vsel %vm2659, %v2660, %v2661
        %v2663 = vrot.slane %v347, 6
        %v2664 = vsel %vm2659, %v2661, %v2663
        %v2665 = vrot.slane %v348, 6
        %v2666 = vsel %vm2659, %v2663, %v2665
        %v2667 = vrot.slane %v349, 6
        %v2668 = vsel %vm2659, %v2665, %v2667
        %v2669 = vrot.slane %v350, 6
        %v2670 = vsel %vm2659, %v2667, %v2669
        %v2671 = vrot.slane %v351, 6
        %v2672 = vsel %vm2659, %v2669, %v2671
        %v2673 = vrot.slane %v352, 6
        %v2674 = vsel %vm2659, %v2671, %v2673
        %v2675 = vrot.slane %v353, 6
        %v2676 = vsel %vm2659, %v2673, %v2675
        %v2677 = vrot.slane %v354, 6
        %v2678 = vsel %vm2659, %v2675, %v2677
        %v2679 = vrot.slane %v355, 6
        %v2680 = vsel %vm2659, %v2677, %v2679
        %v2681 = vrot.slane %v356, 6
        %v2682 = vsel %vm2659, %v2679, %v2681
        %v2683 = vrot.slane %v357, 6
        %v2684 = vsel %vm2659, %v2681, %v2683
        %v2685 = vrot.slane %v358, 6
        %v2686 = vsel %vm2659, %v2683, %v2685
        %v2687 = vrot.slane %v359, 6
        %v2688 = vsel %vm2659, %v2685, %v2687
        %v2689 = vrot.slane %v360, 6
        %v2690 = vsel %vm2659, %v2687, %v2689
        %v2691 = vrot.slane %v361, 6
        %v2692 = vsel %vm2659, %v2689, %v2691
        %v2693 = vrot.slane %v362, 6
        %v2694 = vsel %vm2659, %v2691, %v2693
        %v2695 = vrot.slane %v363, 6
        %v2696 = vsel %vm2659, %v2693, %v2695
        %v2697 = vrot.slane %v364, 6
        %v2698 = vsel %vm2659, %v2695, %v2697
        %v2699 = vrot.slane %v365, 6
        %v2700 = vsel %vm2659, %v2697, %v2699
        %v2701 = vrot.slane %v366, 6
        %v2702 = vsel %vm2659, %v2699, %v2701
        %v2703 = vrot.slane %v367, 6
        %v2704 = vsel %vm2659, %v2701, %v2703
        %v2705 = vrot.slane %v368, 6
        %v2706 = vsel %vm2659, %v2703, %v2705
        %v2707 = vrot.slane %v369, 6
        %v2708 = vsel %vm2659, %v2705, %v2707
        %v2709 = vrot.slane %v370, 6
        %v2710 = vsel %vm2659, %v2707, %v2709
        %v2711 = vrot.slane %v371, 6
        %v2712 = vsel %vm2659, %v2709, %v2711
        %v2713 = vrot.slane %v372, 6
        %v2714 = vsel %vm2659, %v2711, %v2713
        %v2715 = vrot.slane %v373, 6
        %v2716 = vsel %vm2659, %v2713, %v2715
        %v2717 = vrot.slane %v374, 6
        %v2718 = vsel %vm2659, %v2715, %v2717
        %v2719 = vrot.slane %v375, 6
        %v2720 = vsel %vm2659, %v2717, %v2719
        %v2721 = vrot.slane %v376, 6
        %v2722 = vsel %vm2659, %v2719, %v2721
        %v2723 = vrot.slane %v377, 6
        %v2724 = vsel %vm2659, %v2721, %v2723
        %v2725 = vsel %vm486, %v2662, 0
        %v2727 = vsel %vm486, %v2664, 0
        %v2729 = vsel %vm486, %v2666, 0
        %v2731 = vsel %vm486, %v2668, 0
        %v2733 = vsel %vm486, %v2670, 0
        %v2735 = vsel %vm486, %v2672, 0
        %v2737 = vsel %vm486, %v2674, 0
        %v2739 = vsel %vm486, %v2676, 0
        %v2741 = vsel %vm486, %v2678, 0
        %v2743 = vsel %vm486, %v2680, 0
        %v2745 = vsel %vm486, %v2682, 0
        %v2747 = vsel %vm486, %v2684, 0
        %v2749 = vsel %vm486, %v2686, 0
        %v2751 = vsel %vm486, %v2688, 0
        %v2753 = vsel %vm486, %v2690, 0
        %v2755 = vsel %vm486, %v2692, 0
        %v2757 = vsel %vm486, %v2694, 0
        %v2759 = vsel %vm486, %v2696, 0
        %v2761 = vsel %vm486, %v2698, 0
        %v2763 = vsel %vm486, %v2700, 0
        %v2765 = vsel %vm486, %v2702, 0
        %v2767 = vsel %vm486, %v2704, 0
        %v2769 = vsel %vm486, %v2706, 0
        %v2771 = vsel %vm486, %v2708, 0
        %v2773 = vsel %vm486, %v2710, 0
        %v2775 = vsel %vm486, %v2712, 0
        %v2777 = vsel %vm486, %v2714, 0
        %v2779 = vsel %vm486, %v2716, 0
        %v2781 = vsel %vm486, %v2718, 0
        %v2783 = vsel %vm486, %v2720, 0
        %v2785 = vsel %vm486, %v2722, 0
        %v2787 = vsel %vm486, %v2724, 0
        %v2790 = vsel %vm551, %v2655, 0
        %2792 = vmatprep.subr.mxu0 0.0
        %2793 = vmatpush1.msra.mxu0 %v2790
        %2794 = vmatprep.subr.mxu0 0.0
        %2795 = vmatpush1.msra.mxu0 0.0
        %2796 = vmatprep.subr.mxu0 0.0
        %2797 = vmatpush1.msra.mxu0 0.0
        %2798 = vmatprep.subr.mxu0 0.0
        %2799 = vmatpush1.msra.mxu0 0.0
        %2800 = vmatprep.subr.mxu0 0.0
        %2801 = vmatpush1.msra.mxu0 0.0
        %2802 = vmatprep.subr.mxu0 0.0
        %2803 = vmatpush1.msra.mxu0 0.0
        %2804 = vmatprep.subr.mxu0 0.0
        %2805 = vmatpush1.msra.mxu0 0.0
        %2806 = vmatprep.subr.mxu0 0.0
        %2807 = vmatpush1.msra.mxu0 0.0
        %2808 = vmatprep.subr.mxu0 0.0
        %2809 = vmatpush1.msra.mxu0 0.0
        %2810 = vmatprep.subr.mxu0 0.0
        %2811 = vmatpush1.msra.mxu0 0.0
        %2812 = vmatprep.subr.mxu0 0.0
        %2813 = vmatpush1.msra.mxu0 0.0
        %2814 = vmatprep.subr.mxu0 0.0
        %2815 = vmatpush1.msra.mxu0 0.0
        %2816 = vmatprep.subr.mxu0 0.0
        %2817 = vmatpush1.msra.mxu0 0.0
        %2818 = vmatprep.subr.mxu0 0.0
        %2819 = vmatpush1.msra.mxu0 0.0
        %2820 = vmatprep.subr.mxu0 0.0
        %2821 = vmatpush1.msra.mxu0 0.0
        %2822 = vmatprep.subr.mxu0 0.0
        %2823 = vmatpush1.msra.mxu0 0.0
        %2824 = vmatprep.subr.mxu0 0.0
        %2825 = vmatpush1.msra.mxu0 0.0
        %2826 = vmatprep.subr.mxu0 0.0
        %2827 = vmatpush1.msra.mxu0 0.0
        %2828 = vmatprep.subr.mxu0 0.0
        %2829 = vmatpush1.msra.mxu0 0.0
        %2830 = vmatprep.subr.mxu0 0.0
        %2831 = vmatpush1.msra.mxu0 0.0
        %2832 = vmatprep.subr.mxu0 0.0
        %2833 = vmatpush1.msra.mxu0 0.0
        %2834 = vmatprep.subr.mxu0 0.0
        %2835 = vmatpush1.msra.mxu0 0.0
        %2836 = vmatprep.subr.mxu0 0.0
        %2837 = vmatpush1.msra.mxu0 0.0
        %2838 = vmatprep.subr.mxu0 0.0
        %2839 = vmatpush1.msra.mxu0 0.0
        %2840 = vmatprep.subr.mxu0 0.0
        %2841 = vmatpush1.msra.mxu0 0.0
        %2842 = vmatprep.subr.mxu0 0.0
        %2843 = vmatpush1.msra.mxu0 0.0
        %2844 = vmatprep.subr.mxu0 0.0
        %2845 = vmatpush1.msra.mxu0 0.0
        %2846 = vmatprep.subr.mxu0 0.0
        %2847 = vmatpush1.msra.mxu0 0.0
        %2848 = vmatprep.subr.mxu0 0.0
        %2849 = vmatpush1.msra.mxu0 0.0
        %2850 = vmatprep.subr.mxu0 0.0
        %2851 = vmatpush1.msra.mxu0 0.0
        %2852 = vmatprep.subr.mxu0 0.0
        %2853 = vmatpush1.msra.mxu0 0.0
        %2854 = vmatprep.subr.mxu0 0.0
        %2855 = vmatpush1.msra.mxu0 0.0
        %2856 = vmatprep.mubr.f32.mxu0 0.0
        %2857 = vmatmul.mubr.f32.gmra.mrb[0].mxu0 %v2725
        %v2858 = vpop.f32.mrb[0].mxu0
        %v2859 = vadd.f32 0.0, %v2858
        %v2860 = vpop.f32.mrb[0].mxu0
        %2861 = vmatprep.mubr.f32.mxu0 0.0
        %2862 = vmatmul.mubr.f32.gmra.mrb[0].mxu0 %v2727
        %v2863 = vpop.f32.mrb[0].mxu0
        %v2864 = vadd.f32 0.0, %v2863
        %v2865 = vpop.f32.mrb[0].mxu0
        %2866 = vmatprep.mubr.f32.mxu0 0.0
        %2867 = vmatmul.mubr.f32.gmra.mrb[0].mxu0 %v2729
        %v2868 = vpop.f32.mrb[0].mxu0
        %v2869 = vadd.f32 0.0, %v2868
        %v2870 = vpop.f32.mrb[0].mxu0
        %2871 = vmatprep.mubr.f32.mxu0 0.0
        %2872 = vmatmul.mubr.f32.gmra.mrb[0].mxu0 %v2731
        %v2873 = vpop.f32.mrb[0].mxu0
        %v2874 = vadd.f32 0.0, %v2873
        %v2875 = vpop.f32.mrb[0].mxu0
        %2876 = vmatprep.mubr.f32.mxu0 0.0
        %2877 = vmatmul.mubr.f32.gmra.mrb[0].mxu0 %v2733
        %v2878 = vpop.f32.mrb[0].mxu0
        %v2879 = vadd.f32 0.0, %v2878
        %v2880 = vpop.f32.mrb[0].mxu0
        %2881 = vmatprep.mubr.f32.mxu0 0.0
        %2882 = vmatmul.mubr.f32.gmra.mrb[0].mxu0 %v2735
        %v2883 = vpop.f32.mrb[0].mxu0
        %v2884 = vadd.f32 0.0, %v2883
        %v2885 = vpop.f32.mrb[0].mxu0
        %2886 = vmatprep.mubr.f32.mxu0 0.0
        %2887 = vmatmul.mubr.f32.gmra.mrb[0].mxu0 %v2737
        %v2888 = vpop.f32.mrb[0].mxu0
        %v2889 = vadd.f32 0.0, %v2888
        %v2890 = vpop.f32.mrb[0].mxu0
        %2891 = vmatprep.mubr.f32.mxu0 0.0
        %2892 = vmatmul.mubr.f32.gmra.mrb[0].mxu0 %v2739
        %v2893 = vpop.f32.mrb[0].mxu0
        %v2894 = vadd.f32 0.0, %v2893
        %v2895 = vpop.f32.mrb[0].mxu0
        %2896 = vmatprep.mubr.f32.mxu0 0.0
        %2897 = vmatmul.mubr.f32.gmra.mrb[0].mxu0 %v2741
        %v2898 = vpop.f32.mrb[0].mxu0
        %v2899 = vadd.f32 0.0, %v2898
        %v2900 = vpop.f32.mrb[0].mxu0
        %2901 = vmatprep.mubr.f32.mxu0 0.0
        %2902 = vmatmul.mubr.f32.gmra.mrb[0].mxu0 %v2743
        %v2903 = vpop.f32.mrb[0].mxu0
        %v2904 = vadd.f32 0.0, %v2903
        %v2905 = vpop.f32.mrb[0].mxu0
        %2906 = vmatprep.mubr.f32.mxu0 0.0
        %2907 = vmatmul.mubr.f32.gmra.mrb[0].mxu0 %v2745
        %v2908 = vpop.f32.mrb[0].mxu0
        %v2909 = vadd.f32 0.0, %v2908
        %v2910 = vpop.f32.mrb[0].mxu0
        %2911 = vmatprep.mubr.f32.mxu0 0.0
        %2912 = vmatmul.mubr.f32.gmra.mrb[0].mxu0 %v2747
        %v2913 = vpop.f32.mrb[0].mxu0
        %v2914 = vadd.f32 0.0, %v2913
        %v2915 = vpop.f32.mrb[0].mxu0
        %2916 = vmatprep.mubr.f32.mxu0 0.0
        %2917 = vmatmul.mubr.f32.gmra.mrb[0].mxu0 %v2749
        %v2918 = vpop.f32.mrb[0].mxu0
        %v2919 = vadd.f32 0.0, %v2918
        %v2920 = vpop.f32.mrb[0].mxu0
        %2921 = vmatprep.mubr.f32.mxu0 0.0
        %2922 = vmatmul.mubr.f32.gmra.mrb[0].mxu0 %v2751
        %v2923 = vpop.f32.mrb[0].mxu0
        %v2924 = vadd.f32 0.0, %v2923
        %v2925 = vpop.f32.mrb[0].mxu0
        %2926 = vmatprep.mubr.f32.mxu0 0.0
        %2927 = vmatmul.mubr.f32.gmra.mrb[0].mxu0 %v2753
        %v2928 = vpop.f32.mrb[0].mxu0
        %v2929 = vadd.f32 0.0, %v2928
        %v2930 = vpop.f32.mrb[0].mxu0
        %2931 = vmatprep.mubr.f32.mxu0 0.0
        %2932 = vmatmul.mubr.f32.gmra.mrb[0].mxu0 %v2755
        %v2933 = vpop.f32.mrb[0].mxu0
        %v2934 = vadd.f32 0.0, %v2933
        %v2935 = vpop.f32.mrb[0].mxu0
        %2936 = vmatprep.mubr.f32.mxu0 0.0
        %2937 = vmatmul.mubr.f32.gmra.mrb[0].mxu0 %v2757
        %v2938 = vpop.f32.mrb[0].mxu0
        %v2939 = vadd.f32 0.0, %v2938
        %v2940 = vpop.f32.mrb[0].mxu0
        %2941 = vmatprep.mubr.f32.mxu0 0.0
        %2942 = vmatmul.mubr.f32.gmra.mrb[0].mxu0 %v2759
        %v2943 = vpop.f32.mrb[0].mxu0
        %v2944 = vadd.f32 0.0, %v2943
        %v2945 = vpop.f32.mrb[0].mxu0
        %2946 = vmatprep.mubr.f32.mxu0 0.0
        %2947 = vmatmul.mubr.f32.gmra.mrb[0].mxu0 %v2761
        %v2948 = vpop.f32.mrb[0].mxu0
        %v2949 = vadd.f32 0.0, %v2948
        %v2950 = vpop.f32.mrb[0].mxu0
        %2951 = vmatprep.mubr.f32.mxu0 0.0
        %2952 = vmatmul.mubr.f32.gmra.mrb[0].mxu0 %v2763
        %v2953 = vpop.f32.mrb[0].mxu0
        %v2954 = vadd.f32 0.0, %v2953
        %v2955 = vpop.f32.mrb[0].mxu0
        %2956 = vmatprep.mubr.f32.mxu0 0.0
        %2957 = vmatmul.mubr.f32.gmra.mrb[0].mxu0 %v2765
        %v2958 = vpop.f32.mrb[0].mxu0
        %v2959 = vadd.f32 0.0, %v2958
        %v2960 = vpop.f32.mrb[0].mxu0
        %2961 = vmatprep.mubr.f32.mxu0 0.0
        %2962 = vmatmul.mubr.f32.gmra.mrb[0].mxu0 %v2767
        %v2963 = vpop.f32.mrb[0].mxu0
        %v2964 = vadd.f32 0.0, %v2963
        %v2965 = vpop.f32.mrb[0].mxu0
        %2966 = vmatprep.mubr.f32.mxu0 0.0
        %2967 = vmatmul.mubr.f32.gmra.mrb[0].mxu0 %v2769
        %v2968 = vpop.f32.mrb[0].mxu0
        %v2969 = vadd.f32 0.0, %v2968
        %v2970 = vpop.f32.mrb[0].mxu0
        %2971 = vmatprep.mubr.f32.mxu0 0.0
        %2972 = vmatmul.mubr.f32.gmra.mrb[0].mxu0 %v2771
        %v2973 = vpop.f32.mrb[0].mxu0
        %v2974 = vadd.f32 0.0, %v2973
        %v2975 = vpop.f32.mrb[0].mxu0
        %2976 = vmatprep.mubr.f32.mxu0 0.0
        %2977 = vmatmul.mubr.f32.gmra.mrb[0].mxu0 %v2773
        %v2978 = vpop.f32.mrb[0].mxu0
        %v2979 = vadd.f32 0.0, %v2978
        %v2980 = vpop.f32.mrb[0].mxu0
        %2981 = vmatprep.mubr.f32.mxu0 0.0
        %2982 = vmatmul.mubr.f32.gmra.mrb[0].mxu0 %v2775
        %v2983 = vpop.f32.mrb[0].mxu0
        %v2984 = vadd.f32 0.0, %v2983
        %v2985 = vpop.f32.mrb[0].mxu0
        %2986 = vmatprep.mubr.f32.mxu0 0.0
        %2987 = vmatmul.mubr.f32.gmra.mrb[0].mxu0 %v2777
        %v2988 = vpop.f32.mrb[0].mxu0
        %v2989 = vadd.f32 0.0, %v2988
        %v2990 = vpop.f32.mrb[0].mxu0
        %2991 = vmatprep.mubr.f32.mxu0 0.0
        %2992 = vmatmul.mubr.f32.gmra.mrb[0].mxu0 %v2779
        %v2993 = vpop.f32.mrb[0].mxu0
        %v2994 = vadd.f32 0.0, %v2993
        %v2995 = vpop.f32.mrb[0].mxu0
        %2996 = vmatprep.mubr.f32.mxu0 0.0
        %2997 = vmatmul.mubr.f32.gmra.mrb[0].mxu0 %v2781
        %v2998 = vpop.f32.mrb[0].mxu0
        %v2999 = vadd.f32 0.0, %v2998
        %v3000 = vpop.f32.mrb[0].mxu0
        %3001 = vmatprep.mubr.f32.mxu0 0.0
        %3002 = vmatmul.mubr.f32.gmra.mrb[0].mxu0 %v2783
        %v3003 = vpop.f32.mrb[0].mxu0
        %v3004 = vadd.f32 0.0, %v3003
        %v3005 = vpop.f32.mrb[0].mxu0
        %3006 = vmatprep.mubr.f32.mxu0 0.0
        %3007 = vmatmul.mubr.f32.gmra.mrb[0].mxu0 %v2785
        %v3008 = vpop.f32.mrb[0].mxu0
        %v3009 = vadd.f32 0.0, %v3008
        %v3010 = vpop.f32.mrb[0].mxu0
        %3011 = vmatprep.mubr.f32.mxu0 0.0
        %3012 = vmatmul.mubr.f32.gmra.mrb[0].mxu0 %v2787
        %v3013 = vpop.f32.mrb[0].mxu0
        %v3014 = vadd.f32 0.0, %v3013
        %v3015 = vpop.f32.mrb[0].mxu0
        %3016 = vdwg.mxu0
        %v3017 = vadd.f32 %v2622, %v2859
        %v3018 = vadd.f32 %v2623, %v2864
        %v3019 = vadd.f32 %v2624, %v2869
        %v3020 = vadd.f32 %v2625, %v2874
        %v3021 = vadd.f32 %v2626, %v2879
        %v3022 = vadd.f32 %v2627, %v2884
        %v3023 = vadd.f32 %v2628, %v2889
        %v3024 = vadd.f32 %v2629, %v2894
        %v3025 = vadd.f32 %v2630, %v2899
        %v3026 = vadd.f32 %v2631, %v2904
        %v3027 = vadd.f32 %v2632, %v2909
        %v3028 = vadd.f32 %v2633, %v2914
        %v3029 = vadd.f32 %v2634, %v2919
        %v3030 = vadd.f32 %v2635, %v2924
        %v3031 = vadd.f32 %v2636, %v2929
        %v3032 = vadd.f32 %v2637, %v2934
        %v3033 = vadd.f32 %v2638, %v2939
        %v3034 = vadd.f32 %v2639, %v2944
        %v3035 = vadd.f32 %v2640, %v2949
        %v3036 = vadd.f32 %v2641, %v2954
        %v3037 = vadd.f32 %v2642, %v2959
        %v3038 = vadd.f32 %v2643, %v2964
        %v3039 = vadd.f32 %v2644, %v2969
        %v3040 = vadd.f32 %v2645, %v2974
        %v3041 = vadd.f32 %v2646, %v2979
        %v3042 = vadd.f32 %v2647, %v2984
        %v3043 = vadd.f32 %v2648, %v2989
        %v3044 = vadd.f32 %v2649, %v2994
        %v3045 = vadd.f32 %v2650, %v2999
        %v3046 = vadd.f32 %v2651, %v3004
        %v3047 = vadd.f32 %v2652, %v3009
        %v3048 = vadd.f32 %v2653, %v3014
        %s3049 = scalar_lea.vmem [#allocation7], 28
        %v3050 = vld [vmem:[%s3049] sm:$0xf]
        %vm3054 = vcmask 1040384
        %v3055 = vrot.slane %v348, 7
        %v3056 = vrot.slane %v349, 7
        %v3057 = vsel %vm3054, %v3055, %v3056
        %v3058 = vrot.slane %v350, 7
        %v3059 = vsel %vm3054, %v3056, %v3058
        %v3060 = vrot.slane %v351, 7
        %v3061 = vsel %vm3054, %v3058, %v3060
        %v3062 = vrot.slane %v352, 7
        %v3063 = vsel %vm3054, %v3060, %v3062
        %v3064 = vrot.slane %v353, 7
        %v3065 = vsel %vm3054, %v3062, %v3064
        %v3066 = vrot.slane %v354, 7
        %v3067 = vsel %vm3054, %v3064, %v3066
        %v3068 = vrot.slane %v355, 7
        %v3069 = vsel %vm3054, %v3066, %v3068
        %v3070 = vrot.slane %v356, 7
        %v3071 = vsel %vm3054, %v3068, %v3070
        %v3072 = vrot.slane %v357, 7
        %v3073 = vsel %vm3054, %v3070, %v3072
        %v3074 = vrot.slane %v358, 7
        %v3075 = vsel %vm3054, %v3072, %v3074
        %v3076 = vrot.slane %v359, 7
        %v3077 = vsel %vm3054, %v3074, %v3076
        %v3078 = vrot.slane %v360, 7
        %v3079 = vsel %vm3054, %v3076, %v3078
        %v3080 = vrot.slane %v361, 7
        %v3081 = vsel %vm3054, %v3078, %v3080
        %v3082 = vrot.slane %v362, 7
        %v3083 = vsel %vm3054, %v3080, %v3082
        %v3084 = vrot.slane %v363, 7
        %v3085 = vsel %vm3054, %v3082, %v3084
        %v3086 = vrot.slane %v364, 7
        %v3087 = vsel %vm3054, %v3084, %v3086
        %v3088 = vrot.slane %v365, 7
        %v3089 = vsel %vm3054, %v3086, %v3088
        %v3090 = vrot.slane %v366, 7
        %v3091 = vsel %vm3054, %v3088, %v3090
        %v3092 = vrot.slane %v367, 7
        %v3093 = vsel %vm3054, %v3090, %v3092
        %v3094 = vrot.slane %v368, 7
        %v3095 = vsel %vm3054, %v3092, %v3094
        %v3096 = vrot.slane %v369, 7
        %v3097 = vsel %vm3054, %v3094, %v3096
        %v3098 = vrot.slane %v370, 7
        %v3099 = vsel %vm3054, %v3096, %v3098
        %v3100 = vrot.slane %v371, 7
        %v3101 = vsel %vm3054, %v3098, %v3100
        %v3102 = vrot.slane %v372, 7
        %v3103 = vsel %vm3054, %v3100, %v3102
        %v3104 = vrot.slane %v373, 7
        %v3105 = vsel %vm3054, %v3102, %v3104
        %v3106 = vrot.slane %v374, 7
        %v3107 = vsel %vm3054, %v3104, %v3106
        %v3108 = vrot.slane %v375, 7
        %v3109 = vsel %vm3054, %v3106, %v3108
        %v3110 = vrot.slane %v376, 7
        %v3111 = vsel %vm3054, %v3108, %v3110
        %v3112 = vrot.slane %v377, 7
        %v3113 = vsel %vm3054, %v3110, %v3112
        %v3114 = vrot.slane %v378, 7
        %v3115 = vsel %vm3054, %v3112, %v3114
        %v3116 = vrot.slane %v379, 7
        %v3117 = vsel %vm3054, %v3114, %v3116
        %v3118 = vrot.slane %v380, 7
        %v3119 = vsel %vm3054, %v3116, %v3118
        %v3120 = vsel %vm486, %v3057, 0
        %v3122 = vsel %vm486, %v3059, 0
        %v3124 = vsel %vm486, %v3061, 0
        %v3126 = vsel %vm486, %v3063, 0
        %v3128 = vsel %vm486, %v3065, 0
        %v3130 = vsel %vm486, %v3067, 0
        %v3132 = vsel %vm486, %v3069, 0
        %v3134 = vsel %vm486, %v3071, 0
        %v3136 = vsel %vm486, %v3073, 0
        %v3138 = vsel %vm486, %v3075, 0
        %v3140 = vsel %vm486, %v3077, 0
        %v3142 = vsel %vm486, %v3079, 0
        %v3144 = vsel %vm486, %v3081, 0
        %v3146 = vsel %vm486, %v3083, 0
        %v3148 = vsel %vm486, %v3085, 0
        %v3150 = vsel %vm486, %v3087, 0
        %v3152 = vsel %vm486, %v3089, 0
        %v3154 = vsel %vm486, %v3091, 0
        %v3156 = vsel %vm486, %v3093, 0
        %v3158 = vsel %vm486, %v3095, 0
        %v3160 = vsel %vm486, %v3097, 0
        %v3162 = vsel %vm486, %v3099, 0
        %v3164 = vsel %vm486, %v3101, 0
        %v3166 = vsel %vm486, %v3103, 0
        %v3168 = vsel %vm486, %v3105, 0
        %v3170 = vsel %vm486, %v3107, 0
        %v3172 = vsel %vm486, %v3109, 0
        %v3174 = vsel %vm486, %v3111, 0
        %v3176 = vsel %vm486, %v3113, 0
        %v3178 = vsel %vm486, %v3115, 0
        %v3180 = vsel %vm486, %v3117, 0
        %v3182 = vsel %vm486, %v3119, 0
        %v3185 = vsel %vm551, %v3050, 0
        %3187 = vmatprep.subr.mxu0 0.0
        %3188 = vmatpush1.msra.mxu0 %v3185
        %3189 = vmatprep.subr.mxu0 0.0
        %3190 = vmatpush1.msra.mxu0 0.0
        %3191 = vmatprep.subr.mxu0 0.0
        %3192 = vmatpush1.msra.mxu0 0.0
        %3193 = vmatprep.subr.mxu0 0.0
        %3194 = vmatpush1.msra.mxu0 0.0
        %3195 = vmatprep.subr.mxu0 0.0
        %3196 = vmatpush1.msra.mxu0 0.0
        %3197 = vmatprep.subr.mxu0 0.0
        %3198 = vmatpush1.msra.mxu0 0.0
        %3199 = vmatprep.subr.mxu0 0.0
        %3200 = vmatpush1.msra.mxu0 0.0
        %3201 = vmatprep.subr.mxu0 0.0
        %3202 = vmatpush1.msra.mxu0 0.0
        %3203 = vmatprep.subr.mxu0 0.0
        %3204 = vmatpush1.msra.mxu0 0.0
        %3205 = vmatprep.subr.mxu0 0.0
        %3206 = vmatpush1.msra.mxu0 0.0
        %3207 = vmatprep.subr.mxu0 0.0
        %3208 = vmatpush1.msra.mxu0 0.0
        %3209 = vmatprep.subr.mxu0 0.0
        %3210 = vmatpush1.msra.mxu0 0.0
        %3211 = vmatprep.subr.mxu0 0.0
        %3212 = vmatpush1.msra.mxu0 0.0
        %3213 = vmatprep.subr.mxu0 0.0
        %3214 = vmatpush1.msra.mxu0 0.0
        %3215 = vmatprep.subr.mxu0 0.0
        %3216 = vmatpush1.msra.mxu0 0.0
        %3217 = vmatprep.subr.mxu0 0.0
        %3218 = vmatpush1.msra.mxu0 0.0
        %3219 = vmatprep.subr.mxu0 0.0
        %3220 = vmatpush1.msra.mxu0 0.0
        %3221 = vmatprep.subr.mxu0 0.0
        %3222 = vmatpush1.msra.mxu0 0.0
        %3223 = vmatprep.subr.mxu0 0.0
        %3224 = vmatpush1.msra.mxu0 0.0
        %3225 = vmatprep.subr.mxu0 0.0
        %3226 = vmatpush1.msra.mxu0 0.0
        %3227 = vmatprep.subr.mxu0 0.0
        %3228 = vmatpush1.msra.mxu0 0.0
        %3229 = vmatprep.subr.mxu0 0.0
        %3230 = vmatpush1.msra.mxu0 0.0
        %3231 = vmatprep.subr.mxu0 0.0
        %3232 = vmatpush1.msra.mxu0 0.0
        %3233 = vmatprep.subr.mxu0 0.0
        %3234 = vmatpush1.msra.mxu0 0.0
        %3235 = vmatprep.subr.mxu0 0.0
        %3236 = vmatpush1.msra.mxu0 0.0
        %3237 = vmatprep.subr.mxu0 0.0
        %3238 = vmatpush1.msra.mxu0 0.0
        %3239 = vmatprep.subr.mxu0 0.0
        %3240 = vmatpush1.msra.mxu0 0.0
        %3241 = vmatprep.subr.mxu0 0.0
        %3242 = vmatpush1.msra.mxu0 0.0
        %3243 = vmatprep.subr.mxu0 0.0
        %3244 = vmatpush1.msra.mxu0 0.0
        %3245 = vmatprep.subr.mxu0 0.0
        %3246 = vmatpush1.msra.mxu0 0.0
        %3247 = vmatprep.subr.mxu0 0.0
        %3248 = vmatpush1.msra.mxu0 0.0
        %3249 = vmatprep.subr.mxu0 0.0
        %3250 = vmatpush1.msra.mxu0 0.0
        %3251 = vmatprep.mubr.f32.mxu0 0.0
        %3252 = vmatmul.mubr.f32.gmra.mrb[0].mxu0 %v3120
        %v3253 = vpop.f32.mrb[0].mxu0
        %v3254 = vadd.f32 0.0, %v3253
        %v3255 = vpop.f32.mrb[0].mxu0
        %3256 = vmatprep.mubr.f32.mxu0 0.0
        %3257 = vmatmul.mubr.f32.gmra.mrb[0].mxu0 %v3122
        %v3258 = vpop.f32.mrb[0].mxu0
        %v3259 = vadd.f32 0.0, %v3258
        %v3260 = vpop.f32.mrb[0].mxu0
        %3261 = vmatprep.mubr.f32.mxu0 0.0
        %3262 = vmatmul.mubr.f32.gmra.mrb[0].mxu0 %v3124
        %v3263 = vpop.f32.mrb[0].mxu0
        %v3264 = vadd.f32 0.0, %v3263
        %v3265 = vpop.f32.mrb[0].mxu0
        %3266 = vmatprep.mubr.f32.mxu0 0.0
        %3267 = vmatmul.mubr.f32.gmra.mrb[0].mxu0 %v3126
        %v3268 = vpop.f32.mrb[0].mxu0
        %v3269 = vadd.f32 0.0, %v3268
        %v3270 = vpop.f32.mrb[0].mxu0
        %3271 = vmatprep.mubr.f32.mxu0 0.0
        %3272 = vmatmul.mubr.f32.gmra.mrb[0].mxu0 %v3128
        %v3273 = vpop.f32.mrb[0].mxu0
        %v3274 = vadd.f32 0.0, %v3273
        %v3275 = vpop.f32.mrb[0].mxu0
        %3276 = vmatprep.mubr.f32.mxu0 0.0
        %3277 = vmatmul.mubr.f32.gmra.mrb[0].mxu0 %v3130
        %v3278 = vpop.f32.mrb[0].mxu0
        %v3279 = vadd.f32 0.0, %v3278
        %v3280 = vpop.f32.mrb[0].mxu0
        %3281 = vmatprep.mubr.f32.mxu0 0.0
        %3282 = vmatmul.mubr.f32.gmra.mrb[0].mxu0 %v3132
        %v3283 = vpop.f32.mrb[0].mxu0
        %v3284 = vadd.f32 0.0, %v3283
        %v3285 = vpop.f32.mrb[0].mxu0
        %3286 = vmatprep.mubr.f32.mxu0 0.0
        %3287 = vmatmul.mubr.f32.gmra.mrb[0].mxu0 %v3134
        %v3288 = vpop.f32.mrb[0].mxu0
        %v3289 = vadd.f32 0.0, %v3288
        %v3290 = vpop.f32.mrb[0].mxu0
        %3291 = vmatprep.mubr.f32.mxu0 0.0
        %3292 = vmatmul.mubr.f32.gmra.mrb[0].mxu0 %v3136
        %v3293 = vpop.f32.mrb[0].mxu0
        %v3294 = vadd.f32 0.0, %v3293
        %v3295 = vpop.f32.mrb[0].mxu0
        %3296 = vmatprep.mubr.f32.mxu0 0.0
        %3297 = vmatmul.mubr.f32.gmra.mrb[0].mxu0 %v3138
        %v3298 = vpop.f32.mrb[0].mxu0
        %v3299 = vadd.f32 0.0, %v3298
        %v3300 = vpop.f32.mrb[0].mxu0
        %3301 = vmatprep.mubr.f32.mxu0 0.0
        %3302 = vmatmul.mubr.f32.gmra.mrb[0].mxu0 %v3140
        %v3303 = vpop.f32.mrb[0].mxu0
        %v3304 = vadd.f32 0.0, %v3303
        %v3305 = vpop.f32.mrb[0].mxu0
        %3306 = vmatprep.mubr.f32.mxu0 0.0
        %3307 = vmatmul.mubr.f32.gmra.mrb[0].mxu0 %v3142
        %v3308 = vpop.f32.mrb[0].mxu0
        %v3309 = vadd.f32 0.0, %v3308
        %v3310 = vpop.f32.mrb[0].mxu0
        %3311 = vmatprep.mubr.f32.mxu0 0.0
        %3312 = vmatmul.mubr.f32.gmra.mrb[0].mxu0 %v3144
        %v3313 = vpop.f32.mrb[0].mxu0
        %v3314 = vadd.f32 0.0, %v3313
        %v3315 = vpop.f32.mrb[0].mxu0
        %3316 = vmatprep.mubr.f32.mxu0 0.0
        %3317 = vmatmul.mubr.f32.gmra.mrb[0].mxu0 %v3146
        %v3318 = vpop.f32.mrb[0].mxu0
        %v3319 = vadd.f32 0.0, %v3318
        %v3320 = vpop.f32.mrb[0].mxu0
        %3321 = vmatprep.mubr.f32.mxu0 0.0
        %3322 = vmatmul.mubr.f32.gmra.mrb[0].mxu0 %v3148
        %v3323 = vpop.f32.mrb[0].mxu0
        %v3324 = vadd.f32 0.0, %v3323
        %v3325 = vpop.f32.mrb[0].mxu0
        %3326 = vmatprep.mubr.f32.mxu0 0.0
        %3327 = vmatmul.mubr.f32.gmra.mrb[0].mxu0 %v3150
        %v3328 = vpop.f32.mrb[0].mxu0
        %v3329 = vadd.f32 0.0, %v3328
        %v3330 = vpop.f32.mrb[0].mxu0
        %3331 = vmatprep.mubr.f32.mxu0 0.0
        %3332 = vmatmul.mubr.f32.gmra.mrb[0].mxu0 %v3152
        %v3333 = vpop.f32.mrb[0].mxu0
        %v3334 = vadd.f32 0.0, %v3333
        %v3335 = vpop.f32.mrb[0].mxu0
        %3336 = vmatprep.mubr.f32.mxu0 0.0
        %3337 = vmatmul.mubr.f32.gmra.mrb[0].mxu0 %v3154
        %v3338 = vpop.f32.mrb[0].mxu0
        %v3339 = vadd.f32 0.0, %v3338
        %v3340 = vpop.f32.mrb[0].mxu0
        %3341 = vmatprep.mubr.f32.mxu0 0.0
        %3342 = vmatmul.mubr.f32.gmra.mrb[0].mxu0 %v3156
        %v3343 = vpop.f32.mrb[0].mxu0
        %v3344 = vadd.f32 0.0, %v3343
        %v3345 = vpop.f32.mrb[0].mxu0
        %3346 = vmatprep.mubr.f32.mxu0 0.0
        %3347 = vmatmul.mubr.f32.gmra.mrb[0].mxu0 %v3158
        %v3348 = vpop.f32.mrb[0].mxu0
        %v3349 = vadd.f32 0.0, %v3348
        %v3350 = vpop.f32.mrb[0].mxu0
        %3351 = vmatprep.mubr.f32.mxu0 0.0
        %3352 = vmatmul.mubr.f32.gmra.mrb[0].mxu0 %v3160
        %v3353 = vpop.f32.mrb[0].mxu0
        %v3354 = vadd.f32 0.0, %v3353
        %v3355 = vpop.f32.mrb[0].mxu0
        %3356 = vmatprep.mubr.f32.mxu0 0.0
        %3357 = vmatmul.mubr.f32.gmra.mrb[0].mxu0 %v3162
        %v3358 = vpop.f32.mrb[0].mxu0
        %v3359 = vadd.f32 0.0, %v3358
        %v3360 = vpop.f32.mrb[0].mxu0
        %3361 = vmatprep.mubr.f32.mxu0 0.0
        %3362 = vmatmul.mubr.f32.gmra.mrb[0].mxu0 %v3164
        %v3363 = vpop.f32.mrb[0].mxu0
        %v3364 = vadd.f32 0.0, %v3363
        %v3365 = vpop.f32.mrb[0].mxu0
        %3366 = vmatprep.mubr.f32.mxu0 0.0
        %3367 = vmatmul.mubr.f32.gmra.mrb[0].mxu0 %v3166
        %v3368 = vpop.f32.mrb[0].mxu0
        %v3369 = vadd.f32 0.0, %v3368
        %v3370 = vpop.f32.mrb[0].mxu0
        %3371 = vmatprep.mubr.f32.mxu0 0.0
        %3372 = vmatmul.mubr.f32.gmra.mrb[0].mxu0 %v3168
        %v3373 = vpop.f32.mrb[0].mxu0
        %v3374 = vadd.f32 0.0, %v3373
        %v3375 = vpop.f32.mrb[0].mxu0
        %3376 = vmatprep.mubr.f32.mxu0 0.0
        %3377 = vmatmul.mubr.f32.gmra.mrb[0].mxu0 %v3170
        %v3378 = vpop.f32.mrb[0].mxu0
        %v3379 = vadd.f32 0.0, %v3378
        %v3380 = vpop.f32.mrb[0].mxu0
        %3381 = vmatprep.mubr.f32.mxu0 0.0
        %3382 = vmatmul.mubr.f32.gmra.mrb[0].mxu0 %v3172
        %v3383 = vpop.f32.mrb[0].mxu0
        %v3384 = vadd.f32 0.0, %v3383
        %v3385 = vpop.f32.mrb[0].mxu0
        %3386 = vmatprep.mubr.f32.mxu0 0.0
        %3387 = vmatmul.mubr.f32.gmra.mrb[0].mxu0 %v3174
        %v3388 = vpop.f32.mrb[0].mxu0
        %v3389 = vadd.f32 0.0, %v3388
        %v3390 = vpop.f32.mrb[0].mxu0
        %3391 = vmatprep.mubr.f32.mxu0 0.0
        %3392 = vmatmul.mubr.f32.gmra.mrb[0].mxu0 %v3176
        %v3393 = vpop.f32.mrb[0].mxu0
        %v3394 = vadd.f32 0.0, %v3393
        %v3395 = vpop.f32.mrb[0].mxu0
        %3396 = vmatprep.mubr.f32.mxu0 0.0
        %3397 = vmatmul.mubr.f32.gmra.mrb[0].mxu0 %v3178
        %v3398 = vpop.f32.mrb[0].mxu0
        %v3399 = vadd.f32 0.0, %v3398
        %v3400 = vpop.f32.mrb[0].mxu0
        %3401 = vmatprep.mubr.f32.mxu0 0.0
        %3402 = vmatmul.mubr.f32.gmra.mrb[0].mxu0 %v3180
        %v3403 = vpop.f32.mrb[0].mxu0
        %v3404 = vadd.f32 0.0, %v3403
        %v3405 = vpop.f32.mrb[0].mxu0
        %3406 = vmatprep.mubr.f32.mxu0 0.0
        %3407 = vmatmul.mubr.f32.gmra.mrb[0].mxu0 %v3182
        %v3408 = vpop.f32.mrb[0].mxu0
        %v3409 = vadd.f32 0.0, %v3408
        %v3410 = vpop.f32.mrb[0].mxu0
        %3411 = vdwg.mxu0
        %v3412 = vadd.f32 %v3017, %v3254
        %v3413 = vadd.f32 %v3018, %v3259
        %v3414 = vadd.f32 %v3019, %v3264
        %v3415 = vadd.f32 %v3020, %v3269
        %v3416 = vadd.f32 %v3021, %v3274
        %v3417 = vadd.f32 %v3022, %v3279
        %v3418 = vadd.f32 %v3023, %v3284
        %v3419 = vadd.f32 %v3024, %v3289
        %v3420 = vadd.f32 %v3025, %v3294
        %v3421 = vadd.f32 %v3026, %v3299
        %v3422 = vadd.f32 %v3027, %v3304
        %v3423 = vadd.f32 %v3028, %v3309
        %v3424 = vadd.f32 %v3029, %v3314
        %v3425 = vadd.f32 %v3030, %v3319
        %v3426 = vadd.f32 %v3031, %v3324
        %v3427 = vadd.f32 %v3032, %v3329
        %v3428 = vadd.f32 %v3033, %v3334
        %v3429 = vadd.f32 %v3034, %v3339
        %v3430 = vadd.f32 %v3035, %v3344
        %v3431 = vadd.f32 %v3036, %v3349
        %v3432 = vadd.f32 %v3037, %v3354
        %v3433 = vadd.f32 %v3038, %v3359
        %v3434 = vadd.f32 %v3039, %v3364
        %v3435 = vadd.f32 %v3040, %v3369
        %v3436 = vadd.f32 %v3041, %v3374
        %v3437 = vadd.f32 %v3042, %v3379
        %v3438 = vadd.f32 %v3043, %v3384
        %v3439 = vadd.f32 %v3044, %v3389
        %v3440 = vadd.f32 %v3045, %v3394
        %v3441 = vadd.f32 %v3046, %v3399
        %v3442 = vadd.f32 %v3047, %v3404
        %v3443 = vadd.f32 %v3048, %v3409
        %s3444 = scalar_lea.vmem [#allocation7], 32
        %v3445 = vld [vmem:[%s3444] sm:$0xf]
        %v3446 = vsel %vm486, %v359, 0
        %v3448 = vsel %vm486, %v360, 0
        %v3450 = vsel %vm486, %v361, 0
        %v3452 = vsel %vm486, %v362, 0
        %v3454 = vsel %vm486, %v363, 0
        %v3456 = vsel %vm486, %v364, 0
        %v3458 = vsel %vm486, %v365, 0
        %v3460 = vsel %vm486, %v366, 0
        %v3462 = vsel %vm486, %v367, 0
        %v3464 = vsel %vm486, %v368, 0
        %v3466 = vsel %vm486, %v369, 0
        %v3468 = vsel %vm486, %v370, 0
        %v3470 = vsel %vm486, %v371, 0
        %v3472 = vsel %vm486, %v372, 0
        %v3474 = vsel %vm486, %v373, 0
        %v3476 = vsel %vm486, %v374, 0
        %v3478 = vsel %vm486, %v375, 0
        %v3480 = vsel %vm486, %v376, 0
        %v3482 = vsel %vm486, %v377, 0
        %v3484 = vsel %vm486, %v378, 0
        %v3486 = vsel %vm486, %v379, 0
        %v3488 = vsel %vm486, %v380, 0
        %v3491 = vsel %vm486, %v381, 0
        %v3494 = vsel %vm486, %v382, 0
        %v3497 = vsel %vm486, %v383, 0
        %v3500 = vsel %vm551, %v3445, 0
        %3502 = vmatprep.subr.mxu0 0.0
        %3503 = vmatpush1.msra.mxu0 %v3500
        %3504 = vmatprep.subr.mxu0 0.0
        %3505 = vmatpush1.msra.mxu0 0.0
        %3506 = vmatprep.subr.mxu0 0.0
        %3507 = vmatpush1.msra.mxu0 0.0
        %3508 = vmatprep.subr.mxu0 0.0
        %3509 = vmatpush1.msra.mxu0 0.0
        %3510 = vmatprep.subr.mxu0 0.0
        %3511 = vmatpush1.msra.mxu0 0.0
        %3512 = vmatprep.subr.mxu0 0.0
        %3513 = vmatpush1.msra.mxu0 0.0
        %3514 = vmatprep.subr.mxu0 0.0
        %3515 = vmatpush1.msra.mxu0 0.0
        %3516 = vmatprep.subr.mxu0 0.0
        %3517 = vmatpush1.msra.mxu0 0.0
        %3518 = vmatprep.subr.mxu0 0.0
        %3519 = vmatpush1.msra.mxu0 0.0
        %3520 = vmatprep.subr.mxu0 0.0
        %3521 = vmatpush1.msra.mxu0 0.0
        %3522 = vmatprep.subr.mxu0 0.0
        %3523 = vmatpush1.msra.mxu0 0.0
        %3524 = vmatprep.subr.mxu0 0.0
        %3525 = vmatpush1.msra.mxu0 0.0
        %3526 = vmatprep.subr.mxu0 0.0
        %3527 = vmatpush1.msra.mxu0 0.0
        %3528 = vmatprep.subr.mxu0 0.0
        %3529 = vmatpush1.msra.mxu0 0.0
        %3530 = vmatprep.subr.mxu0 0.0
        %3531 = vmatpush1.msra.mxu0 0.0
        %3532 = vmatprep.subr.mxu0 0.0
        %3533 = vmatpush1.msra.mxu0 0.0
        %3534 = vmatprep.subr.mxu0 0.0
        %3535 = vmatpush1.msra.mxu0 0.0
        %3536 = vmatprep.subr.mxu0 0.0
        %3537 = vmatpush1.msra.mxu0 0.0
        %3538 = vmatprep.subr.mxu0 0.0
        %3539 = vmatpush1.msra.mxu0 0.0
        %3540 = vmatprep.subr.mxu0 0.0
        %3541 = vmatpush1.msra.mxu0 0.0
        %3542 = vmatprep.subr.mxu0 0.0
        %3543 = vmatpush1.msra.mxu0 0.0
        %3544 = vmatprep.subr.mxu0 0.0
        %3545 = vmatpush1.msra.mxu0 0.0
        %3546 = vmatprep.subr.mxu0 0.0
        %3547 = vmatpush1.msra.mxu0 0.0
        %3548 = vmatprep.subr.mxu0 0.0
        %3549 = vmatpush1.msra.mxu0 0.0
        %3550 = vmatprep.subr.mxu0 0.0
        %3551 = vmatpush1.msra.mxu0 0.0
        %3552 = vmatprep.subr.mxu0 0.0
        %3553 = vmatpush1.msra.mxu0 0.0
        %3554 = vmatprep.subr.mxu0 0.0
        %3555 = vmatpush1.msra.mxu0 0.0
        %3556 = vmatprep.subr.mxu0 0.0
        %3557 = vmatpush1.msra.mxu0 0.0
        %3558 = vmatprep.subr.mxu0 0.0
        %3559 = vmatpush1.msra.mxu0 0.0
        %3560 = vmatprep.subr.mxu0 0.0
        %3561 = vmatpush1.msra.mxu0 0.0
        %3562 = vmatprep.subr.mxu0 0.0
        %3563 = vmatpush1.msra.mxu0 0.0
        %3564 = vmatprep.subr.mxu0 0.0
        %3565 = vmatpush1.msra.mxu0 0.0
        %3566 = vmatprep.mubr.f32.mxu0 0.0
        %3567 = vmatmul.mubr.f32.gmra.mrb[0].mxu0 %v833
        %v3568 = vpop.f32.mrb[0].mxu0
        %v3569 = vadd.f32 0.0, %v3568
        %v3570 = vpop.f32.mrb[0].mxu0
        %3571 = vmatprep.mubr.f32.mxu0 0.0
        %3572 = vmatmul.mubr.f32.gmra.mrb[0].mxu0 %v835
        %v3573 = vpop.f32.mrb[0].mxu0
        %v3574 = vadd.f32 0.0, %v3573
        %v3575 = vpop.f32.mrb[0].mxu0
        %3576 = vmatprep.mubr.f32.mxu0 0.0
        %3577 = vmatmul.mubr.f32.gmra.mrb[0].mxu0 %v837
        %v3578 = vpop.f32.mrb[0].mxu0
        %v3579 = vadd.f32 0.0, %v3578
        %v3580 = vpop.f32.mrb[0].mxu0
        %3581 = vmatprep.mubr.f32.mxu0 0.0
        %3582 = vmatmul.mubr.f32.gmra.mrb[0].mxu0 %v839
        %v3583 = vpop.f32.mrb[0].mxu0
        %v3584 = vadd.f32 0.0, %v3583
        %v3585 = vpop.f32.mrb[0].mxu0
        %3586 = vmatprep.mubr.f32.mxu0 0.0
        %3587 = vmatmul.mubr.f32.gmra.mrb[0].mxu0 %v841
        %v3588 = vpop.f32.mrb[0].mxu0
        %v3589 = vadd.f32 0.0, %v3588
        %v3590 = vpop.f32.mrb[0].mxu0
        %3591 = vmatprep.mubr.f32.mxu0 0.0
        %3592 = vmatmul.mubr.f32.gmra.mrb[0].mxu0 %v843
        %v3593 = vpop.f32.mrb[0].mxu0
        %v3594 = vadd.f32 0.0, %v3593
        %v3595 = vpop.f32.mrb[0].mxu0
        %3596 = vmatprep.mubr.f32.mxu0 0.0
        %3597 = vmatmul.mubr.f32.gmra.mrb[0].mxu0 %v845
        %v3598 = vpop.f32.mrb[0].mxu0
        %v3599 = vadd.f32 0.0, %v3598
        %v3600 = vpop.f32.mrb[0].mxu0
        %3601 = vmatprep.mubr.f32.mxu0 0.0
        %3602 = vmatmul.mubr.f32.gmra.mrb[0].mxu0 %v3446
        %v3603 = vpop.f32.mrb[0].mxu0
        %v3604 = vadd.f32 0.0, %v3603
        %v3605 = vpop.f32.mrb[0].mxu0
        %3606 = vmatprep.mubr.f32.mxu0 0.0
        %3607 = vmatmul.mubr.f32.gmra.mrb[0].mxu0 %v3448
        %v3608 = vpop.f32.mrb[0].mxu0
        %v3609 = vadd.f32 0.0, %v3608
        %v3610 = vpop.f32.mrb[0].mxu0
        %3611 = vmatprep.mubr.f32.mxu0 0.0
        %3612 = vmatmul.mubr.f32.gmra.mrb[0].mxu0 %v3450
        %v3613 = vpop.f32.mrb[0].mxu0
        %v3614 = vadd.f32 0.0, %v3613
        %v3615 = vpop.f32.mrb[0].mxu0
        %3616 = vmatprep.mubr.f32.mxu0 0.0
        %3617 = vmatmul.mubr.f32.gmra.mrb[0].mxu0 %v3452
        %v3618 = vpop.f32.mrb[0].mxu0
        %v3619 = vadd.f32 0.0, %v3618
        %v3620 = vpop.f32.mrb[0].mxu0
        %3621 = vmatprep.mubr.f32.mxu0 0.0
        %3622 = vmatmul.mubr.f32.gmra.mrb[0].mxu0 %v3454
        %v3623 = vpop.f32.mrb[0].mxu0
        %v3624 = vadd.f32 0.0, %v3623
        %v3625 = vpop.f32.mrb[0].mxu0
        %3626 = vmatprep.mubr.f32.mxu0 0.0
        %3627 = vmatmul.mubr.f32.gmra.mrb[0].mxu0 %v3456
        %v3628 = vpop.f32.mrb[0].mxu0
        %v3629 = vadd.f32 0.0, %v3628
        %v3630 = vpop.f32.mrb[0].mxu0
        %3631 = vmatprep.mubr.f32.mxu0 0.0
        %3632 = vmatmul.mubr.f32.gmra.mrb[0].mxu0 %v3458
        %v3633 = vpop.f32.mrb[0].mxu0
        %v3634 = vadd.f32 0.0, %v3633
        %v3635 = vpop.f32.mrb[0].mxu0
        %3636 = vmatprep.mubr.f32.mxu0 0.0
        %3637 = vmatmul.mubr.f32.gmra.mrb[0].mxu0 %v3460
        %v3638 = vpop.f32.mrb[0].mxu0
        %v3639 = vadd.f32 0.0, %v3638
        %v3640 = vpop.f32.mrb[0].mxu0
        %3641 = vmatprep.mubr.f32.mxu0 0.0
        %3642 = vmatmul.mubr.f32.gmra.mrb[0].mxu0 %v3462
        %v3643 = vpop.f32.mrb[0].mxu0
        %v3644 = vadd.f32 0.0, %v3643
        %v3645 = vpop.f32.mrb[0].mxu0
        %3646 = vmatprep.mubr.f32.mxu0 0.0
        %3647 = vmatmul.mubr.f32.gmra.mrb[0].mxu0 %v3464
        %v3648 = vpop.f32.mrb[0].mxu0
        %v3649 = vadd.f32 0.0, %v3648
        %v3650 = vpop.f32.mrb[0].mxu0
        %3651 = vmatprep.mubr.f32.mxu0 0.0
        %3652 = vmatmul.mubr.f32.gmra.mrb[0].mxu0 %v3466
        %v3653 = vpop.f32.mrb[0].mxu0
        %v3654 = vadd.f32 0.0, %v3653
        %v3655 = vpop.f32.mrb[0].mxu0
        %3656 = vmatprep.mubr.f32.mxu0 0.0
        %3657 = vmatmul.mubr.f32.gmra.mrb[0].mxu0 %v3468
        %v3658 = vpop.f32.mrb[0].mxu0
        %v3659 = vadd.f32 0.0, %v3658
        %v3660 = vpop.f32.mrb[0].mxu0
        %3661 = vmatprep.mubr.f32.mxu0 0.0
        %3662 = vmatmul.mubr.f32.gmra.mrb[0].mxu0 %v3470
        %v3663 = vpop.f32.mrb[0].mxu0
        %v3664 = vadd.f32 0.0, %v3663
        %v3665 = vpop.f32.mrb[0].mxu0
        %3666 = vmatprep.mubr.f32.mxu0 0.0
        %3667 = vmatmul.mubr.f32.gmra.mrb[0].mxu0 %v3472
        %v3668 = vpop.f32.mrb[0].mxu0
        %v3669 = vadd.f32 0.0, %v3668
        %v3670 = vpop.f32.mrb[0].mxu0
        %3671 = vmatprep.mubr.f32.mxu0 0.0
        %3672 = vmatmul.mubr.f32.gmra.mrb[0].mxu0 %v3474
        %v3673 = vpop.f32.mrb[0].mxu0
        %v3674 = vadd.f32 0.0, %v3673
        %v3675 = vpop.f32.mrb[0].mxu0
        %3676 = vmatprep.mubr.f32.mxu0 0.0
        %3677 = vmatmul.mubr.f32.gmra.mrb[0].mxu0 %v3476
        %v3678 = vpop.f32.mrb[0].mxu0
        %v3679 = vadd.f32 0.0, %v3678
        %v3680 = vpop.f32.mrb[0].mxu0
        %3681 = vmatprep.mubr.f32.mxu0 0.0
        %3682 = vmatmul.mubr.f32.gmra.mrb[0].mxu0 %v3478
        %v3683 = vpop.f32.mrb[0].mxu0
        %v3684 = vadd.f32 0.0, %v3683
        %v3685 = vpop.f32.mrb[0].mxu0
        %3686 = vmatprep.mubr.f32.mxu0 0.0
        %3687 = vmatmul.mubr.f32.gmra.mrb[0].mxu0 %v3480
        %v3688 = vpop.f32.mrb[0].mxu0
        %v3689 = vadd.f32 0.0, %v3688
        %v3690 = vpop.f32.mrb[0].mxu0
        %3691 = vmatprep.mubr.f32.mxu0 0.0
        %3692 = vmatmul.mubr.f32.gmra.mrb[0].mxu0 %v3482
        %v3693 = vpop.f32.mrb[0].mxu0
        %v3694 = vadd.f32 0.0, %v3693
        %v3695 = vpop.f32.mrb[0].mxu0
        %3696 = vmatprep.mubr.f32.mxu0 0.0
        %3697 = vmatmul.mubr.f32.gmra.mrb[0].mxu0 %v3484
        %v3698 = vpop.f32.mrb[0].mxu0
        %v3699 = vadd.f32 0.0, %v3698
        %v3700 = vpop.f32.mrb[0].mxu0
        %3701 = vmatprep.mubr.f32.mxu0 0.0
        %3702 = vmatmul.mubr.f32.gmra.mrb[0].mxu0 %v3486
        %v3703 = vpop.f32.mrb[0].mxu0
        %v3704 = vadd.f32 0.0, %v3703
        %v3705 = vpop.f32.mrb[0].mxu0
        %3706 = vmatprep.mubr.f32.mxu0 0.0
        %3707 = vmatmul.mubr.f32.gmra.mrb[0].mxu0 %v3488
        %v3708 = vpop.f32.mrb[0].mxu0
        %v3709 = vadd.f32 0.0, %v3708
        %v3710 = vpop.f32.mrb[0].mxu0
        %3711 = vmatprep.mubr.f32.mxu0 0.0
        %3712 = vmatmul.mubr.f32.gmra.mrb[0].mxu0 %v3491
        %v3713 = vpop.f32.mrb[0].mxu0
        %v3714 = vadd.f32 0.0, %v3713
        %v3715 = vpop.f32.mrb[0].mxu0
        %3716 = vmatprep.mubr.f32.mxu0 0.0
        %3717 = vmatmul.mubr.f32.gmra.mrb[0].mxu0 %v3494
        %v3718 = vpop.f32.mrb[0].mxu0
        %v3719 = vadd.f32 0.0, %v3718
        %v3720 = vpop.f32.mrb[0].mxu0
        %3721 = vmatprep.mubr.f32.mxu0 0.0
        %3722 = vmatmul.mubr.f32.gmra.mrb[0].mxu0 %v3497
        %v3723 = vpop.f32.mrb[0].mxu0
        %v3724 = vadd.f32 0.0, %v3723
        %v3725 = vpop.f32.mrb[0].mxu0
        %3726 = vdwg.mxu0
        %v3727 = vadd.f32 %v3412, %v3569
        %v3728 = vadd.f32 %v3413, %v3574
        %v3729 = vadd.f32 %v3414, %v3579
        %v3730 = vadd.f32 %v3415, %v3584
        %v3731 = vadd.f32 %v3416, %v3589
        %v3732 = vadd.f32 %v3417, %v3594
        %v3733 = vadd.f32 %v3418, %v3599
        %v3734 = vadd.f32 %v3419, %v3604
        %v3735 = vadd.f32 %v3420, %v3609
        %v3736 = vadd.f32 %v3421, %v3614
        %v3737 = vadd.f32 %v3422, %v3619
        %v3738 = vadd.f32 %v3423, %v3624
        %v3739 = vadd.f32 %v3424, %v3629
        %v3740 = vadd.f32 %v3425, %v3634
        %v3741 = vadd.f32 %v3426, %v3639
        %v3742 = vadd.f32 %v3427, %v3644
        %v3743 = vadd.f32 %v3428, %v3649
        %v3744 = vadd.f32 %v3429, %v3654
        %v3745 = vadd.f32 %v3430, %v3659
        %v3746 = vadd.f32 %v3431, %v3664
        %v3747 = vadd.f32 %v3432, %v3669
        %v3748 = vadd.f32 %v3433, %v3674
        %v3749 = vadd.f32 %v3434, %v3679
        %v3750 = vadd.f32 %v3435, %v3684
        %v3751 = vadd.f32 %v3436, %v3689
        %v3752 = vadd.f32 %v3437, %v3694
        %v3753 = vadd.f32 %v3438, %v3699
        %v3754 = vadd.f32 %v3439, %v3704
        %v3755 = vadd.f32 %v3440, %v3709
        %v3756 = vadd.f32 %v3441, %v3714
        %v3757 = vadd.f32 %v3442, %v3719
        %v3758 = vadd.f32 %v3443, %v3724
        %v3760 = vlaneseq
        %v3761 = vshrl.u32 %v3760, 7
        %v3762 = vsub.s32 0, %v3761
        %v3763 = vrot.slane %v326, %v3762
        %v3765 = vadd.f32 %v3727, %v3763
        %v3766 = vadd.f32 %v3728, %v3763
        %v3767 = vadd.f32 %v3729, %v3763
        %v3768 = vadd.f32 %v3730, %v3763
        %v3769 = vadd.f32 %v3731, %v3763
        %v3770 = vadd.f32 %v3732, %v3763
        %v3771 = vadd.f32 %v3733, %v3763
        %v3772 = vadd.f32 %v3734, %v3763
        %v3773 = vadd.f32 %v3735, %v3763
        %v3774 = vadd.f32 %v3736, %v3763
        %v3775 = vadd.f32 %v3737, %v3763
        %v3776 = vadd.f32 %v3738, %v3763
        %v3777 = vadd.f32 %v3739, %v3763
        %v3778 = vadd.f32 %v3740, %v3763
        %v3779 = vadd.f32 %v3741, %v3763
        %v3780 = vadd.f32 %v3742, %v3763
        %v3781 = vadd.f32 %v3743, %v3763
        %v3782 = vadd.f32 %v3744, %v3763
        %v3783 = vadd.f32 %v3745, %v3763
        %v3784 = vadd.f32 %v3746, %v3763
        %v3785 = vadd.f32 %v3747, %v3763
        %v3786 = vadd.f32 %v3748, %v3763
        %v3787 = vadd.f32 %v3749, %v3763
        %v3788 = vadd.f32 %v3750, %v3763
        %v3789 = vadd.f32 %v3751, %v3763
        %v3790 = vadd.f32 %v3752, %v3763
        %v3791 = vadd.f32 %v3753, %v3763
        %v3792 = vadd.f32 %v3754, %v3763
        %v3793 = vadd.f32 %v3755, %v3763
        %v3794 = vadd.f32 %v3756, %v3763
        %v3795 = vadd.f32 %v3757, %v3763
        %v3796 = vadd.f32 %v3758, %v3763
        %3797 = vst [vmem:[%s316] sm:$0xff] %v3765
        %3798 = vst [vmem:[%s316 + $0x8] sm:$0xff] %v3766
        %3799 = vst [vmem:[%s316 + $0x10] sm:$0xff] %v3767
        %3800 = vst [vmem:[%s316 + $0x18] sm:$0xff] %v3768
        %3801 = vst [vmem:[%s316 + $0x20] sm:$0xff] %v3769
        %3802 = vst [vmem:[%s316 + $0x28] sm:$0xff] %v3770
        %3803 = vst [vmem:[%s316 + $0x30] sm:$0xff] %v3771
        %3804 = vst [vmem:[%s316 + $0x38] sm:$0xff] %v3772
        %3805 = vst [vmem:[%s316 + $0x40] sm:$0xff] %v3773
        %3806 = vst [vmem:[%s316 + $0x48] sm:$0xff] %v3774
        %3807 = vst [vmem:[%s316 + $0x50] sm:$0xff] %v3775
        %3808 = vst [vmem:[%s316 + $0x58] sm:$0xff] %v3776
        %3809 = vst [vmem:[%s316 + $0x60] sm:$0xff] %v3777
        %3810 = vst [vmem:[%s316 + $0x68] sm:$0xff] %v3778
        %3811 = vst [vmem:[%s316 + $0x70] sm:$0xff] %v3779
        %3812 = vst [vmem:[%s316 + $0x78] sm:$0xff] %v3780
        %3813 = vst [vmem:[%s316 + $0x80] sm:$0xff] %v3781
        %3814 = vst [vmem:[%s316 + $0x88] sm:$0xff] %v3782
        %3815 = vst [vmem:[%s316 + $0x90] sm:$0xff] %v3783
        %3816 = vst [vmem:[%s316 + $0x98] sm:$0xff] %v3784
        %3817 = vst [vmem:[%s316 + $0xa0] sm:$0xff] %v3785
        %3818 = vst [vmem:[%s316 + $0xa8] sm:$0xff] %v3786
        %3819 = vst [vmem:[%s316 + $0xb0] sm:$0xff] %v3787
        %3820 = vst [vmem:[%s316 + $0xb8] sm:$0xff] %v3788
        %3821 = vst [vmem:[%s316 + $0xc0] sm:$0xff] %v3789
        %3822 = vst [vmem:[%s316 + $0xc8] sm:$0xff] %v3790
        %3823 = vst [vmem:[%s316 + $0xd0] sm:$0xff] %v3791
        %3824 = vst [vmem:[%s316 + $0xd8] sm:$0xff] %v3792
        %3825 = vst [vmem:[%s316 + $0xe0] sm:$0xff] %v3793
        %3826 = vst [vmem:[%s316 + $0xe8] sm:$0xff] %v3794
        %3827 = vst [vmem:[%s316 + $0xf0] sm:$0xff] %v3795
        %3828 = vst [vmem:[%s316 + $0xf8] sm:$0xff] %v3796
        %v3829 = vld [vmem:[%s270 + $0x100] sm:$0xff]
        %v3830 = vld [vmem:[%s270 + $0x108] sm:$0xff]
        %v3831 = vld [vmem:[%s270 + $0x110] sm:$0xff]
        %v3832 = vld [vmem:[%s270 + $0x118] sm:$0xff]
        %v3833 = vld [vmem:[%s270 + $0x120] sm:$0xff]
        %v3834 = vld [vmem:[%s270 + $0x128] sm:$0xff]
        %v3835 = vld [vmem:[%s270 + $0x130] sm:$0xff]
        %v3836 = vld [vmem:[%s270 + $0x138] sm:$0xff]
        %v3837 = vld [vmem:[%s270 + $0x140] sm:$0xff]
        %v3838 = vld [vmem:[%s270 + $0x148] sm:$0xff]
        %v3839 = vld [vmem:[%s270 + $0x150] sm:$0xff]
        %v3840 = vld [vmem:[%s270 + $0x158] sm:$0xff]
        %v3841 = vld [vmem:[%s270 + $0x160] sm:$0xff]
        %v3842 = vld [vmem:[%s270 + $0x168] sm:$0xff]
        %v3843 = vld [vmem:[%s270 + $0x170] sm:$0xff]
        %v3844 = vld [vmem:[%s270 + $0x178] sm:$0xff]
        %v3845 = vld [vmem:[%s270 + $0x180] sm:$0xff]
        %v3846 = vld [vmem:[%s270 + $0x188] sm:$0xff]
        %v3847 = vld [vmem:[%s279] sm:$0xff]
        %v3848 = vld [vmem:[%s279 + $0x8] sm:$0xff]
        %v3849 = vld [vmem:[%s279 + $0x10] sm:$0xff]
        %v3850 = vld [vmem:[%s279 + $0x18] sm:$0xff]
        %v3851 = vld [vmem:[%s279 + $0x20] sm:$0xff]
        %v3852 = vld [vmem:[%s279 + $0x28] sm:$0xff]
        %v3853 = vld [vmem:[%s279 + $0x30] sm:$0xff]
        %v3854 = vld [vmem:[%s279 + $0x38] sm:$0xff]
        %v3855 = vld [vmem:[%s279 + $0x40] sm:$0xff]
        %v3856 = vld [vmem:[%s279 + $0x48] sm:$0xff]
        %v3857 = vld [vmem:[%s279 + $0x50] sm:$0xff]
        %v3858 = vld [vmem:[%s279 + $0x58] sm:$0xff]
        %v3859 = vld [vmem:[%s279 + $0x60] sm:$0xff]
        %v3860 = vld [vmem:[%s279 + $0x68] sm:$0xff]
        %v3861 = vld [vmem:[%s279 + $0x70] sm:$0xff]
        %v3862 = vld [vmem:[%s279 + $0x78] sm:$0xff]
        %v3863 = vld [vmem:[%s279 + $0x80] sm:$0xff]
        %v3864 = vld [vmem:[%s279 + $0x88] sm:$0xff]
        %v3865 = vld [vmem:[%s279 + $0x90] sm:$0xff]
        %v3866 = vld [vmem:[%s279 + $0x98] sm:$0xff]
        %v3867 = vld [vmem:[%s279 + $0xa0] sm:$0xff]
        %v3868 = vld [vmem:[%s279 + $0xa8] sm:$0xff]
        %v3869 = vld [vmem:[%s279 + $0xb0] sm:$0xff]
        %v3870 = vld [vmem:[%s279 + $0xb8] sm:$0xff]
        %v3871 = vld [vmem:[%s279 + $0xc0] sm:$0xff]
        %v3872 = vld [vmem:[#allocation7] sm:$0xf]
        %v3873 = vld [vmem:[%s385] sm:$0xf]
        %v3893 = vrot.slane %v3832, 1
        %v3894 = vrot.slane %v3833, 1
        %v3895 = vsel %vm420, %v3893, %v3894
        %v3896 = vrot.slane %v3834, 1
        %v3897 = vsel %vm420, %v3894, %v3896
        %v3898 = vrot.slane %v3835, 1
        %v3899 = vsel %vm420, %v3896, %v3898
        %v3900 = vrot.slane %v3836, 1
        %v3901 = vsel %vm420, %v3898, %v3900
        %v3902 = vrot.slane %v3837, 1
        %v3903 = vsel %vm420, %v3900, %v3902
        %v3904 = vrot.slane %v3838, 1
        %v3905 = vsel %vm420, %v3902, %v3904
        %v3906 = vrot.slane %v3839, 1
        %v3907 = vsel %vm420, %v3904, %v3906
        %v3908 = vrot.slane %v3840, 1
        %v3909 = vsel %vm420, %v3906, %v3908
        %v3910 = vrot.slane %v3841, 1
        %v3911 = vsel %vm420, %v3908, %v3910
        %v3912 = vrot.slane %v3842, 1
        %v3913 = vsel %vm420, %v3910, %v3912
        %v3914 = vrot.slane %v3843, 1
        %v3915 = vsel %vm420, %v3912, %v3914
        %v3916 = vrot.slane %v3844, 1
        %v3917 = vsel %vm420, %v3914, %v3916
        %v3918 = vrot.slane %v3845, 1
        %v3919 = vsel %vm420, %v3916, %v3918
        %v3920 = vrot.slane %v3846, 1
        %v3921 = vsel %vm420, %v3918, %v3920
        %v3922 = vrot.slane %v3847, 1
        %v3923 = vsel %vm420, %v3920, %v3922
        %v3924 = vrot.slane %v3848, 1
        %v3925 = vsel %vm420, %v3922, %v3924
        %v3926 = vrot.slane %v3849, 1
        %v3927 = vsel %vm420, %v3924, %v3926
        %v3928 = vrot.slane %v3850, 1
        %v3929 = vsel %vm420, %v3926, %v3928
        %v3930 = vsel %vm486, %v3895, 0
        %v3932 = vsel %vm486, %v3897, 0
        %v3934 = vsel %vm486, %v3899, 0
        %v3936 = vsel %vm486, %v3901, 0
        %v3938 = vsel %vm486, %v3903, 0
        %v3940 = vsel %vm486, %v3905, 0
        %v3942 = vsel %vm486, %v3907, 0
        %v3944 = vsel %vm486, %v3909, 0
        %v3946 = vsel %vm486, %v3911, 0
        %v3948 = vsel %vm486, %v3913, 0
        %v3950 = vsel %vm486, %v3915, 0
        %v3952 = vsel %vm486, %v3917, 0
        %v3954 = vsel %vm486, %v3919, 0
        %v3956 = vsel %vm486, %v3921, 0
        %v3958 = vsel %vm486, %v3923, 0
        %v3960 = vsel %vm486, %v3925, 0
        %v3962 = vsel %vm486, %v3927, 0
        %v3964 = vsel %vm486, %v3929, 0
        %v3967 = vsel %vm551, %v3873, 0
        %3969 = vmatprep.subr.mxu0 0.0
        %3970 = vmatpush1.msra.mxu0 %v3967
        %3971 = vmatprep.subr.mxu0 0.0
        %3972 = vmatpush1.msra.mxu0 0.0
        %3973 = vmatprep.subr.mxu0 0.0
        %3974 = vmatpush1.msra.mxu0 0.0
        %3975 = vmatprep.subr.mxu0 0.0
        %3976 = vmatpush1.msra.mxu0 0.0
        %3977 = vmatprep.subr.mxu0 0.0
        %3978 = vmatpush1.msra.mxu0 0.0
        %3979 = vmatprep.subr.mxu0 0.0
        %3980 = vmatpush1.msra.mxu0 0.0
        %3981 = vmatprep.subr.mxu0 0.0
        %3982 = vmatpush1.msra.mxu0 0.0
        %3983 = vmatprep.subr.mxu0 0.0
        %3984 = vmatpush1.msra.mxu0 0.0
        %3985 = vmatprep.subr.mxu0 0.0
        %3986 = vmatpush1.msra.mxu0 0.0
        %3987 = vmatprep.subr.mxu0 0.0
        %3988 = vmatpush1.msra.mxu0 0.0
        %3989 = vmatprep.subr.mxu0 0.0
        %3990 = vmatpush1.msra.mxu0 0.0
        %3991 = vmatprep.subr.mxu0 0.0
        %3992 = vmatpush1.msra.mxu0 0.0
        %3993 = vmatprep.subr.mxu0 0.0
        %3994 = vmatpush1.msra.mxu0 0.0
        %3995 = vmatprep.subr.mxu0 0.0
        %3996 = vmatpush1.msra.mxu0 0.0
        %3997 = vmatprep.subr.mxu0 0.0
        %3998 = vmatpush1.msra.mxu0 0.0
        %3999 = vmatprep.subr.mxu0 0.0
        %4000 = vmatpush1.msra.mxu0 0.0
        %4001 = vmatprep.subr.mxu0 0.0
        %4002 = vmatpush1.msra.mxu0 0.0
        %4003 = vmatprep.subr.mxu0 0.0
        %4004 = vmatpush1.msra.mxu0 0.0
        %4005 = vmatprep.subr.mxu0 0.0
        %4006 = vmatpush1.msra.mxu0 0.0
        %4007 = vmatprep.subr.mxu0 0.0
        %4008 = vmatpush1.msra.mxu0 0.0
        %4009 = vmatprep.subr.mxu0 0.0
        %4010 = vmatpush1.msra.mxu0 0.0
        %4011 = vmatprep.subr.mxu0 0.0
        %4012 = vmatpush1.msra.mxu0 0.0
        %4013 = vmatprep.subr.mxu0 0.0
        %4014 = vmatpush1.msra.mxu0 0.0
        %4015 = vmatprep.subr.mxu0 0.0
        %4016 = vmatpush1.msra.mxu0 0.0
        %4017 = vmatprep.subr.mxu0 0.0
        %4018 = vmatpush1.msra.mxu0 0.0
        %4019 = vmatprep.subr.mxu0 0.0
        %4020 = vmatpush1.msra.mxu0 0.0
        %4021 = vmatprep.subr.mxu0 0.0
        %4022 = vmatpush1.msra.mxu0 0.0
        %4023 = vmatprep.subr.mxu0 0.0
        %4024 = vmatpush1.msra.mxu0 0.0
        %4025 = vmatprep.subr.mxu0 0.0
        %4026 = vmatpush1.msra.mxu0 0.0
        %4027 = vmatprep.subr.mxu0 0.0
        %4028 = vmatpush1.msra.mxu0 0.0
        %4029 = vmatprep.subr.mxu0 0.0
        %4030 = vmatpush1.msra.mxu0 0.0
        %4031 = vmatprep.subr.mxu0 0.0
        %4032 = vmatpush1.msra.mxu0 0.0
        %4033 = vmatprep.mubr.f32.mxu0 0.0
        %4034 = vmatmul.mubr.f32.gmra.mrb[0].mxu0 %v3930
        %v4035 = vpop.f32.mrb[0].mxu0
        %v4036 = vadd.f32 0.0, %v4035
        %v4037 = vpop.f32.mrb[0].mxu0
        %4038 = vmatprep.mubr.f32.mxu0 0.0
        %4039 = vmatmul.mubr.f32.gmra.mrb[0].mxu0 %v3932
        %v4040 = vpop.f32.mrb[0].mxu0
        %v4041 = vadd.f32 0.0, %v4040
        %v4042 = vpop.f32.mrb[0].mxu0
        %4043 = vmatprep.mubr.f32.mxu0 0.0
        %4044 = vmatmul.mubr.f32.gmra.mrb[0].mxu0 %v3934
        %v4045 = vpop.f32.mrb[0].mxu0
        %v4046 = vadd.f32 0.0, %v4045
        %v4047 = vpop.f32.mrb[0].mxu0
        %4048 = vmatprep.mubr.f32.mxu0 0.0
        %4049 = vmatmul.mubr.f32.gmra.mrb[0].mxu0 %v3936
        %v4050 = vpop.f32.mrb[0].mxu0
        %v4051 = vadd.f32 0.0, %v4050
        %v4052 = vpop.f32.mrb[0].mxu0
        %4053 = vmatprep.mubr.f32.mxu0 0.0
        %4054 = vmatmul.mubr.f32.gmra.mrb[0].mxu0 %v3938
        %v4055 = vpop.f32.mrb[0].mxu0
        %v4056 = vadd.f32 0.0, %v4055
        %v4057 = vpop.f32.mrb[0].mxu0
        %4058 = vmatprep.mubr.f32.mxu0 0.0
        %4059 = vmatmul.mubr.f32.gmra.mrb[0].mxu0 %v3940
        %v4060 = vpop.f32.mrb[0].mxu0
        %v4061 = vadd.f32 0.0, %v4060
        %v4062 = vpop.f32.mrb[0].mxu0
        %4063 = vmatprep.mubr.f32.mxu0 0.0
        %4064 = vmatmul.mubr.f32.gmra.mrb[0].mxu0 %v3942
        %v4065 = vpop.f32.mrb[0].mxu0
        %v4066 = vadd.f32 0.0, %v4065
        %v4067 = vpop.f32.mrb[0].mxu0
        %4068 = vmatprep.mubr.f32.mxu0 0.0
        %4069 = vmatmul.mubr.f32.gmra.mrb[0].mxu0 %v3944
        %v4070 = vpop.f32.mrb[0].mxu0
        %v4071 = vadd.f32 0.0, %v4070
        %v4072 = vpop.f32.mrb[0].mxu0
        %4073 = vmatprep.mubr.f32.mxu0 0.0
        %4074 = vmatmul.mubr.f32.gmra.mrb[0].mxu0 %v3946
        %v4075 = vpop.f32.mrb[0].mxu0
        %v4076 = vadd.f32 0.0, %v4075
        %v4077 = vpop.f32.mrb[0].mxu0
        %4078 = vmatprep.mubr.f32.mxu0 0.0
        %4079 = vmatmul.mubr.f32.gmra.mrb[0].mxu0 %v3948
        %v4080 = vpop.f32.mrb[0].mxu0
        %v4081 = vadd.f32 0.0, %v4080
        %v4082 = vpop.f32.mrb[0].mxu0
        %4083 = vmatprep.mubr.f32.mxu0 0.0
        %4084 = vmatmul.mubr.f32.gmra.mrb[0].mxu0 %v3950
        %v4085 = vpop.f32.mrb[0].mxu0
        %v4086 = vadd.f32 0.0, %v4085
        %v4087 = vpop.f32.mrb[0].mxu0
        %4088 = vmatprep.mubr.f32.mxu0 0.0
        %4089 = vmatmul.mubr.f32.gmra.mrb[0].mxu0 %v3952
        %v4090 = vpop.f32.mrb[0].mxu0
        %v4091 = vadd.f32 0.0, %v4090
        %v4092 = vpop.f32.mrb[0].mxu0
        %4093 = vmatprep.mubr.f32.mxu0 0.0
        %4094 = vmatmul.mubr.f32.gmra.mrb[0].mxu0 %v3954
        %v4095 = vpop.f32.mrb[0].mxu0
        %v4096 = vadd.f32 0.0, %v4095
        %v4097 = vpop.f32.mrb[0].mxu0
        %4098 = vmatprep.mubr.f32.mxu0 0.0
        %4099 = vmatmul.mubr.f32.gmra.mrb[0].mxu0 %v3956
        %v4100 = vpop.f32.mrb[0].mxu0
        %v4101 = vadd.f32 0.0, %v4100
        %v4102 = vpop.f32.mrb[0].mxu0
        %4103 = vmatprep.mubr.f32.mxu0 0.0
        %4104 = vmatmul.mubr.f32.gmra.mrb[0].mxu0 %v3958
        %v4105 = vpop.f32.mrb[0].mxu0
        %v4106 = vadd.f32 0.0, %v4105
        %v4107 = vpop.f32.mrb[0].mxu0
        %4108 = vmatprep.mubr.f32.mxu0 0.0
        %4109 = vmatmul.mubr.f32.gmra.mrb[0].mxu0 %v3960
        %v4110 = vpop.f32.mrb[0].mxu0
        %v4111 = vadd.f32 0.0, %v4110
        %v4112 = vpop.f32.mrb[0].mxu0
        %4113 = vmatprep.mubr.f32.mxu0 0.0
        %4114 = vmatmul.mubr.f32.gmra.mrb[0].mxu0 %v3962
        %v4115 = vpop.f32.mrb[0].mxu0
        %v4116 = vadd.f32 0.0, %v4115
        %v4117 = vpop.f32.mrb[0].mxu0
        %4118 = vmatprep.mubr.f32.mxu0 0.0
        %4119 = vmatmul.mubr.f32.gmra.mrb[0].mxu0 %v3964
        %v4120 = vpop.f32.mrb[0].mxu0
        %v4121 = vadd.f32 0.0, %v4120
        %v4122 = vpop.f32.mrb[0].mxu0
        %4123 = vdwg.mxu0
        %v4125 = vsel %vm486, %v3829, 0
        %v4128 = vsel %vm486, %v3830, 0
        %v4131 = vsel %vm486, %v3831, 0
        %v4133 = vsel %vm486, %v3832, 0
        %v4135 = vsel %vm486, %v3833, 0
        %v4137 = vsel %vm486, %v3834, 0
        %v4139 = vsel %vm486, %v3835, 0
        %v4141 = vsel %vm486, %v3836, 0
        %v4143 = vsel %vm486, %v3837, 0
        %v4145 = vsel %vm486, %v3838, 0
        %v4147 = vsel %vm486, %v3839, 0
        %v4149 = vsel %vm486, %v3840, 0
        %v4151 = vsel %vm486, %v3841, 0
        %v4153 = vsel %vm486, %v3842, 0
        %v4155 = vsel %vm486, %v3843, 0
        %v4157 = vsel %vm486, %v3844, 0
        %v4159 = vsel %vm486, %v3845, 0
        %v4161 = vsel %vm486, %v3846, 0
        %v4164 = vsel %vm551, %v3872, 0
        %4166 = vmatprep.subr.mxu0 0.0
        %4167 = vmatpush1.msra.mxu0 %v4164
        %4168 = vmatprep.subr.mxu0 0.0
        %4169 = vmatpush1.msra.mxu0 0.0
        %4170 = vmatprep.subr.mxu0 0.0
        %4171 = vmatpush1.msra.mxu0 0.0
        %4172 = vmatprep.subr.mxu0 0.0
        %4173 = vmatpush1.msra.mxu0 0.0
        %4174 = vmatprep.subr.mxu0 0.0
        %4175 = vmatpush1.msra.mxu0 0.0
        %4176 = vmatprep.subr.mxu0 0.0
        %4177 = vmatpush1.msra.mxu0 0.0
        %4178 = vmatprep.subr.mxu0 0.0
        %4179 = vmatpush1.msra.mxu0 0.0
        %4180 = vmatprep.subr.mxu0 0.0
        %4181 = vmatpush1.msra.mxu0 0.0
        %4182 = vmatprep.subr.mxu0 0.0
        %4183 = vmatpush1.msra.mxu0 0.0
        %4184 = vmatprep.subr.mxu0 0.0
        %4185 = vmatpush1.msra.mxu0 0.0
        %4186 = vmatprep.subr.mxu0 0.0
        %4187 = vmatpush1.msra.mxu0 0.0
        %4188 = vmatprep.subr.mxu0 0.0
        %4189 = vmatpush1.msra.mxu0 0.0
        %4190 = vmatprep.subr.mxu0 0.0
        %4191 = vmatpush1.msra.mxu0 0.0
        %4192 = vmatprep.subr.mxu0 0.0
        %4193 = vmatpush1.msra.mxu0 0.0
        %4194 = vmatprep.subr.mxu0 0.0
        %4195 = vmatpush1.msra.mxu0 0.0
        %4196 = vmatprep.subr.mxu0 0.0
        %4197 = vmatpush1.msra.mxu0 0.0
        %4198 = vmatprep.subr.mxu0 0.0
        %4199 = vmatpush1.msra.mxu0 0.0
        %4200 = vmatprep.subr.mxu0 0.0
        %4201 = vmatpush1.msra.mxu0 0.0
        %4202 = vmatprep.subr.mxu0 0.0
        %4203 = vmatpush1.msra.mxu0 0.0
        %4204 = vmatprep.subr.mxu0 0.0
        %4205 = vmatpush1.msra.mxu0 0.0
        %4206 = vmatprep.subr.mxu0 0.0
        %4207 = vmatpush1.msra.mxu0 0.0
        %4208 = vmatprep.subr.mxu0 0.0
        %4209 = vmatpush1.msra.mxu0 0.0
        %4210 = vmatprep.subr.mxu0 0.0
        %4211 = vmatpush1.msra.mxu0 0.0
        %4212 = vmatprep.subr.mxu0 0.0
        %4213 = vmatpush1.msra.mxu0 0.0
        %4214 = vmatprep.subr.mxu0 0.0
        %4215 = vmatpush1.msra.mxu0 0.0
        %4216 = vmatprep.subr.mxu0 0.0
        %4217 = vmatpush1.msra.mxu0 0.0
        %4218 = vmatprep.subr.mxu0 0.0
        %4219 = vmatpush1.msra.mxu0 0.0
        %4220 = vmatprep.subr.mxu0 0.0
        %4221 = vmatpush1.msra.mxu0 0.0
        %4222 = vmatprep.subr.mxu0 0.0
        %4223 = vmatpush1.msra.mxu0 0.0
        %4224 = vmatprep.subr.mxu0 0.0
        %4225 = vmatpush1.msra.mxu0 0.0
        %4226 = vmatprep.subr.mxu0 0.0
        %4227 = vmatpush1.msra.mxu0 0.0
        %4228 = vmatprep.subr.mxu0 0.0
        %4229 = vmatpush1.msra.mxu0 0.0
        %4230 = vmatprep.mubr.f32.mxu0 0.0
        %4231 = vmatmul.mubr.f32.gmra.mrb[0].mxu0 %v4125
        %v4232 = vpop.f32.mrb[0].mxu0
        %v4233 = vadd.f32 %v4036, %v4232
        %v4234 = vpop.f32.mrb[0].mxu0
        %4235 = vmatprep.mubr.f32.mxu0 0.0
        %4236 = vmatmul.mubr.f32.gmra.mrb[0].mxu0 %v4128
        %v4237 = vpop.f32.mrb[0].mxu0
        %v4238 = vadd.f32 %v4041, %v4237
        %v4239 = vpop.f32.mrb[0].mxu0
        %4240 = vmatprep.mubr.f32.mxu0 0.0
        %4241 = vmatmul.mubr.f32.gmra.mrb[0].mxu0 %v4131
        %v4242 = vpop.f32.mrb[0].mxu0
        %v4243 = vadd.f32 %v4046, %v4242
        %v4244 = vpop.f32.mrb[0].mxu0
        %4245 = vmatprep.mubr.f32.mxu0 0.0
        %4246 = vmatmul.mubr.f32.gmra.mrb[0].mxu0 %v4133
        %v4247 = vpop.f32.mrb[0].mxu0
        %v4248 = vadd.f32 %v4051, %v4247
        %v4249 = vpop.f32.mrb[0].mxu0
        %4250 = vmatprep.mubr.f32.mxu0 0.0
        %4251 = vmatmul.mubr.f32.gmra.mrb[0].mxu0 %v4135
        %v4252 = vpop.f32.mrb[0].mxu0
        %v4253 = vadd.f32 %v4056, %v4252
        %v4254 = vpop.f32.mrb[0].mxu0
        %4255 = vmatprep.mubr.f32.mxu0 0.0
        %4256 = vmatmul.mubr.f32.gmra.mrb[0].mxu0 %v4137
        %v4257 = vpop.f32.mrb[0].mxu0
        %v4258 = vadd.f32 %v4061, %v4257
        %v4259 = vpop.f32.mrb[0].mxu0
        %4260 = vmatprep.mubr.f32.mxu0 0.0
        %4261 = vmatmul.mubr.f32.gmra.mrb[0].mxu0 %v4139
        %v4262 = vpop.f32.mrb[0].mxu0
        %v4263 = vadd.f32 %v4066, %v4262
        %v4264 = vpop.f32.mrb[0].mxu0
        %4265 = vmatprep.mubr.f32.mxu0 0.0
        %4266 = vmatmul.mubr.f32.gmra.mrb[0].mxu0 %v4141
        %v4267 = vpop.f32.mrb[0].mxu0
        %v4268 = vadd.f32 %v4071, %v4267
        %v4269 = vpop.f32.mrb[0].mxu0
        %4270 = vmatprep.mubr.f32.mxu0 0.0
        %4271 = vmatmul.mubr.f32.gmra.mrb[0].mxu0 %v4143
        %v4272 = vpop.f32.mrb[0].mxu0
        %v4273 = vadd.f32 %v4076, %v4272
        %v4274 = vpop.f32.mrb[0].mxu0
        %4275 = vmatprep.mubr.f32.mxu0 0.0
        %4276 = vmatmul.mubr.f32.gmra.mrb[0].mxu0 %v4145
        %v4277 = vpop.f32.mrb[0].mxu0
        %v4278 = vadd.f32 %v4081, %v4277
        %v4279 = vpop.f32.mrb[0].mxu0
        %4280 = vmatprep.mubr.f32.mxu0 0.0
        %4281 = vmatmul.mubr.f32.gmra.mrb[0].mxu0 %v4147
        %v4282 = vpop.f32.mrb[0].mxu0
        %v4283 = vadd.f32 %v4086, %v4282
        %v4284 = vpop.f32.mrb[0].mxu0
        %4285 = vmatprep.mubr.f32.mxu0 0.0
        %4286 = vmatmul.mubr.f32.gmra.mrb[0].mxu0 %v4149
        %v4287 = vpop.f32.mrb[0].mxu0
        %v4288 = vadd.f32 %v4091, %v4287
        %v4289 = vpop.f32.mrb[0].mxu0
        %4290 = vmatprep.mubr.f32.mxu0 0.0
        %4291 = vmatmul.mubr.f32.gmra.mrb[0].mxu0 %v4151
        %v4292 = vpop.f32.mrb[0].mxu0
        %v4293 = vadd.f32 %v4096, %v4292
        %v4294 = vpop.f32.mrb[0].mxu0
        %4295 = vmatprep.mubr.f32.mxu0 0.0
        %4296 = vmatmul.mubr.f32.gmra.mrb[0].mxu0 %v4153
        %v4297 = vpop.f32.mrb[0].mxu0
        %v4298 = vadd.f32 %v4101, %v4297
        %v4299 = vpop.f32.mrb[0].mxu0
        %4300 = vmatprep.mubr.f32.mxu0 0.0
        %4301 = vmatmul.mubr.f32.gmra.mrb[0].mxu0 %v4155
        %v4302 = vpop.f32.mrb[0].mxu0
        %v4303 = vadd.f32 %v4106, %v4302
        %v4304 = vpop.f32.mrb[0].mxu0
        %4305 = vmatprep.mubr.f32.mxu0 0.0
        %4306 = vmatmul.mubr.f32.gmra.mrb[0].mxu0 %v4157
        %v4307 = vpop.f32.mrb[0].mxu0
        %v4308 = vadd.f32 %v4111, %v4307
        %v4309 = vpop.f32.mrb[0].mxu0
        %4310 = vmatprep.mubr.f32.mxu0 0.0
        %4311 = vmatmul.mubr.f32.gmra.mrb[0].mxu0 %v4159
        %v4312 = vpop.f32.mrb[0].mxu0
        %v4313 = vadd.f32 %v4116, %v4312
        %v4314 = vpop.f32.mrb[0].mxu0
        %4315 = vmatprep.mubr.f32.mxu0 0.0
        %4316 = vmatmul.mubr.f32.gmra.mrb[0].mxu0 %v4161
        %v4317 = vpop.f32.mrb[0].mxu0
        %v4318 = vadd.f32 %v4121, %v4317
        %v4319 = vpop.f32.mrb[0].mxu0
        %4320 = vdwg.mxu0
        %v4321 = vld [vmem:[%s1075] sm:$0xf]
        %v4325 = vrot.slane %v3835, 2
        %v4326 = vrot.slane %v3836, 2
        %v4327 = vsel %vm1080, %v4325, %v4326
        %v4328 = vrot.slane %v3837, 2
        %v4329 = vsel %vm1080, %v4326, %v4328
        %v4330 = vrot.slane %v3838, 2
        %v4331 = vsel %vm1080, %v4328, %v4330
        %v4332 = vrot.slane %v3839, 2
        %v4333 = vsel %vm1080, %v4330, %v4332
        %v4334 = vrot.slane %v3840, 2
        %v4335 = vsel %vm1080, %v4332, %v4334
        %v4336 = vrot.slane %v3841, 2
        %v4337 = vsel %vm1080, %v4334, %v4336
        %v4338 = vrot.slane %v3842, 2
        %v4339 = vsel %vm1080, %v4336, %v4338
        %v4340 = vrot.slane %v3843, 2
        %v4341 = vsel %vm1080, %v4338, %v4340
        %v4342 = vrot.slane %v3844, 2
        %v4343 = vsel %vm1080, %v4340, %v4342
        %v4344 = vrot.slane %v3845, 2
        %v4345 = vsel %vm1080, %v4342, %v4344
        %v4346 = vrot.slane %v3846, 2
        %v4347 = vsel %vm1080, %v4344, %v4346
        %v4348 = vrot.slane %v3847, 2
        %v4349 = vsel %vm1080, %v4346, %v4348
        %v4350 = vrot.slane %v3848, 2
        %v4351 = vsel %vm1080, %v4348, %v4350
        %v4352 = vrot.slane %v3849, 2
        %v4353 = vsel %vm1080, %v4350, %v4352
        %v4354 = vrot.slane %v3850, 2
        %v4355 = vsel %vm1080, %v4352, %v4354
        %v4356 = vrot.slane %v3851, 2
        %v4357 = vsel %vm1080, %v4354, %v4356
        %v4358 = vrot.slane %v3852, 2
        %v4359 = vsel %vm1080, %v4356, %v4358
        %v4360 = vrot.slane %v3853, 2
        %v4361 = vsel %vm1080, %v4358, %v4360
        %v4362 = vsel %vm486, %v4327, 0
        %v4364 = vsel %vm486, %v4329, 0
        %v4366 = vsel %vm486, %v4331, 0
        %v4368 = vsel %vm486, %v4333, 0
        %v4370 = vsel %vm486, %v4335, 0
        %v4372 = vsel %vm486, %v4337, 0
        %v4374 = vsel %vm486, %v4339, 0
        %v4376 = vsel %vm486, %v4341, 0
        %v4378 = vsel %vm486, %v4343, 0
        %v4380 = vsel %vm486, %v4345, 0
        %v4382 = vsel %vm486, %v4347, 0
        %v4384 = vsel %vm486, %v4349, 0
        %v4386 = vsel %vm486, %v4351, 0
        %v4388 = vsel %vm486, %v4353, 0
        %v4390 = vsel %vm486, %v4355, 0
        %v4392 = vsel %vm486, %v4357, 0
        %v4394 = vsel %vm486, %v4359, 0
        %v4396 = vsel %vm486, %v4361, 0
        %v4399 = vsel %vm551, %v4321, 0
        %4401 = vmatprep.subr.mxu0 0.0
        %4402 = vmatpush1.msra.mxu0 %v4399
        %4403 = vmatprep.subr.mxu0 0.0
        %4404 = vmatpush1.msra.mxu0 0.0
        %4405 = vmatprep.subr.mxu0 0.0
        %4406 = vmatpush1.msra.mxu0 0.0
        %4407 = vmatprep.subr.mxu0 0.0
        %4408 = vmatpush1.msra.mxu0 0.0
        %4409 = vmatprep.subr.mxu0 0.0
        %4410 = vmatpush1.msra.mxu0 0.0
        %4411 = vmatprep.subr.mxu0 0.0
        %4412 = vmatpush1.msra.mxu0 0.0
        %4413 = vmatprep.subr.mxu0 0.0
        %4414 = vmatpush1.msra.mxu0 0.0
        %4415 = vmatprep.subr.mxu0 0.0
        %4416 = vmatpush1.msra.mxu0 0.0
        %4417 = vmatprep.subr.mxu0 0.0
        %4418 = vmatpush1.msra.mxu0 0.0
        %4419 = vmatprep.subr.mxu0 0.0
        %4420 = vmatpush1.msra.mxu0 0.0
        %4421 = vmatprep.subr.mxu0 0.0
        %4422 = vmatpush1.msra.mxu0 0.0
        %4423 = vmatprep.subr.mxu0 0.0
        %4424 = vmatpush1.msra.mxu0 0.0
        %4425 = vmatprep.subr.mxu0 0.0
        %4426 = vmatpush1.msra.mxu0 0.0
        %4427 = vmatprep.subr.mxu0 0.0
        %4428 = vmatpush1.msra.mxu0 0.0
        %4429 = vmatprep.subr.mxu0 0.0
        %4430 = vmatpush1.msra.mxu0 0.0
        %4431 = vmatprep.subr.mxu0 0.0
        %4432 = vmatpush1.msra.mxu0 0.0
        %4433 = vmatprep.subr.mxu0 0.0
        %4434 = vmatpush1.msra.mxu0 0.0
        %4435 = vmatprep.subr.mxu0 0.0
        %4436 = vmatpush1.msra.mxu0 0.0
        %4437 = vmatprep.subr.mxu0 0.0
        %4438 = vmatpush1.msra.mxu0 0.0
        %4439 = vmatprep.subr.mxu0 0.0
        %4440 = vmatpush1.msra.mxu0 0.0
        %4441 = vmatprep.subr.mxu0 0.0
        %4442 = vmatpush1.msra.mxu0 0.0
        %4443 = vmatprep.subr.mxu0 0.0
        %4444 = vmatpush1.msra.mxu0 0.0
        %4445 = vmatprep.subr.mxu0 0.0
        %4446 = vmatpush1.msra.mxu0 0.0
        %4447 = vmatprep.subr.mxu0 0.0
        %4448 = vmatpush1.msra.mxu0 0.0
        %4449 = vmatprep.subr.mxu0 0.0
        %4450 = vmatpush1.msra.mxu0 0.0
        %4451 = vmatprep.subr.mxu0 0.0
        %4452 = vmatpush1.msra.mxu0 0.0
        %4453 = vmatprep.subr.mxu0 0.0
        %4454 = vmatpush1.msra.mxu0 0.0
        %4455 = vmatprep.subr.mxu0 0.0
        %4456 = vmatpush1.msra.mxu0 0.0
        %4457 = vmatprep.subr.mxu0 0.0
        %4458 = vmatpush1.msra.mxu0 0.0
        %4459 = vmatprep.subr.mxu0 0.0
        %4460 = vmatpush1.msra.mxu0 0.0
        %4461 = vmatprep.subr.mxu0 0.0
        %4462 = vmatpush1.msra.mxu0 0.0
        %4463 = vmatprep.subr.mxu0 0.0
        %4464 = vmatpush1.msra.mxu0 0.0
        %4465 = vmatprep.mubr.f32.mxu0 0.0
        %4466 = vmatmul.mubr.f32.gmra.mrb[0].mxu0 %v4362
        %v4467 = vpop.f32.mrb[0].mxu0
        %v4468 = vadd.f32 0.0, %v4467
        %v4469 = vpop.f32.mrb[0].mxu0
        %4470 = vmatprep.mubr.f32.mxu0 0.0
        %4471 = vmatmul.mubr.f32.gmra.mrb[0].mxu0 %v4364
        %v4472 = vpop.f32.mrb[0].mxu0
        %v4473 = vadd.f32 0.0, %v4472
        %v4474 = vpop.f32.mrb[0].mxu0
        %4475 = vmatprep.mubr.f32.mxu0 0.0
        %4476 = vmatmul.mubr.f32.gmra.mrb[0].mxu0 %v4366
        %v4477 = vpop.f32.mrb[0].mxu0
        %v4478 = vadd.f32 0.0, %v4477
        %v4479 = vpop.f32.mrb[0].mxu0
        %4480 = vmatprep.mubr.f32.mxu0 0.0
        %4481 = vmatmul.mubr.f32.gmra.mrb[0].mxu0 %v4368
        %v4482 = vpop.f32.mrb[0].mxu0
        %v4483 = vadd.f32 0.0, %v4482
        %v4484 = vpop.f32.mrb[0].mxu0
        %4485 = vmatprep.mubr.f32.mxu0 0.0
        %4486 = vmatmul.mubr.f32.gmra.mrb[0].mxu0 %v4370
        %v4487 = vpop.f32.mrb[0].mxu0
        %v4488 = vadd.f32 0.0, %v4487
        %v4489 = vpop.f32.mrb[0].mxu0
        %4490 = vmatprep.mubr.f32.mxu0 0.0
        %4491 = vmatmul.mubr.f32.gmra.mrb[0].mxu0 %v4372
        %v4492 = vpop.f32.mrb[0].mxu0
        %v4493 = vadd.f32 0.0, %v4492
        %v4494 = vpop.f32.mrb[0].mxu0
        %4495 = vmatprep.mubr.f32.mxu0 0.0
        %4496 = vmatmul.mubr.f32.gmra.mrb[0].mxu0 %v4374
        %v4497 = vpop.f32.mrb[0].mxu0
        %v4498 = vadd.f32 0.0, %v4497
        %v4499 = vpop.f32.mrb[0].mxu0
        %4500 = vmatprep.mubr.f32.mxu0 0.0
        %4501 = vmatmul.mubr.f32.gmra.mrb[0].mxu0 %v4376
        %v4502 = vpop.f32.mrb[0].mxu0
        %v4503 = vadd.f32 0.0, %v4502
        %v4504 = vpop.f32.mrb[0].mxu0
        %4505 = vmatprep.mubr.f32.mxu0 0.0
        %4506 = vmatmul.mubr.f32.gmra.mrb[0].mxu0 %v4378
        %v4507 = vpop.f32.mrb[0].mxu0
        %v4508 = vadd.f32 0.0, %v4507
        %v4509 = vpop.f32.mrb[0].mxu0
        %4510 = vmatprep.mubr.f32.mxu0 0.0
        %4511 = vmatmul.mubr.f32.gmra.mrb[0].mxu0 %v4380
        %v4512 = vpop.f32.mrb[0].mxu0
        %v4513 = vadd.f32 0.0, %v4512
        %v4514 = vpop.f32.mrb[0].mxu0
        %4515 = vmatprep.mubr.f32.mxu0 0.0
        %4516 = vmatmul.mubr.f32.gmra.mrb[0].mxu0 %v4382
        %v4517 = vpop.f32.mrb[0].mxu0
        %v4518 = vadd.f32 0.0, %v4517
        %v4519 = vpop.f32.mrb[0].mxu0
        %4520 = vmatprep.mubr.f32.mxu0 0.0
        %4521 = vmatmul.mubr.f32.gmra.mrb[0].mxu0 %v4384
        %v4522 = vpop.f32.mrb[0].mxu0
        %v4523 = vadd.f32 0.0, %v4522
        %v4524 = vpop.f32.mrb[0].mxu0
        %4525 = vmatprep.mubr.f32.mxu0 0.0
        %4526 = vmatmul.mubr.f32.gmra.mrb[0].mxu0 %v4386
        %v4527 = vpop.f32.mrb[0].mxu0
        %v4528 = vadd.f32 0.0, %v4527
        %v4529 = vpop.f32.mrb[0].mxu0
        %4530 = vmatprep.mubr.f32.mxu0 0.0
        %4531 = vmatmul.mubr.f32.gmra.mrb[0].mxu0 %v4388
        %v4532 = vpop.f32.mrb[0].mxu0
        %v4533 = vadd.f32 0.0, %v4532
        %v4534 = vpop.f32.mrb[0].mxu0
        %4535 = vmatprep.mubr.f32.mxu0 0.0
        %4536 = vmatmul.mubr.f32.gmra.mrb[0].mxu0 %v4390
        %v4537 = vpop.f32.mrb[0].mxu0
        %v4538 = vadd.f32 0.0, %v4537
        %v4539 = vpop.f32.mrb[0].mxu0
        %4540 = vmatprep.mubr.f32.mxu0 0.0
        %4541 = vmatmul.mubr.f32.gmra.mrb[0].mxu0 %v4392
        %v4542 = vpop.f32.mrb[0].mxu0
        %v4543 = vadd.f32 0.0, %v4542
        %v4544 = vpop.f32.mrb[0].mxu0
        %4545 = vmatprep.mubr.f32.mxu0 0.0
        %4546 = vmatmul.mubr.f32.gmra.mrb[0].mxu0 %v4394
        %v4547 = vpop.f32.mrb[0].mxu0
        %v4548 = vadd.f32 0.0, %v4547
        %v4549 = vpop.f32.mrb[0].mxu0
        %4550 = vmatprep.mubr.f32.mxu0 0.0
        %4551 = vmatmul.mubr.f32.gmra.mrb[0].mxu0 %v4396
        %v4552 = vpop.f32.mrb[0].mxu0
        %v4553 = vadd.f32 0.0, %v4552
        %v4554 = vpop.f32.mrb[0].mxu0
        %4555 = vdwg.mxu0
        %v4556 = vadd.f32 %v4233, %v4468
        %v4557 = vadd.f32 %v4238, %v4473
        %v4558 = vadd.f32 %v4243, %v4478
        %v4559 = vadd.f32 %v4248, %v4483
        %v4560 = vadd.f32 %v4253, %v4488
        %v4561 = vadd.f32 %v4258, %v4493
        %v4562 = vadd.f32 %v4263, %v4498
        %v4563 = vadd.f32 %v4268, %v4503
        %v4564 = vadd.f32 %v4273, %v4508
        %v4565 = vadd.f32 %v4278, %v4513
        %v4566 = vadd.f32 %v4283, %v4518
        %v4567 = vadd.f32 %v4288, %v4523
        %v4568 = vadd.f32 %v4293, %v4528
        %v4569 = vadd.f32 %v4298, %v4533
        %v4570 = vadd.f32 %v4303, %v4538
        %v4571 = vadd.f32 %v4308, %v4543
        %v4572 = vadd.f32 %v4313, %v4548
        %v4573 = vadd.f32 %v4318, %v4553
        %v4574 = vld [vmem:[%s1470] sm:$0xf]
        %v4578 = vrot.slane %v3838, 3
        %v4579 = vrot.slane %v3839, 3
        %v4580 = vsel %vm1475, %v4578, %v4579
        %v4581 = vrot.slane %v3840, 3
        %v4582 = vsel %vm1475, %v4579, %v4581
        %v4583 = vrot.slane %v3841, 3
        %v4584 = vsel %vm1475, %v4581, %v4583
        %v4585 = vrot.slane %v3842, 3
        %v4586 = vsel %vm1475, %v4583, %v4585
        %v4587 = vrot.slane %v3843, 3
        %v4588 = vsel %vm1475, %v4585, %v4587
        %v4589 = vrot.slane %v3844, 3
        %v4590 = vsel %vm1475, %v4587, %v4589
        %v4591 = vrot.slane %v3845, 3
        %v4592 = vsel %vm1475, %v4589, %v4591
        %v4593 = vrot.slane %v3846, 3
        %v4594 = vsel %vm1475, %v4591, %v4593
        %v4595 = vrot.slane %v3847, 3
        %v4596 = vsel %vm1475, %v4593, %v4595
        %v4597 = vrot.slane %v3848, 3
        %v4598 = vsel %vm1475, %v4595, %v4597
        %v4599 = vrot.slane %v3849, 3
        %v4600 = vsel %vm1475, %v4597, %v4599
        %v4601 = vrot.slane %v3850, 3
        %v4602 = vsel %vm1475, %v4599, %v4601
        %v4603 = vrot.slane %v3851, 3
        %v4604 = vsel %vm1475, %v4601, %v4603
        %v4605 = vrot.slane %v3852, 3
        %v4606 = vsel %vm1475, %v4603, %v4605
        %v4607 = vrot.slane %v3853, 3
        %v4608 = vsel %vm1475, %v4605, %v4607
        %v4609 = vrot.slane %v3854, 3
        %v4610 = vsel %vm1475, %v4607, %v4609
        %v4611 = vrot.slane %v3855, 3
        %v4612 = vsel %vm1475, %v4609, %v4611
        %v4613 = vrot.slane %v3856, 3
        %v4614 = vsel %vm1475, %v4611, %v4613
        %v4615 = vsel %vm486, %v4580, 0
        %v4617 = vsel %vm486, %v4582, 0
        %v4619 = vsel %vm486, %v4584, 0
        %v4621 = vsel %vm486, %v4586, 0
        %v4623 = vsel %vm486, %v4588, 0
        %v4625 = vsel %vm486, %v4590, 0
        %v4627 = vsel %vm486, %v4592, 0
        %v4629 = vsel %vm486, %v4594, 0
        %v4631 = vsel %vm486, %v4596, 0
        %v4633 = vsel %vm486, %v4598, 0
        %v4635 = vsel %vm486, %v4600, 0
        %v4637 = vsel %vm486, %v4602, 0
        %v4639 = vsel %vm486, %v4604, 0
        %v4641 = vsel %vm486, %v4606, 0
        %v4643 = vsel %vm486, %v4608, 0
        %v4645 = vsel %vm486, %v4610, 0
        %v4647 = vsel %vm486, %v4612, 0
        %v4649 = vsel %vm486, %v4614, 0
        %v4652 = vsel %vm551, %v4574, 0
        %4654 = vmatprep.subr.mxu0 0.0
        %4655 = vmatpush1.msra.mxu0 %v4652
        %4656 = vmatprep.subr.mxu0 0.0
        %4657 = vmatpush1.msra.mxu0 0.0
        %4658 = vmatprep.subr.mxu0 0.0
        %4659 = vmatpush1.msra.mxu0 0.0
        %4660 = vmatprep.subr.mxu0 0.0
        %4661 = vmatpush1.msra.mxu0 0.0
        %4662 = vmatprep.subr.mxu0 0.0
        %4663 = vmatpush1.msra.mxu0 0.0
        %4664 = vmatprep.subr.mxu0 0.0
        %4665 = vmatpush1.msra.mxu0 0.0
        %4666 = vmatprep.subr.mxu0 0.0
        %4667 = vmatpush1.msra.mxu0 0.0
        %4668 = vmatprep.subr.mxu0 0.0
        %4669 = vmatpush1.msra.mxu0 0.0
        %4670 = vmatprep.subr.mxu0 0.0
        %4671 = vmatpush1.msra.mxu0 0.0
        %4672 = vmatprep.subr.mxu0 0.0
        %4673 = vmatpush1.msra.mxu0 0.0
        %4674 = vmatprep.subr.mxu0 0.0
        %4675 = vmatpush1.msra.mxu0 0.0
        %4676 = vmatprep.subr.mxu0 0.0
        %4677 = vmatpush1.msra.mxu0 0.0
        %4678 = vmatprep.subr.mxu0 0.0
        %4679 = vmatpush1.msra.mxu0 0.0
        %4680 = vmatprep.subr.mxu0 0.0
        %4681 = vmatpush1.msra.mxu0 0.0
        %4682 = vmatprep.subr.mxu0 0.0
        %4683 = vmatpush1.msra.mxu0 0.0
        %4684 = vmatprep.subr.mxu0 0.0
        %4685 = vmatpush1.msra.mxu0 0.0
        %4686 = vmatprep.subr.mxu0 0.0
        %4687 = vmatpush1.msra.mxu0 0.0
        %4688 = vmatprep.subr.mxu0 0.0
        %4689 = vmatpush1.msra.mxu0 0.0
        %4690 = vmatprep.subr.mxu0 0.0
        %4691 = vmatpush1.msra.mxu0 0.0
        %4692 = vmatprep.subr.mxu0 0.0
        %4693 = vmatpush1.msra.mxu0 0.0
        %4694 = vmatprep.subr.mxu0 0.0
        %4695 = vmatpush1.msra.mxu0 0.0
        %4696 = vmatprep.subr.mxu0 0.0
        %4697 = vmatpush1.msra.mxu0 0.0
        %4698 = vmatprep.subr.mxu0 0.0
        %4699 = vmatpush1.msra.mxu0 0.0
        %4700 = vmatprep.subr.mxu0 0.0
        %4701 = vmatpush1.msra.mxu0 0.0
        %4702 = vmatprep.subr.mxu0 0.0
        %4703 = vmatpush1.msra.mxu0 0.0
        %4704 = vmatprep.subr.mxu0 0.0
        %4705 = vmatpush1.msra.mxu0 0.0
        %4706 = vmatprep.subr.mxu0 0.0
        %4707 = vmatpush1.msra.mxu0 0.0
        %4708 = vmatprep.subr.mxu0 0.0
        %4709 = vmatpush1.msra.mxu0 0.0
        %4710 = vmatprep.subr.mxu0 0.0
        %4711 = vmatpush1.msra.mxu0 0.0
        %4712 = vmatprep.subr.mxu0 0.0
        %4713 = vmatpush1.msra.mxu0 0.0
        %4714 = vmatprep.subr.mxu0 0.0
        %4715 = vmatpush1.msra.mxu0 0.0
        %4716 = vmatprep.subr.mxu0 0.0
        %4717 = vmatpush1.msra.mxu0 0.0
        %4718 = vmatprep.mubr.f32.mxu0 0.0
        %4719 = vmatmul.mubr.f32.gmra.mrb[0].mxu0 %v4615
        %v4720 = vpop.f32.mrb[0].mxu0
        %v4721 = vadd.f32 0.0, %v4720
        %v4722 = vpop.f32.mrb[0].mxu0
        %4723 = vmatprep.mubr.f32.mxu0 0.0
        %4724 = vmatmul.mubr.f32.gmra.mrb[0].mxu0 %v4617
        %v4725 = vpop.f32.mrb[0].mxu0
        %v4726 = vadd.f32 0.0, %v4725
        %v4727 = vpop.f32.mrb[0].mxu0
        %4728 = vmatprep.mubr.f32.mxu0 0.0
        %4729 = vmatmul.mubr.f32.gmra.mrb[0].mxu0 %v4619
        %v4730 = vpop.f32.mrb[0].mxu0
        %v4731 = vadd.f32 0.0, %v4730
        %v4732 = vpop.f32.mrb[0].mxu0
        %4733 = vmatprep.mubr.f32.mxu0 0.0
        %4734 = vmatmul.mubr.f32.gmra.mrb[0].mxu0 %v4621
        %v4735 = vpop.f32.mrb[0].mxu0
        %v4736 = vadd.f32 0.0, %v4735
        %v4737 = vpop.f32.mrb[0].mxu0
        %4738 = vmatprep.mubr.f32.mxu0 0.0
        %4739 = vmatmul.mubr.f32.gmra.mrb[0].mxu0 %v4623
        %v4740 = vpop.f32.mrb[0].mxu0
        %v4741 = vadd.f32 0.0, %v4740
        %v4742 = vpop.f32.mrb[0].mxu0
        %4743 = vmatprep.mubr.f32.mxu0 0.0
        %4744 = vmatmul.mubr.f32.gmra.mrb[0].mxu0 %v4625
        %v4745 = vpop.f32.mrb[0].mxu0
        %v4746 = vadd.f32 0.0, %v4745
        %v4747 = vpop.f32.mrb[0].mxu0
        %4748 = vmatprep.mubr.f32.mxu0 0.0
        %4749 = vmatmul.mubr.f32.gmra.mrb[0].mxu0 %v4627
        %v4750 = vpop.f32.mrb[0].mxu0
        %v4751 = vadd.f32 0.0, %v4750
        %v4752 = vpop.f32.mrb[0].mxu0
        %4753 = vmatprep.mubr.f32.mxu0 0.0
        %4754 = vmatmul.mubr.f32.gmra.mrb[0].mxu0 %v4629
        %v4755 = vpop.f32.mrb[0].mxu0
        %v4756 = vadd.f32 0.0, %v4755
        %v4757 = vpop.f32.mrb[0].mxu0
        %4758 = vmatprep.mubr.f32.mxu0 0.0
        %4759 = vmatmul.mubr.f32.gmra.mrb[0].mxu0 %v4631
        %v4760 = vpop.f32.mrb[0].mxu0
        %v4761 = vadd.f32 0.0, %v4760
        %v4762 = vpop.f32.mrb[0].mxu0
        %4763 = vmatprep.mubr.f32.mxu0 0.0
        %4764 = vmatmul.mubr.f32.gmra.mrb[0].mxu0 %v4633
        %v4765 = vpop.f32.mrb[0].mxu0
        %v4766 = vadd.f32 0.0, %v4765
        %v4767 = vpop.f32.mrb[0].mxu0
        %4768 = vmatprep.mubr.f32.mxu0 0.0
        %4769 = vmatmul.mubr.f32.gmra.mrb[0].mxu0 %v4635
        %v4770 = vpop.f32.mrb[0].mxu0
        %v4771 = vadd.f32 0.0, %v4770
        %v4772 = vpop.f32.mrb[0].mxu0
        %4773 = vmatprep.mubr.f32.mxu0 0.0
        %4774 = vmatmul.mubr.f32.gmra.mrb[0].mxu0 %v4637
        %v4775 = vpop.f32.mrb[0].mxu0
        %v4776 = vadd.f32 0.0, %v4775
        %v4777 = vpop.f32.mrb[0].mxu0
        %4778 = vmatprep.mubr.f32.mxu0 0.0
        %4779 = vmatmul.mubr.f32.gmra.mrb[0].mxu0 %v4639
        %v4780 = vpop.f32.mrb[0].mxu0
        %v4781 = vadd.f32 0.0, %v4780
        %v4782 = vpop.f32.mrb[0].mxu0
        %4783 = vmatprep.mubr.f32.mxu0 0.0
        %4784 = vmatmul.mubr.f32.gmra.mrb[0].mxu0 %v4641
        %v4785 = vpop.f32.mrb[0].mxu0
        %v4786 = vadd.f32 0.0, %v4785
        %v4787 = vpop.f32.mrb[0].mxu0
        %4788 = vmatprep.mubr.f32.mxu0 0.0
        %4789 = vmatmul.mubr.f32.gmra.mrb[0].mxu0 %v4643
        %v4790 = vpop.f32.mrb[0].mxu0
        %v4791 = vadd.f32 0.0, %v4790
        %v4792 = vpop.f32.mrb[0].mxu0
        %4793 = vmatprep.mubr.f32.mxu0 0.0
        %4794 = vmatmul.mubr.f32.gmra.mrb[0].mxu0 %v4645
        %v4795 = vpop.f32.mrb[0].mxu0
        %v4796 = vadd.f32 0.0, %v4795
        %v4797 = vpop.f32.mrb[0].mxu0
        %4798 = vmatprep.mubr.f32.mxu0 0.0
        %4799 = vmatmul.mubr.f32.gmra.mrb[0].mxu0 %v4647
        %v4800 = vpop.f32.mrb[0].mxu0
        %v4801 = vadd.f32 0.0, %v4800
        %v4802 = vpop.f32.mrb[0].mxu0
        %4803 = vmatprep.mubr.f32.mxu0 0.0
        %4804 = vmatmul.mubr.f32.gmra.mrb[0].mxu0 %v4649
        %v4805 = vpop.f32.mrb[0].mxu0
        %v4806 = vadd.f32 0.0, %v4805
        %v4807 = vpop.f32.mrb[0].mxu0
        %4808 = vdwg.mxu0
        %v4809 = vadd.f32 %v4556, %v4721
        %v4810 = vadd.f32 %v4557, %v4726
        %v4811 = vadd.f32 %v4558, %v4731
        %v4812 = vadd.f32 %v4559, %v4736
        %v4813 = vadd.f32 %v4560, %v4741
        %v4814 = vadd.f32 %v4561, %v4746
        %v4815 = vadd.f32 %v4562, %v4751
        %v4816 = vadd.f32 %v4563, %v4756
        %v4817 = vadd.f32 %v4564, %v4761
        %v4818 = vadd.f32 %v4565, %v4766
        %v4819 = vadd.f32 %v4566, %v4771
        %v4820 = vadd.f32 %v4567, %v4776
        %v4821 = vadd.f32 %v4568, %v4781
        %v4822 = vadd.f32 %v4569, %v4786
        %v4823 = vadd.f32 %v4570, %v4791
        %v4824 = vadd.f32 %v4571, %v4796
        %v4825 = vadd.f32 %v4572, %v4801
        %v4826 = vadd.f32 %v4573, %v4806
        %v4827 = vld [vmem:[%s1865] sm:$0xf]
        %v4831 = vrot.slane %v3841, 4
        %v4832 = vrot.slane %v3842, 4
        %v4833 = vsel %vm551, %v4831, %v4832
        %v4834 = vrot.slane %v3843, 4
        %v4835 = vsel %vm551, %v4832, %v4834
        %v4836 = vrot.slane %v3844, 4
        %v4837 = vsel %vm551, %v4834, %v4836
        %v4838 = vrot.slane %v3845, 4
        %v4839 = vsel %vm551, %v4836, %v4838
        %v4840 = vrot.slane %v3846, 4
        %v4841 = vsel %vm551, %v4838, %v4840
        %v4842 = vrot.slane %v3847, 4
        %v4843 = vsel %vm551, %v4840, %v4842
        %v4844 = vrot.slane %v3848, 4
        %v4845 = vsel %vm551, %v4842, %v4844
        %v4846 = vrot.slane %v3849, 4
        %v4847 = vsel %vm551, %v4844, %v4846
        %v4848 = vrot.slane %v3850, 4
        %v4849 = vsel %vm551, %v4846, %v4848
        %v4850 = vrot.slane %v3851, 4
        %v4851 = vsel %vm551, %v4848, %v4850
        %v4852 = vrot.slane %v3852, 4
        %v4853 = vsel %vm551, %v4850, %v4852
        %v4854 = vrot.slane %v3853, 4
        %v4855 = vsel %vm551, %v4852, %v4854
        %v4856 = vrot.slane %v3854, 4
        %v4857 = vsel %vm551, %v4854, %v4856
        %v4858 = vrot.slane %v3855, 4
        %v4859 = vsel %vm551, %v4856, %v4858
        %v4860 = vrot.slane %v3856, 4
        %v4861 = vsel %vm551, %v4858, %v4860
        %v4862 = vrot.slane %v3857, 4
        %v4863 = vsel %vm551, %v4860, %v4862
        %v4864 = vrot.slane %v3858, 4
        %v4865 = vsel %vm551, %v4862, %v4864
        %v4866 = vrot.slane %v3859, 4
        %v4867 = vsel %vm551, %v4864, %v4866
        %v4868 = vsel %vm486, %v4833, 0
        %v4870 = vsel %vm486, %v4835, 0
        %v4872 = vsel %vm486, %v4837, 0
        %v4874 = vsel %vm486, %v4839, 0
        %v4876 = vsel %vm486, %v4841, 0
        %v4878 = vsel %vm486, %v4843, 0
        %v4880 = vsel %vm486, %v4845, 0
        %v4882 = vsel %vm486, %v4847, 0
        %v4884 = vsel %vm486, %v4849, 0
        %v4886 = vsel %vm486, %v4851, 0
        %v4888 = vsel %vm486, %v4853, 0
        %v4890 = vsel %vm486, %v4855, 0
        %v4892 = vsel %vm486, %v4857, 0
        %v4894 = vsel %vm486, %v4859, 0
        %v4896 = vsel %vm486, %v4861, 0
        %v4898 = vsel %vm486, %v4863, 0
        %v4900 = vsel %vm486, %v4865, 0
        %v4902 = vsel %vm486, %v4867, 0
        %v4905 = vsel %vm551, %v4827, 0
        %4907 = vmatprep.subr.mxu0 0.0
        %4908 = vmatpush1.msra.mxu0 %v4905
        %4909 = vmatprep.subr.mxu0 0.0
        %4910 = vmatpush1.msra.mxu0 0.0
        %4911 = vmatprep.subr.mxu0 0.0
        %4912 = vmatpush1.msra.mxu0 0.0
        %4913 = vmatprep.subr.mxu0 0.0
        %4914 = vmatpush1.msra.mxu0 0.0
        %4915 = vmatprep.subr.mxu0 0.0
        %4916 = vmatpush1.msra.mxu0 0.0
        %4917 = vmatprep.subr.mxu0 0.0
        %4918 = vmatpush1.msra.mxu0 0.0
        %4919 = vmatprep.subr.mxu0 0.0
        %4920 = vmatpush1.msra.mxu0 0.0
        %4921 = vmatprep.subr.mxu0 0.0
        %4922 = vmatpush1.msra.mxu0 0.0
        %4923 = vmatprep.subr.mxu0 0.0
        %4924 = vmatpush1.msra.mxu0 0.0
        %4925 = vmatprep.subr.mxu0 0.0
        %4926 = vmatpush1.msra.mxu0 0.0
        %4927 = vmatprep.subr.mxu0 0.0
        %4928 = vmatpush1.msra.mxu0 0.0
        %4929 = vmatprep.subr.mxu0 0.0
        %4930 = vmatpush1.msra.mxu0 0.0
        %4931 = vmatprep.subr.mxu0 0.0
        %4932 = vmatpush1.msra.mxu0 0.0
        %4933 = vmatprep.subr.mxu0 0.0
        %4934 = vmatpush1.msra.mxu0 0.0
        %4935 = vmatprep.subr.mxu0 0.0
        %4936 = vmatpush1.msra.mxu0 0.0
        %4937 = vmatprep.subr.mxu0 0.0
        %4938 = vmatpush1.msra.mxu0 0.0
        %4939 = vmatprep.subr.mxu0 0.0
        %4940 = vmatpush1.msra.mxu0 0.0
        %4941 = vmatprep.subr.mxu0 0.0
        %4942 = vmatpush1.msra.mxu0 0.0
        %4943 = vmatprep.subr.mxu0 0.0
        %4944 = vmatpush1.msra.mxu0 0.0
        %4945 = vmatprep.subr.mxu0 0.0
        %4946 = vmatpush1.msra.mxu0 0.0
        %4947 = vmatprep.subr.mxu0 0.0
        %4948 = vmatpush1.msra.mxu0 0.0
        %4949 = vmatprep.subr.mxu0 0.0
        %4950 = vmatpush1.msra.mxu0 0.0
        %4951 = vmatprep.subr.mxu0 0.0
        %4952 = vmatpush1.msra.mxu0 0.0
        %4953 = vmatprep.subr.mxu0 0.0
        %4954 = vmatpush1.msra.mxu0 0.0
        %4955 = vmatprep.subr.mxu0 0.0
        %4956 = vmatpush1.msra.mxu0 0.0
        %4957 = vmatprep.subr.mxu0 0.0
        %4958 = vmatpush1.msra.mxu0 0.0
        %4959 = vmatprep.subr.mxu0 0.0
        %4960 = vmatpush1.msra.mxu0 0.0
        %4961 = vmatprep.subr.mxu0 0.0
        %4962 = vmatpush1.msra.mxu0 0.0
        %4963 = vmatprep.subr.mxu0 0.0
        %4964 = vmatpush1.msra.mxu0 0.0
        %4965 = vmatprep.subr.mxu0 0.0
        %4966 = vmatpush1.msra.mxu0 0.0
        %4967 = vmatprep.subr.mxu0 0.0
        %4968 = vmatpush1.msra.mxu0 0.0
        %4969 = vmatprep.subr.mxu0 0.0
        %4970 = vmatpush1.msra.mxu0 0.0
        %4971 = vmatprep.mubr.f32.mxu0 0.0
        %4972 = vmatmul.mubr.f32.gmra.mrb[0].mxu0 %v4868
        %v4973 = vpop.f32.mrb[0].mxu0
        %v4974 = vadd.f32 0.0, %v4973
        %v4975 = vpop.f32.mrb[0].mxu0
        %4976 = vmatprep.mubr.f32.mxu0 0.0
        %4977 = vmatmul.mubr.f32.gmra.mrb[0].mxu0 %v4870
        %v4978 = vpop.f32.mrb[0].mxu0
        %v4979 = vadd.f32 0.0, %v4978
        %v4980 = vpop.f32.mrb[0].mxu0
        %4981 = vmatprep.mubr.f32.mxu0 0.0
        %4982 = vmatmul.mubr.f32.gmra.mrb[0].mxu0 %v4872
        %v4983 = vpop.f32.mrb[0].mxu0
        %v4984 = vadd.f32 0.0, %v4983
        %v4985 = vpop.f32.mrb[0].mxu0
        %4986 = vmatprep.mubr.f32.mxu0 0.0
        %4987 = vmatmul.mubr.f32.gmra.mrb[0].mxu0 %v4874
        %v4988 = vpop.f32.mrb[0].mxu0
        %v4989 = vadd.f32 0.0, %v4988
        %v4990 = vpop.f32.mrb[0].mxu0
        %4991 = vmatprep.mubr.f32.mxu0 0.0
        %4992 = vmatmul.mubr.f32.gmra.mrb[0].mxu0 %v4876
        %v4993 = vpop.f32.mrb[0].mxu0
        %v4994 = vadd.f32 0.0, %v4993
        %v4995 = vpop.f32.mrb[0].mxu0
        %4996 = vmatprep.mubr.f32.mxu0 0.0
        %4997 = vmatmul.mubr.f32.gmra.mrb[0].mxu0 %v4878
        %v4998 = vpop.f32.mrb[0].mxu0
        %v4999 = vadd.f32 0.0, %v4998
        %v5000 = vpop.f32.mrb[0].mxu0
        %5001 = vmatprep.mubr.f32.mxu0 0.0
        %5002 = vmatmul.mubr.f32.gmra.mrb[0].mxu0 %v4880
        %v5003 = vpop.f32.mrb[0].mxu0
        %v5004 = vadd.f32 0.0, %v5003
        %v5005 = vpop.f32.mrb[0].mxu0
        %5006 = vmatprep.mubr.f32.mxu0 0.0
        %5007 = vmatmul.mubr.f32.gmra.mrb[0].mxu0 %v4882
        %v5008 = vpop.f32.mrb[0].mxu0
        %v5009 = vadd.f32 0.0, %v5008
        %v5010 = vpop.f32.mrb[0].mxu0
        %5011 = vmatprep.mubr.f32.mxu0 0.0
        %5012 = vmatmul.mubr.f32.gmra.mrb[0].mxu0 %v4884
        %v5013 = vpop.f32.mrb[0].mxu0
        %v5014 = vadd.f32 0.0, %v5013
        %v5015 = vpop.f32.mrb[0].mxu0
        %5016 = vmatprep.mubr.f32.mxu0 0.0
        %5017 = vmatmul.mubr.f32.gmra.mrb[0].mxu0 %v4886
        %v5018 = vpop.f32.mrb[0].mxu0
        %v5019 = vadd.f32 0.0, %v5018
        %v5020 = vpop.f32.mrb[0].mxu0
        %5021 = vmatprep.mubr.f32.mxu0 0.0
        %5022 = vmatmul.mubr.f32.gmra.mrb[0].mxu0 %v4888
        %v5023 = vpop.f32.mrb[0].mxu0
        %v5024 = vadd.f32 0.0, %v5023
        %v5025 = vpop.f32.mrb[0].mxu0
        %5026 = vmatprep.mubr.f32.mxu0 0.0
        %5027 = vmatmul.mubr.f32.gmra.mrb[0].mxu0 %v4890
        %v5028 = vpop.f32.mrb[0].mxu0
        %v5029 = vadd.f32 0.0, %v5028
        %v5030 = vpop.f32.mrb[0].mxu0
        %5031 = vmatprep.mubr.f32.mxu0 0.0
        %5032 = vmatmul.mubr.f32.gmra.mrb[0].mxu0 %v4892
        %v5033 = vpop.f32.mrb[0].mxu0
        %v5034 = vadd.f32 0.0, %v5033
        %v5035 = vpop.f32.mrb[0].mxu0
        %5036 = vmatprep.mubr.f32.mxu0 0.0
        %5037 = vmatmul.mubr.f32.gmra.mrb[0].mxu0 %v4894
        %v5038 = vpop.f32.mrb[0].mxu0
        %v5039 = vadd.f32 0.0, %v5038
        %v5040 = vpop.f32.mrb[0].mxu0
        %5041 = vmatprep.mubr.f32.mxu0 0.0
        %5042 = vmatmul.mubr.f32.gmra.mrb[0].mxu0 %v4896
        %v5043 = vpop.f32.mrb[0].mxu0
        %v5044 = vadd.f32 0.0, %v5043
        %v5045 = vpop.f32.mrb[0].mxu0
        %5046 = vmatprep.mubr.f32.mxu0 0.0
        %5047 = vmatmul.mubr.f32.gmra.mrb[0].mxu0 %v4898
        %v5048 = vpop.f32.mrb[0].mxu0
        %v5049 = vadd.f32 0.0, %v5048
        %v5050 = vpop.f32.mrb[0].mxu0
        %5051 = vmatprep.mubr.f32.mxu0 0.0
        %5052 = vmatmul.mubr.f32.gmra.mrb[0].mxu0 %v4900
        %v5053 = vpop.f32.mrb[0].mxu0
        %v5054 = vadd.f32 0.0, %v5053
        %v5055 = vpop.f32.mrb[0].mxu0
        %5056 = vmatprep.mubr.f32.mxu0 0.0
        %5057 = vmatmul.mubr.f32.gmra.mrb[0].mxu0 %v4902
        %v5058 = vpop.f32.mrb[0].mxu0
        %v5059 = vadd.f32 0.0, %v5058
        %v5060 = vpop.f32.mrb[0].mxu0
        %5061 = vdwg.mxu0
        %v5062 = vadd.f32 %v4809, %v4974
        %v5063 = vadd.f32 %v4810, %v4979
        %v5064 = vadd.f32 %v4811, %v4984
        %v5065 = vadd.f32 %v4812, %v4989
        %v5066 = vadd.f32 %v4813, %v4994
        %v5067 = vadd.f32 %v4814, %v4999
        %v5068 = vadd.f32 %v4815, %v5004
        %v5069 = vadd.f32 %v4816, %v5009
        %v5070 = vadd.f32 %v4817, %v5014
        %v5071 = vadd.f32 %v4818, %v5019
        %v5072 = vadd.f32 %v4819, %v5024
        %v5073 = vadd.f32 %v4820, %v5029
        %v5074 = vadd.f32 %v4821, %v5034
        %v5075 = vadd.f32 %v4822, %v5039
        %v5076 = vadd.f32 %v4823, %v5044
        %v5077 = vadd.f32 %v4824, %v5049
        %v5078 = vadd.f32 %v4825, %v5054
        %v5079 = vadd.f32 %v4826, %v5059
        %v5080 = vld [vmem:[%s2259] sm:$0xf]
        %v5084 = vrot.slane %v3844, 5
        %v5085 = vrot.slane %v3845, 5
        %v5086 = vsel %vm2264, %v5084, %v5085
        %v5087 = vrot.slane %v3846, 5
        %v5088 = vsel %vm2264, %v5085, %v5087
        %v5089 = vrot.slane %v3847, 5
        %v5090 = vsel %vm2264, %v5087, %v5089
        %v5091 = vrot.slane %v3848, 5
        %v5092 = vsel %vm2264, %v5089, %v5091
        %v5093 = vrot.slane %v3849, 5
        %v5094 = vsel %vm2264, %v5091, %v5093
        %v5095 = vrot.slane %v3850, 5
        %v5096 = vsel %vm2264, %v5093, %v5095
        %v5097 = vrot.slane %v3851, 5
        %v5098 = vsel %vm2264, %v5095, %v5097
        %v5099 = vrot.slane %v3852, 5
        %v5100 = vsel %vm2264, %v5097, %v5099
        %v5101 = vrot.slane %v3853, 5
        %v5102 = vsel %vm2264, %v5099, %v5101
        %v5103 = vrot.slane %v3854, 5
        %v5104 = vsel %vm2264, %v5101, %v5103
        %v5105 = vrot.slane %v3855, 5
        %v5106 = vsel %vm2264, %v5103, %v5105
        %v5107 = vrot.slane %v3856, 5
        %v5108 = vsel %vm2264, %v5105, %v5107
        %v5109 = vrot.slane %v3857, 5
        %v5110 = vsel %vm2264, %v5107, %v5109
        %v5111 = vrot.slane %v3858, 5
        %v5112 = vsel %vm2264, %v5109, %v5111
        %v5113 = vrot.slane %v3859, 5
        %v5114 = vsel %vm2264, %v5111, %v5113
        %v5115 = vrot.slane %v3860, 5
        %v5116 = vsel %vm2264, %v5113, %v5115
        %v5117 = vrot.slane %v3861, 5
        %v5118 = vsel %vm2264, %v5115, %v5117
        %v5119 = vrot.slane %v3862, 5
        %v5120 = vsel %vm2264, %v5117, %v5119
        %v5121 = vsel %vm486, %v5086, 0
        %v5123 = vsel %vm486, %v5088, 0
        %v5125 = vsel %vm486, %v5090, 0
        %v5127 = vsel %vm486, %v5092, 0
        %v5129 = vsel %vm486, %v5094, 0
        %v5131 = vsel %vm486, %v5096, 0
        %v5133 = vsel %vm486, %v5098, 0
        %v5135 = vsel %vm486, %v5100, 0
        %v5137 = vsel %vm486, %v5102, 0
        %v5139 = vsel %vm486, %v5104, 0
        %v5141 = vsel %vm486, %v5106, 0
        %v5143 = vsel %vm486, %v5108, 0
        %v5145 = vsel %vm486, %v5110, 0
        %v5147 = vsel %vm486, %v5112, 0
        %v5149 = vsel %vm486, %v5114, 0
        %v5151 = vsel %vm486, %v5116, 0
        %v5153 = vsel %vm486, %v5118, 0
        %v5155 = vsel %vm486, %v5120, 0
        %v5158 = vsel %vm551, %v5080, 0
        %5160 = vmatprep.subr.mxu0 0.0
        %5161 = vmatpush1.msra.mxu0 %v5158
        %5162 = vmatprep.subr.mxu0 0.0
        %5163 = vmatpush1.msra.mxu0 0.0
        %5164 = vmatprep.subr.mxu0 0.0
        %5165 = vmatpush1.msra.mxu0 0.0
        %5166 = vmatprep.subr.mxu0 0.0
        %5167 = vmatpush1.msra.mxu0 0.0
        %5168 = vmatprep.subr.mxu0 0.0
        %5169 = vmatpush1.msra.mxu0 0.0
        %5170 = vmatprep.subr.mxu0 0.0
        %5171 = vmatpush1.msra.mxu0 0.0
        %5172 = vmatprep.subr.mxu0 0.0
        %5173 = vmatpush1.msra.mxu0 0.0
        %5174 = vmatprep.subr.mxu0 0.0
        %5175 = vmatpush1.msra.mxu0 0.0
        %5176 = vmatprep.subr.mxu0 0.0
        %5177 = vmatpush1.msra.mxu0 0.0
        %5178 = vmatprep.subr.mxu0 0.0
        %5179 = vmatpush1.msra.mxu0 0.0
        %5180 = vmatprep.subr.mxu0 0.0
        %5181 = vmatpush1.msra.mxu0 0.0
        %5182 = vmatprep.subr.mxu0 0.0
        %5183 = vmatpush1.msra.mxu0 0.0
        %5184 = vmatprep.subr.mxu0 0.0
        %5185 = vmatpush1.msra.mxu0 0.0
        %5186 = vmatprep.subr.mxu0 0.0
        %5187 = vmatpush1.msra.mxu0 0.0
        %5188 = vmatprep.subr.mxu0 0.0
        %5189 = vmatpush1.msra.mxu0 0.0
        %5190 = vmatprep.subr.mxu0 0.0
        %5191 = vmatpush1.msra.mxu0 0.0
        %5192 = vmatprep.subr.mxu0 0.0
        %5193 = vmatpush1.msra.mxu0 0.0
        %5194 = vmatprep.subr.mxu0 0.0
        %5195 = vmatpush1.msra.mxu0 0.0
        %5196 = vmatprep.subr.mxu0 0.0
        %5197 = vmatpush1.msra.mxu0 0.0
        %5198 = vmatprep.subr.mxu0 0.0
        %5199 = vmatpush1.msra.mxu0 0.0
        %5200 = vmatprep.subr.mxu0 0.0
        %5201 = vmatpush1.msra.mxu0 0.0
        %5202 = vmatprep.subr.mxu0 0.0
        %5203 = vmatpush1.msra.mxu0 0.0
        %5204 = vmatprep.subr.mxu0 0.0
        %5205 = vmatpush1.msra.mxu0 0.0
        %5206 = vmatprep.subr.mxu0 0.0
        %5207 = vmatpush1.msra.mxu0 0.0
        %5208 = vmatprep.subr.mxu0 0.0
        %5209 = vmatpush1.msra.mxu0 0.0
        %5210 = vmatprep.subr.mxu0 0.0
        %5211 = vmatpush1.msra.mxu0 0.0
        %5212 = vmatprep.subr.mxu0 0.0
        %5213 = vmatpush1.msra.mxu0 0.0
        %5214 = vmatprep.subr.mxu0 0.0
        %5215 = vmatpush1.msra.mxu0 0.0
        %5216 = vmatprep.subr.mxu0 0.0
        %5217 = vmatpush1.msra.mxu0 0.0
        %5218 = vmatprep.subr.mxu0 0.0
        %5219 = vmatpush1.msra.mxu0 0.0
        %5220 = vmatprep.subr.mxu0 0.0
        %5221 = vmatpush1.msra.mxu0 0.0
        %5222 = vmatprep.subr.mxu0 0.0
        %5223 = vmatpush1.msra.mxu0 0.0
        %5224 = vmatprep.mubr.f32.mxu0 0.0
        %5225 = vmatmul.mubr.f32.gmra.mrb[0].mxu0 %v5121
        %v5226 = vpop.f32.mrb[0].mxu0
        %v5227 = vadd.f32 0.0, %v5226
        %v5228 = vpop.f32.mrb[0].mxu0
        %5229 = vmatprep.mubr.f32.mxu0 0.0
        %5230 = vmatmul.mubr.f32.gmra.mrb[0].mxu0 %v5123
        %v5231 = vpop.f32.mrb[0].mxu0
        %v5232 = vadd.f32 0.0, %v5231
        %v5233 = vpop.f32.mrb[0].mxu0
        %5234 = vmatprep.mubr.f32.mxu0 0.0
        %5235 = vmatmul.mubr.f32.gmra.mrb[0].mxu0 %v5125
        %v5236 = vpop.f32.mrb[0].mxu0
        %v5237 = vadd.f32 0.0, %v5236
        %v5238 = vpop.f32.mrb[0].mxu0
        %5239 = vmatprep.mubr.f32.mxu0 0.0
        %5240 = vmatmul.mubr.f32.gmra.mrb[0].mxu0 %v5127
        %v5241 = vpop.f32.mrb[0].mxu0
        %v5242 = vadd.f32 0.0, %v5241
        %v5243 = vpop.f32.mrb[0].mxu0
        %5244 = vmatprep.mubr.f32.mxu0 0.0
        %5245 = vmatmul.mubr.f32.gmra.mrb[0].mxu0 %v5129
        %v5246 = vpop.f32.mrb[0].mxu0
        %v5247 = vadd.f32 0.0, %v5246
        %v5248 = vpop.f32.mrb[0].mxu0
        %5249 = vmatprep.mubr.f32.mxu0 0.0
        %5250 = vmatmul.mubr.f32.gmra.mrb[0].mxu0 %v5131
        %v5251 = vpop.f32.mrb[0].mxu0
        %v5252 = vadd.f32 0.0, %v5251
        %v5253 = vpop.f32.mrb[0].mxu0
        %5254 = vmatprep.mubr.f32.mxu0 0.0
        %5255 = vmatmul.mubr.f32.gmra.mrb[0].mxu0 %v5133
        %v5256 = vpop.f32.mrb[0].mxu0
        %v5257 = vadd.f32 0.0, %v5256
        %v5258 = vpop.f32.mrb[0].mxu0
        %5259 = vmatprep.mubr.f32.mxu0 0.0
        %5260 = vmatmul.mubr.f32.gmra.mrb[0].mxu0 %v5135
        %v5261 = vpop.f32.mrb[0].mxu0
        %v5262 = vadd.f32 0.0, %v5261
        %v5263 = vpop.f32.mrb[0].mxu0
        %5264 = vmatprep.mubr.f32.mxu0 0.0
        %5265 = vmatmul.mubr.f32.gmra.mrb[0].mxu0 %v5137
        %v5266 = vpop.f32.mrb[0].mxu0
        %v5267 = vadd.f32 0.0, %v5266
        %v5268 = vpop.f32.mrb[0].mxu0
        %5269 = vmatprep.mubr.f32.mxu0 0.0
        %5270 = vmatmul.mubr.f32.gmra.mrb[0].mxu0 %v5139
        %v5271 = vpop.f32.mrb[0].mxu0
        %v5272 = vadd.f32 0.0, %v5271
        %v5273 = vpop.f32.mrb[0].mxu0
        %5274 = vmatprep.mubr.f32.mxu0 0.0
        %5275 = vmatmul.mubr.f32.gmra.mrb[0].mxu0 %v5141
        %v5276 = vpop.f32.mrb[0].mxu0
        %v5277 = vadd.f32 0.0, %v5276
        %v5278 = vpop.f32.mrb[0].mxu0
        %5279 = vmatprep.mubr.f32.mxu0 0.0
        %5280 = vmatmul.mubr.f32.gmra.mrb[0].mxu0 %v5143
        %v5281 = vpop.f32.mrb[0].mxu0
        %v5282 = vadd.f32 0.0, %v5281
        %v5283 = vpop.f32.mrb[0].mxu0
        %5284 = vmatprep.mubr.f32.mxu0 0.0
        %5285 = vmatmul.mubr.f32.gmra.mrb[0].mxu0 %v5145
        %v5286 = vpop.f32.mrb[0].mxu0
        %v5287 = vadd.f32 0.0, %v5286
        %v5288 = vpop.f32.mrb[0].mxu0
        %5289 = vmatprep.mubr.f32.mxu0 0.0
        %5290 = vmatmul.mubr.f32.gmra.mrb[0].mxu0 %v5147
        %v5291 = vpop.f32.mrb[0].mxu0
        %v5292 = vadd.f32 0.0, %v5291
        %v5293 = vpop.f32.mrb[0].mxu0
        %5294 = vmatprep.mubr.f32.mxu0 0.0
        %5295 = vmatmul.mubr.f32.gmra.mrb[0].mxu0 %v5149
        %v5296 = vpop.f32.mrb[0].mxu0
        %v5297 = vadd.f32 0.0, %v5296
        %v5298 = vpop.f32.mrb[0].mxu0
        %5299 = vmatprep.mubr.f32.mxu0 0.0
        %5300 = vmatmul.mubr.f32.gmra.mrb[0].mxu0 %v5151
        %v5301 = vpop.f32.mrb[0].mxu0
        %v5302 = vadd.f32 0.0, %v5301
        %v5303 = vpop.f32.mrb[0].mxu0
        %5304 = vmatprep.mubr.f32.mxu0 0.0
        %5305 = vmatmul.mubr.f32.gmra.mrb[0].mxu0 %v5153
        %v5306 = vpop.f32.mrb[0].mxu0
        %v5307 = vadd.f32 0.0, %v5306
        %v5308 = vpop.f32.mrb[0].mxu0
        %5309 = vmatprep.mubr.f32.mxu0 0.0
        %5310 = vmatmul.mubr.f32.gmra.mrb[0].mxu0 %v5155
        %v5311 = vpop.f32.mrb[0].mxu0
        %v5312 = vadd.f32 0.0, %v5311
        %v5313 = vpop.f32.mrb[0].mxu0
        %5314 = vdwg.mxu0
        %v5315 = vadd.f32 %v5062, %v5227
        %v5316 = vadd.f32 %v5063, %v5232
        %v5317 = vadd.f32 %v5064, %v5237
        %v5318 = vadd.f32 %v5065, %v5242
        %v5319 = vadd.f32 %v5066, %v5247
        %v5320 = vadd.f32 %v5067, %v5252
        %v5321 = vadd.f32 %v5068, %v5257
        %v5322 = vadd.f32 %v5069, %v5262
        %v5323 = vadd.f32 %v5070, %v5267
        %v5324 = vadd.f32 %v5071, %v5272
        %v5325 = vadd.f32 %v5072, %v5277
        %v5326 = vadd.f32 %v5073, %v5282
        %v5327 = vadd.f32 %v5074, %v5287
        %v5328 = vadd.f32 %v5075, %v5292
        %v5329 = vadd.f32 %v5076, %v5297
        %v5330 = vadd.f32 %v5077, %v5302
        %v5331 = vadd.f32 %v5078, %v5307
        %v5332 = vadd.f32 %v5079, %v5312
        %v5333 = vld [vmem:[%s2654] sm:$0xf]
        %v5337 = vrot.slane %v3847, 6
        %v5338 = vrot.slane %v3848, 6
        %v5339 = vsel %vm2659, %v5337, %v5338
        %v5340 = vrot.slane %v3849, 6
        %v5341 = vsel %vm2659, %v5338, %v5340
        %v5342 = vrot.slane %v3850, 6
        %v5343 = vsel %vm2659, %v5340, %v5342
        %v5344 = vrot.slane %v3851, 6
        %v5345 = vsel %vm2659, %v5342, %v5344
        %v5346 = vrot.slane %v3852, 6
        %v5347 = vsel %vm2659, %v5344, %v5346
        %v5348 = vrot.slane %v3853, 6
        %v5349 = vsel %vm2659, %v5346, %v5348
        %v5350 = vrot.slane %v3854, 6
        %v5351 = vsel %vm2659, %v5348, %v5350
        %v5352 = vrot.slane %v3855, 6
        %v5353 = vsel %vm2659, %v5350, %v5352
        %v5354 = vrot.slane %v3856, 6
        %v5355 = vsel %vm2659, %v5352, %v5354
        %v5356 = vrot.slane %v3857, 6
        %v5357 = vsel %vm2659, %v5354, %v5356
        %v5358 = vrot.slane %v3858, 6
        %v5359 = vsel %vm2659, %v5356, %v5358
        %v5360 = vrot.slane %v3859, 6
        %v5361 = vsel %vm2659, %v5358, %v5360
        %v5362 = vrot.slane %v3860, 6
        %v5363 = vsel %vm2659, %v5360, %v5362
        %v5364 = vrot.slane %v3861, 6
        %v5365 = vsel %vm2659, %v5362, %v5364
        %v5366 = vrot.slane %v3862, 6
        %v5367 = vsel %vm2659, %v5364, %v5366
        %v5368 = vrot.slane %v3863, 6
        %v5369 = vsel %vm2659, %v5366, %v5368
        %v5370 = vrot.slane %v3864, 6
        %v5371 = vsel %vm2659, %v5368, %v5370
        %v5372 = vrot.slane %v3865, 6
        %v5373 = vsel %vm2659, %v5370, %v5372
        %v5374 = vsel %vm486, %v5339, 0
        %v5376 = vsel %vm486, %v5341, 0
        %v5378 = vsel %vm486, %v5343, 0
        %v5380 = vsel %vm486, %v5345, 0
        %v5382 = vsel %vm486, %v5347, 0
        %v5384 = vsel %vm486, %v5349, 0
        %v5386 = vsel %vm486, %v5351, 0
        %v5388 = vsel %vm486, %v5353, 0
        %v5390 = vsel %vm486, %v5355, 0
        %v5392 = vsel %vm486, %v5357, 0
        %v5394 = vsel %vm486, %v5359, 0
        %v5396 = vsel %vm486, %v5361, 0
        %v5398 = vsel %vm486, %v5363, 0
        %v5400 = vsel %vm486, %v5365, 0
        %v5402 = vsel %vm486, %v5367, 0
        %v5404 = vsel %vm486, %v5369, 0
        %v5406 = vsel %vm486, %v5371, 0
        %v5408 = vsel %vm486, %v5373, 0
        %v5411 = vsel %vm551, %v5333, 0
        %5413 = vmatprep.subr.mxu0 0.0
        %5414 = vmatpush1.msra.mxu0 %v5411
        %5415 = vmatprep.subr.mxu0 0.0
        %5416 = vmatpush1.msra.mxu0 0.0
        %5417 = vmatprep.subr.mxu0 0.0
        %5418 = vmatpush1.msra.mxu0 0.0
        %5419 = vmatprep.subr.mxu0 0.0
        %5420 = vmatpush1.msra.mxu0 0.0
        %5421 = vmatprep.subr.mxu0 0.0
        %5422 = vmatpush1.msra.mxu0 0.0
        %5423 = vmatprep.subr.mxu0 0.0
        %5424 = vmatpush1.msra.mxu0 0.0
        %5425 = vmatprep.subr.mxu0 0.0
        %5426 = vmatpush1.msra.mxu0 0.0
        %5427 = vmatprep.subr.mxu0 0.0
        %5428 = vmatpush1.msra.mxu0 0.0
        %5429 = vmatprep.subr.mxu0 0.0
        %5430 = vmatpush1.msra.mxu0 0.0
        %5431 = vmatprep.subr.mxu0 0.0
        %5432 = vmatpush1.msra.mxu0 0.0
        %5433 = vmatprep.subr.mxu0 0.0
        %5434 = vmatpush1.msra.mxu0 0.0
        %5435 = vmatprep.subr.mxu0 0.0
        %5436 = vmatpush1.msra.mxu0 0.0
        %5437 = vmatprep.subr.mxu0 0.0
        %5438 = vmatpush1.msra.mxu0 0.0
        %5439 = vmatprep.subr.mxu0 0.0
        %5440 = vmatpush1.msra.mxu0 0.0
        %5441 = vmatprep.subr.mxu0 0.0
        %5442 = vmatpush1.msra.mxu0 0.0
        %5443 = vmatprep.subr.mxu0 0.0
        %5444 = vmatpush1.msra.mxu0 0.0
        %5445 = vmatprep.subr.mxu0 0.0
        %5446 = vmatpush1.msra.mxu0 0.0
        %5447 = vmatprep.subr.mxu0 0.0
        %5448 = vmatpush1.msra.mxu0 0.0
        %5449 = vmatprep.subr.mxu0 0.0
        %5450 = vmatpush1.msra.mxu0 0.0
        %5451 = vmatprep.subr.mxu0 0.0
        %5452 = vmatpush1.msra.mxu0 0.0
        %5453 = vmatprep.subr.mxu0 0.0
        %5454 = vmatpush1.msra.mxu0 0.0
        %5455 = vmatprep.subr.mxu0 0.0
        %5456 = vmatpush1.msra.mxu0 0.0
        %5457 = vmatprep.subr.mxu0 0.0
        %5458 = vmatpush1.msra.mxu0 0.0
        %5459 = vmatprep.subr.mxu0 0.0
        %5460 = vmatpush1.msra.mxu0 0.0
        %5461 = vmatprep.subr.mxu0 0.0
        %5462 = vmatpush1.msra.mxu0 0.0
        %5463 = vmatprep.subr.mxu0 0.0
        %5464 = vmatpush1.msra.mxu0 0.0
        %5465 = vmatprep.subr.mxu0 0.0
        %5466 = vmatpush1.msra.mxu0 0.0
        %5467 = vmatprep.subr.mxu0 0.0
        %5468 = vmatpush1.msra.mxu0 0.0
        %5469 = vmatprep.subr.mxu0 0.0
        %5470 = vmatpush1.msra.mxu0 0.0
        %5471 = vmatprep.subr.mxu0 0.0
        %5472 = vmatpush1.msra.mxu0 0.0
        %5473 = vmatprep.subr.mxu0 0.0
        %5474 = vmatpush1.msra.mxu0 0.0
        %5475 = vmatprep.subr.mxu0 0.0
        %5476 = vmatpush1.msra.mxu0 0.0
        %5477 = vmatprep.mubr.f32.mxu0 0.0
        %5478 = vmatmul.mubr.f32.gmra.mrb[0].mxu0 %v5374
        %v5479 = vpop.f32.mrb[0].mxu0
        %v5480 = vadd.f32 0.0, %v5479
        %v5481 = vpop.f32.mrb[0].mxu0
        %5482 = vmatprep.mubr.f32.mxu0 0.0
        %5483 = vmatmul.mubr.f32.gmra.mrb[0].mxu0 %v5376
        %v5484 = vpop.f32.mrb[0].mxu0
        %v5485 = vadd.f32 0.0, %v5484
        %v5486 = vpop.f32.mrb[0].mxu0
        %5487 = vmatprep.mubr.f32.mxu0 0.0
        %5488 = vmatmul.mubr.f32.gmra.mrb[0].mxu0 %v5378
        %v5489 = vpop.f32.mrb[0].mxu0
        %v5490 = vadd.f32 0.0, %v5489
        %v5491 = vpop.f32.mrb[0].mxu0
        %5492 = vmatprep.mubr.f32.mxu0 0.0
        %5493 = vmatmul.mubr.f32.gmra.mrb[0].mxu0 %v5380
        %v5494 = vpop.f32.mrb[0].mxu0
        %v5495 = vadd.f32 0.0, %v5494
        %v5496 = vpop.f32.mrb[0].mxu0
        %5497 = vmatprep.mubr.f32.mxu0 0.0
        %5498 = vmatmul.mubr.f32.gmra.mrb[0].mxu0 %v5382
        %v5499 = vpop.f32.mrb[0].mxu0
        %v5500 = vadd.f32 0.0, %v5499
        %v5501 = vpop.f32.mrb[0].mxu0
        %5502 = vmatprep.mubr.f32.mxu0 0.0
        %5503 = vmatmul.mubr.f32.gmra.mrb[0].mxu0 %v5384
        %v5504 = vpop.f32.mrb[0].mxu0
        %v5505 = vadd.f32 0.0, %v5504
        %v5506 = vpop.f32.mrb[0].mxu0
        %5507 = vmatprep.mubr.f32.mxu0 0.0
        %5508 = vmatmul.mubr.f32.gmra.mrb[0].mxu0 %v5386
        %v5509 = vpop.f32.mrb[0].mxu0
        %v5510 = vadd.f32 0.0, %v5509
        %v5511 = vpop.f32.mrb[0].mxu0
        %5512 = vmatprep.mubr.f32.mxu0 0.0
        %5513 = vmatmul.mubr.f32.gmra.mrb[0].mxu0 %v5388
        %v5514 = vpop.f32.mrb[0].mxu0
        %v5515 = vadd.f32 0.0, %v5514
        %v5516 = vpop.f32.mrb[0].mxu0
        %5517 = vmatprep.mubr.f32.mxu0 0.0
        %5518 = vmatmul.mubr.f32.gmra.mrb[0].mxu0 %v5390
        %v5519 = vpop.f32.mrb[0].mxu0
        %v5520 = vadd.f32 0.0, %v5519
        %v5521 = vpop.f32.mrb[0].mxu0
        %5522 = vmatprep.mubr.f32.mxu0 0.0
        %5523 = vmatmul.mubr.f32.gmra.mrb[0].mxu0 %v5392
        %v5524 = vpop.f32.mrb[0].mxu0
        %v5525 = vadd.f32 0.0, %v5524
        %v5526 = vpop.f32.mrb[0].mxu0
        %5527 = vmatprep.mubr.f32.mxu0 0.0
        %5528 = vmatmul.mubr.f32.gmra.mrb[0].mxu0 %v5394
        %v5529 = vpop.f32.mrb[0].mxu0
        %v5530 = vadd.f32 0.0, %v5529
        %v5531 = vpop.f32.mrb[0].mxu0
        %5532 = vmatprep.mubr.f32.mxu0 0.0
        %5533 = vmatmul.mubr.f32.gmra.mrb[0].mxu0 %v5396
        %v5534 = vpop.f32.mrb[0].mxu0
        %v5535 = vadd.f32 0.0, %v5534
        %v5536 = vpop.f32.mrb[0].mxu0
        %5537 = vmatprep.mubr.f32.mxu0 0.0
        %5538 = vmatmul.mubr.f32.gmra.mrb[0].mxu0 %v5398
        %v5539 = vpop.f32.mrb[0].mxu0
        %v5540 = vadd.f32 0.0, %v5539
        %v5541 = vpop.f32.mrb[0].mxu0
        %5542 = vmatprep.mubr.f32.mxu0 0.0
        %5543 = vmatmul.mubr.f32.gmra.mrb[0].mxu0 %v5400
        %v5544 = vpop.f32.mrb[0].mxu0
        %v5545 = vadd.f32 0.0, %v5544
        %v5546 = vpop.f32.mrb[0].mxu0
        %5547 = vmatprep.mubr.f32.mxu0 0.0
        %5548 = vmatmul.mubr.f32.gmra.mrb[0].mxu0 %v5402
        %v5549 = vpop.f32.mrb[0].mxu0
        %v5550 = vadd.f32 0.0, %v5549
        %v5551 = vpop.f32.mrb[0].mxu0
        %5552 = vmatprep.mubr.f32.mxu0 0.0
        %5553 = vmatmul.mubr.f32.gmra.mrb[0].mxu0 %v5404
        %v5554 = vpop.f32.mrb[0].mxu0
        %v5555 = vadd.f32 0.0, %v5554
        %v5556 = vpop.f32.mrb[0].mxu0
        %5557 = vmatprep.mubr.f32.mxu0 0.0
        %5558 = vmatmul.mubr.f32.gmra.mrb[0].mxu0 %v5406
        %v5559 = vpop.f32.mrb[0].mxu0
        %v5560 = vadd.f32 0.0, %v5559
        %v5561 = vpop.f32.mrb[0].mxu0
        %5562 = vmatprep.mubr.f32.mxu0 0.0
        %5563 = vmatmul.mubr.f32.gmra.mrb[0].mxu0 %v5408
        %v5564 = vpop.f32.mrb[0].mxu0
        %v5565 = vadd.f32 0.0, %v5564
        %v5566 = vpop.f32.mrb[0].mxu0
        %5567 = vdwg.mxu0
        %v5568 = vadd.f32 %v5315, %v5480
        %v5569 = vadd.f32 %v5316, %v5485
        %v5570 = vadd.f32 %v5317, %v5490
        %v5571 = vadd.f32 %v5318, %v5495
        %v5572 = vadd.f32 %v5319, %v5500
        %v5573 = vadd.f32 %v5320, %v5505
        %v5574 = vadd.f32 %v5321, %v5510
        %v5575 = vadd.f32 %v5322, %v5515
        %v5576 = vadd.f32 %v5323, %v5520
        %v5577 = vadd.f32 %v5324, %v5525
        %v5578 = vadd.f32 %v5325, %v5530
        %v5579 = vadd.f32 %v5326, %v5535
        %v5580 = vadd.f32 %v5327, %v5540
        %v5581 = vadd.f32 %v5328, %v5545
        %v5582 = vadd.f32 %v5329, %v5550
        %v5583 = vadd.f32 %v5330, %v5555
        %v5584 = vadd.f32 %v5331, %v5560
        %v5585 = vadd.f32 %v5332, %v5565
        %v5586 = vld [vmem:[%s3049] sm:$0xf]
        %v5590 = vrot.slane %v3850, 7
        %v5591 = vrot.slane %v3851, 7
        %v5592 = vsel %vm3054, %v5590, %v5591
        %v5593 = vrot.slane %v3852, 7
        %v5594 = vsel %vm3054, %v5591, %v5593
        %v5595 = vrot.slane %v3853, 7
        %v5596 = vsel %vm3054, %v5593, %v5595
        %v5597 = vrot.slane %v3854, 7
        %v5598 = vsel %vm3054, %v5595, %v5597
        %v5599 = vrot.slane %v3855, 7
        %v5600 = vsel %vm3054, %v5597, %v5599
        %v5601 = vrot.slane %v3856, 7
        %v5602 = vsel %vm3054, %v5599, %v5601
        %v5603 = vrot.slane %v3857, 7
        %v5604 = vsel %vm3054, %v5601, %v5603
        %v5605 = vrot.slane %v3858, 7
        %v5606 = vsel %vm3054, %v5603, %v5605
        %v5607 = vrot.slane %v3859, 7
        %v5608 = vsel %vm3054, %v5605, %v5607
        %v5609 = vrot.slane %v3860, 7
        %v5610 = vsel %vm3054, %v5607, %v5609
        %v5611 = vrot.slane %v3861, 7
        %v5612 = vsel %vm3054, %v5609, %v5611
        %v5613 = vrot.slane %v3862, 7
        %v5614 = vsel %vm3054, %v5611, %v5613
        %v5615 = vrot.slane %v3863, 7
        %v5616 = vsel %vm3054, %v5613, %v5615
        %v5617 = vrot.slane %v3864, 7
        %v5618 = vsel %vm3054, %v5615, %v5617
        %v5619 = vrot.slane %v3865, 7
        %v5620 = vsel %vm3054, %v5617, %v5619
        %v5621 = vrot.slane %v3866, 7
        %v5622 = vsel %vm3054, %v5619, %v5621
        %v5623 = vrot.slane %v3867, 7
        %v5624 = vsel %vm3054, %v5621, %v5623
        %v5625 = vrot.slane %v3868, 7
        %v5626 = vsel %vm3054, %v5623, %v5625
        %v5627 = vsel %vm486, %v5592, 0
        %v5629 = vsel %vm486, %v5594, 0
        %v5631 = vsel %vm486, %v5596, 0
        %v5633 = vsel %vm486, %v5598, 0
        %v5635 = vsel %vm486, %v5600, 0
        %v5637 = vsel %vm486, %v5602, 0
        %v5639 = vsel %vm486, %v5604, 0
        %v5641 = vsel %vm486, %v5606, 0
        %v5643 = vsel %vm486, %v5608, 0
        %v5645 = vsel %vm486, %v5610, 0
        %v5647 = vsel %vm486, %v5612, 0
        %v5649 = vsel %vm486, %v5614, 0
        %v5651 = vsel %vm486, %v5616, 0
        %v5653 = vsel %vm486, %v5618, 0
        %v5655 = vsel %vm486, %v5620, 0
        %v5657 = vsel %vm486, %v5622, 0
        %v5659 = vsel %vm486, %v5624, 0
        %v5661 = vsel %vm486, %v5626, 0
        %v5664 = vsel %vm551, %v5586, 0
        %5666 = vmatprep.subr.mxu0 0.0
        %5667 = vmatpush1.msra.mxu0 %v5664
        %5668 = vmatprep.subr.mxu0 0.0
        %5669 = vmatpush1.msra.mxu0 0.0
        %5670 = vmatprep.subr.mxu0 0.0
        %5671 = vmatpush1.msra.mxu0 0.0
        %5672 = vmatprep.subr.mxu0 0.0
        %5673 = vmatpush1.msra.mxu0 0.0
        %5674 = vmatprep.subr.mxu0 0.0
        %5675 = vmatpush1.msra.mxu0 0.0
        %5676 = vmatprep.subr.mxu0 0.0
        %5677 = vmatpush1.msra.mxu0 0.0
        %5678 = vmatprep.subr.mxu0 0.0
        %5679 = vmatpush1.msra.mxu0 0.0
        %5680 = vmatprep.subr.mxu0 0.0
        %5681 = vmatpush1.msra.mxu0 0.0
        %5682 = vmatprep.subr.mxu0 0.0
        %5683 = vmatpush1.msra.mxu0 0.0
        %5684 = vmatprep.subr.mxu0 0.0
        %5685 = vmatpush1.msra.mxu0 0.0
        %5686 = vmatprep.subr.mxu0 0.0
        %5687 = vmatpush1.msra.mxu0 0.0
        %5688 = vmatprep.subr.mxu0 0.0
        %5689 = vmatpush1.msra.mxu0 0.0
        %5690 = vmatprep.subr.mxu0 0.0
        %5691 = vmatpush1.msra.mxu0 0.0
        %5692 = vmatprep.subr.mxu0 0.0
        %5693 = vmatpush1.msra.mxu0 0.0
        %5694 = vmatprep.subr.mxu0 0.0
        %5695 = vmatpush1.msra.mxu0 0.0
        %5696 = vmatprep.subr.mxu0 0.0
        %5697 = vmatpush1.msra.mxu0 0.0
        %5698 = vmatprep.subr.mxu0 0.0
        %5699 = vmatpush1.msra.mxu0 0.0
        %5700 = vmatprep.subr.mxu0 0.0
        %5701 = vmatpush1.msra.mxu0 0.0
        %5702 = vmatprep.subr.mxu0 0.0
        %5703 = vmatpush1.msra.mxu0 0.0
        %5704 = vmatprep.subr.mxu0 0.0
        %5705 = vmatpush1.msra.mxu0 0.0
        %5706 = vmatprep.subr.mxu0 0.0
        %5707 = vmatpush1.msra.mxu0 0.0
        %5708 = vmatprep.subr.mxu0 0.0
        %5709 = vmatpush1.msra.mxu0 0.0
        %5710 = vmatprep.subr.mxu0 0.0
        %5711 = vmatpush1.msra.mxu0 0.0
        %5712 = vmatprep.subr.mxu0 0.0
        %5713 = vmatpush1.msra.mxu0 0.0
        %5714 = vmatprep.subr.mxu0 0.0
        %5715 = vmatpush1.msra.mxu0 0.0
        %5716 = vmatprep.subr.mxu0 0.0
        %5717 = vmatpush1.msra.mxu0 0.0
        %5718 = vmatprep.subr.mxu0 0.0
        %5719 = vmatpush1.msra.mxu0 0.0
        %5720 = vmatprep.subr.mxu0 0.0
        %5721 = vmatpush1.msra.mxu0 0.0
        %5722 = vmatprep.subr.mxu0 0.0
        %5723 = vmatpush1.msra.mxu0 0.0
        %5724 = vmatprep.subr.mxu0 0.0
        %5725 = vmatpush1.msra.mxu0 0.0
        %5726 = vmatprep.subr.mxu0 0.0
        %5727 = vmatpush1.msra.mxu0 0.0
        %5728 = vmatprep.subr.mxu0 0.0
        %5729 = vmatpush1.msra.mxu0 0.0
        %5730 = vmatprep.mubr.f32.mxu0 0.0
        %5731 = vmatmul.mubr.f32.gmra.mrb[0].mxu0 %v5627
        %v5732 = vpop.f32.mrb[0].mxu0
        %v5733 = vadd.f32 0.0, %v5732
        %v5734 = vpop.f32.mrb[0].mxu0
        %5735 = vmatprep.mubr.f32.mxu0 0.0
        %5736 = vmatmul.mubr.f32.gmra.mrb[0].mxu0 %v5629
        %v5737 = vpop.f32.mrb[0].mxu0
        %v5738 = vadd.f32 0.0, %v5737
        %v5739 = vpop.f32.mrb[0].mxu0
        %5740 = vmatprep.mubr.f32.mxu0 0.0
        %5741 = vmatmul.mubr.f32.gmra.mrb[0].mxu0 %v5631
        %v5742 = vpop.f32.mrb[0].mxu0
        %v5743 = vadd.f32 0.0, %v5742
        %v5744 = vpop.f32.mrb[0].mxu0
        %5745 = vmatprep.mubr.f32.mxu0 0.0
        %5746 = vmatmul.mubr.f32.gmra.mrb[0].mxu0 %v5633
        %v5747 = vpop.f32.mrb[0].mxu0
        %v5748 = vadd.f32 0.0, %v5747
        %v5749 = vpop.f32.mrb[0].mxu0
        %5750 = vmatprep.mubr.f32.mxu0 0.0
        %5751 = vmatmul.mubr.f32.gmra.mrb[0].mxu0 %v5635
        %v5752 = vpop.f32.mrb[0].mxu0
        %v5753 = vadd.f32 0.0, %v5752
        %v5754 = vpop.f32.mrb[0].mxu0
        %5755 = vmatprep.mubr.f32.mxu0 0.0
        %5756 = vmatmul.mubr.f32.gmra.mrb[0].mxu0 %v5637
        %v5757 = vpop.f32.mrb[0].mxu0
        %v5758 = vadd.f32 0.0, %v5757
        %v5759 = vpop.f32.mrb[0].mxu0
        %5760 = vmatprep.mubr.f32.mxu0 0.0
        %5761 = vmatmul.mubr.f32.gmra.mrb[0].mxu0 %v5639
        %v5762 = vpop.f32.mrb[0].mxu0
        %v5763 = vadd.f32 0.0, %v5762
        %v5764 = vpop.f32.mrb[0].mxu0
        %5765 = vmatprep.mubr.f32.mxu0 0.0
        %5766 = vmatmul.mubr.f32.gmra.mrb[0].mxu0 %v5641
        %v5767 = vpop.f32.mrb[0].mxu0
        %v5768 = vadd.f32 0.0, %v5767
        %v5769 = vpop.f32.mrb[0].mxu0
        %5770 = vmatprep.mubr.f32.mxu0 0.0
        %5771 = vmatmul.mubr.f32.gmra.mrb[0].mxu0 %v5643
        %v5772 = vpop.f32.mrb[0].mxu0
        %v5773 = vadd.f32 0.0, %v5772
        %v5774 = vpop.f32.mrb[0].mxu0
        %5775 = vmatprep.mubr.f32.mxu0 0.0
        %5776 = vmatmul.mubr.f32.gmra.mrb[0].mxu0 %v5645
        %v5777 = vpop.f32.mrb[0].mxu0
        %v5778 = vadd.f32 0.0, %v5777
        %v5779 = vpop.f32.mrb[0].mxu0
        %5780 = vmatprep.mubr.f32.mxu0 0.0
        %5781 = vmatmul.mubr.f32.gmra.mrb[0].mxu0 %v5647
        %v5782 = vpop.f32.mrb[0].mxu0
        %v5783 = vadd.f32 0.0, %v5782
        %v5784 = vpop.f32.mrb[0].mxu0
        %5785 = vmatprep.mubr.f32.mxu0 0.0
        %5786 = vmatmul.mubr.f32.gmra.mrb[0].mxu0 %v5649
        %v5787 = vpop.f32.mrb[0].mxu0
        %v5788 = vadd.f32 0.0, %v5787
        %v5789 = vpop.f32.mrb[0].mxu0
        %5790 = vmatprep.mubr.f32.mxu0 0.0
        %5791 = vmatmul.mubr.f32.gmra.mrb[0].mxu0 %v5651
        %v5792 = vpop.f32.mrb[0].mxu0
        %v5793 = vadd.f32 0.0, %v5792
        %v5794 = vpop.f32.mrb[0].mxu0
        %5795 = vmatprep.mubr.f32.mxu0 0.0
        %5796 = vmatmul.mubr.f32.gmra.mrb[0].mxu0 %v5653
        %v5797 = vpop.f32.mrb[0].mxu0
        %v5798 = vadd.f32 0.0, %v5797
        %v5799 = vpop.f32.mrb[0].mxu0
        %5800 = vmatprep.mubr.f32.mxu0 0.0
        %5801 = vmatmul.mubr.f32.gmra.mrb[0].mxu0 %v5655
        %v5802 = vpop.f32.mrb[0].mxu0
        %v5803 = vadd.f32 0.0, %v5802
        %v5804 = vpop.f32.mrb[0].mxu0
        %5805 = vmatprep.mubr.f32.mxu0 0.0
        %5806 = vmatmul.mubr.f32.gmra.mrb[0].mxu0 %v5657
        %v5807 = vpop.f32.mrb[0].mxu0
        %v5808 = vadd.f32 0.0, %v5807
        %v5809 = vpop.f32.mrb[0].mxu0
        %5810 = vmatprep.mubr.f32.mxu0 0.0
        %5811 = vmatmul.mubr.f32.gmra.mrb[0].mxu0 %v5659
        %v5812 = vpop.f32.mrb[0].mxu0
        %v5813 = vadd.f32 0.0, %v5812
        %v5814 = vpop.f32.mrb[0].mxu0
        %5815 = vmatprep.mubr.f32.mxu0 0.0
        %5816 = vmatmul.mubr.f32.gmra.mrb[0].mxu0 %v5661
        %v5817 = vpop.f32.mrb[0].mxu0
        %v5818 = vadd.f32 0.0, %v5817
        %v5819 = vpop.f32.mrb[0].mxu0
        %5820 = vdwg.mxu0
        %v5821 = vadd.f32 %v5568, %v5733
        %v5822 = vadd.f32 %v5569, %v5738
        %v5823 = vadd.f32 %v5570, %v5743
        %v5824 = vadd.f32 %v5571, %v5748
        %v5825 = vadd.f32 %v5572, %v5753
        %v5826 = vadd.f32 %v5573, %v5758
        %v5827 = vadd.f32 %v5574, %v5763
        %v5828 = vadd.f32 %v5575, %v5768
        %v5829 = vadd.f32 %v5576, %v5773
        %v5830 = vadd.f32 %v5577, %v5778
        %v5831 = vadd.f32 %v5578, %v5783
        %v5832 = vadd.f32 %v5579, %v5788
        %v5833 = vadd.f32 %v5580, %v5793
        %v5834 = vadd.f32 %v5581, %v5798
        %v5835 = vadd.f32 %v5582, %v5803
        %v5836 = vadd.f32 %v5583, %v5808
        %v5837 = vadd.f32 %v5584, %v5813
        %v5838 = vadd.f32 %v5585, %v5818
        %v5839 = vld [vmem:[%s3444] sm:$0xf]
        %v5840 = vsel %vm486, %v3854, 0
        %v5842 = vsel %vm486, %v3855, 0
        %v5844 = vsel %vm486, %v3856, 0
        %v5846 = vsel %vm486, %v3857, 0
        %v5848 = vsel %vm486, %v3858, 0
        %v5850 = vsel %vm486, %v3859, 0
        %v5852 = vsel %vm486, %v3860, 0
        %v5854 = vsel %vm486, %v3861, 0
        %v5856 = vsel %vm486, %v3862, 0
        %v5858 = vsel %vm486, %v3863, 0
        %v5860 = vsel %vm486, %v3864, 0
        %v5862 = vsel %vm486, %v3865, 0
        %v5864 = vsel %vm486, %v3866, 0
        %v5866 = vsel %vm486, %v3867, 0
        %v5868 = vsel %vm486, %v3868, 0
        %v5871 = vsel %vm486, %v3869, 0
        %v5874 = vsel %vm486, %v3870, 0
        %v5877 = vsel %vm486, %v3871, 0
        %v5880 = vsel %vm551, %v5839, 0
        %5882 = vmatprep.subr.mxu0 0.0
        %5883 = vmatpush1.msra.mxu0 %v5880
        %5884 = vmatprep.subr.mxu0 0.0
        %5885 = vmatpush1.msra.mxu0 0.0
        %5886 = vmatprep.subr.mxu0 0.0
        %5887 = vmatpush1.msra.mxu0 0.0
        %5888 = vmatprep.subr.mxu0 0.0
        %5889 = vmatpush1.msra.mxu0 0.0
        %5890 = vmatprep.subr.mxu0 0.0
        %5891 = vmatpush1.msra.mxu0 0.0
        %5892 = vmatprep.subr.mxu0 0.0
        %5893 = vmatpush1.msra.mxu0 0.0
        %5894 = vmatprep.subr.mxu0 0.0
        %5895 = vmatpush1.msra.mxu0 0.0
        %5896 = vmatprep.subr.mxu0 0.0
        %5897 = vmatpush1.msra.mxu0 0.0
        %5898 = vmatprep.subr.mxu0 0.0
        %5899 = vmatpush1.msra.mxu0 0.0
        %5900 = vmatprep.subr.mxu0 0.0
        %5901 = vmatpush1.msra.mxu0 0.0
        %5902 = vmatprep.subr.mxu0 0.0
        %5903 = vmatpush1.msra.mxu0 0.0
        %5904 = vmatprep.subr.mxu0 0.0
        %5905 = vmatpush1.msra.mxu0 0.0
        %5906 = vmatprep.subr.mxu0 0.0
        %5907 = vmatpush1.msra.mxu0 0.0
        %5908 = vmatprep.subr.mxu0 0.0
        %5909 = vmatpush1.msra.mxu0 0.0
        %5910 = vmatprep.subr.mxu0 0.0
        %5911 = vmatpush1.msra.mxu0 0.0
        %5912 = vmatprep.subr.mxu0 0.0
        %5913 = vmatpush1.msra.mxu0 0.0
        %5914 = vmatprep.subr.mxu0 0.0
        %5915 = vmatpush1.msra.mxu0 0.0
        %5916 = vmatprep.subr.mxu0 0.0
        %5917 = vmatpush1.msra.mxu0 0.0
        %5918 = vmatprep.subr.mxu0 0.0
        %5919 = vmatpush1.msra.mxu0 0.0
        %5920 = vmatprep.subr.mxu0 0.0
        %5921 = vmatpush1.msra.mxu0 0.0
        %5922 = vmatprep.subr.mxu0 0.0
        %5923 = vmatpush1.msra.mxu0 0.0
        %5924 = vmatprep.subr.mxu0 0.0
        %5925 = vmatpush1.msra.mxu0 0.0
        %5926 = vmatprep.subr.mxu0 0.0
        %5927 = vmatpush1.msra.mxu0 0.0
        %5928 = vmatprep.subr.mxu0 0.0
        %5929 = vmatpush1.msra.mxu0 0.0
        %5930 = vmatprep.subr.mxu0 0.0
        %5931 = vmatpush1.msra.mxu0 0.0
        %5932 = vmatprep.subr.mxu0 0.0
        %5933 = vmatpush1.msra.mxu0 0.0
        %5934 = vmatprep.subr.mxu0 0.0
        %5935 = vmatpush1.msra.mxu0 0.0
        %5936 = vmatprep.subr.mxu0 0.0
        %5937 = vmatpush1.msra.mxu0 0.0
        %5938 = vmatprep.subr.mxu0 0.0
        %5939 = vmatpush1.msra.mxu0 0.0
        %5940 = vmatprep.subr.mxu0 0.0
        %5941 = vmatpush1.msra.mxu0 0.0
        %5942 = vmatprep.subr.mxu0 0.0
        %5943 = vmatpush1.msra.mxu0 0.0
        %5944 = vmatprep.subr.mxu0 0.0
        %5945 = vmatpush1.msra.mxu0 0.0
        %5946 = vmatprep.mubr.f32.mxu0 0.0
        %5947 = vmatmul.mubr.f32.gmra.mrb[0].mxu0 %v5840
        %v5948 = vpop.f32.mrb[0].mxu0
        %v5949 = vadd.f32 0.0, %v5948
        %v5950 = vpop.f32.mrb[0].mxu0
        %5951 = vmatprep.mubr.f32.mxu0 0.0
        %5952 = vmatmul.mubr.f32.gmra.mrb[0].mxu0 %v5842
        %v5953 = vpop.f32.mrb[0].mxu0
        %v5954 = vadd.f32 0.0, %v5953
        %v5955 = vpop.f32.mrb[0].mxu0
        %5956 = vmatprep.mubr.f32.mxu0 0.0
        %5957 = vmatmul.mubr.f32.gmra.mrb[0].mxu0 %v5844
        %v5958 = vpop.f32.mrb[0].mxu0
        %v5959 = vadd.f32 0.0, %v5958
        %v5960 = vpop.f32.mrb[0].mxu0
        %5961 = vmatprep.mubr.f32.mxu0 0.0
        %5962 = vmatmul.mubr.f32.gmra.mrb[0].mxu0 %v5846
        %v5963 = vpop.f32.mrb[0].mxu0
        %v5964 = vadd.f32 0.0, %v5963
        %v5965 = vpop.f32.mrb[0].mxu0
        %5966 = vmatprep.mubr.f32.mxu0 0.0
        %5967 = vmatmul.mubr.f32.gmra.mrb[0].mxu0 %v5848
        %v5968 = vpop.f32.mrb[0].mxu0
        %v5969 = vadd.f32 0.0, %v5968
        %v5970 = vpop.f32.mrb[0].mxu0
        %5971 = vmatprep.mubr.f32.mxu0 0.0
        %5972 = vmatmul.mubr.f32.gmra.mrb[0].mxu0 %v5850
        %v5973 = vpop.f32.mrb[0].mxu0
        %v5974 = vadd.f32 0.0, %v5973
        %v5975 = vpop.f32.mrb[0].mxu0
        %5976 = vmatprep.mubr.f32.mxu0 0.0
        %5977 = vmatmul.mubr.f32.gmra.mrb[0].mxu0 %v5852
        %v5978 = vpop.f32.mrb[0].mxu0
        %v5979 = vadd.f32 0.0, %v5978
        %v5980 = vpop.f32.mrb[0].mxu0
        %5981 = vmatprep.mubr.f32.mxu0 0.0
        %5982 = vmatmul.mubr.f32.gmra.mrb[0].mxu0 %v5854
        %v5983 = vpop.f32.mrb[0].mxu0
        %v5984 = vadd.f32 0.0, %v5983
        %v5985 = vpop.f32.mrb[0].mxu0
        %5986 = vmatprep.mubr.f32.mxu0 0.0
        %5987 = vmatmul.mubr.f32.gmra.mrb[0].mxu0 %v5856
        %v5988 = vpop.f32.mrb[0].mxu0
        %v5989 = vadd.f32 0.0, %v5988
        %v5990 = vpop.f32.mrb[0].mxu0
        %5991 = vmatprep.mubr.f32.mxu0 0.0
        %5992 = vmatmul.mubr.f32.gmra.mrb[0].mxu0 %v5858
        %v5993 = vpop.f32.mrb[0].mxu0
        %v5994 = vadd.f32 0.0, %v5993
        %v5995 = vpop.f32.mrb[0].mxu0
        %5996 = vmatprep.mubr.f32.mxu0 0.0
        %5997 = vmatmul.mubr.f32.gmra.mrb[0].mxu0 %v5860
        %v5998 = vpop.f32.mrb[0].mxu0
        %v5999 = vadd.f32 0.0, %v5998
        %v6000 = vpop.f32.mrb[0].mxu0
        %6001 = vmatprep.mubr.f32.mxu0 0.0
        %6002 = vmatmul.mubr.f32.gmra.mrb[0].mxu0 %v5862
        %v6003 = vpop.f32.mrb[0].mxu0
        %v6004 = vadd.f32 0.0, %v6003
        %v6005 = vpop.f32.mrb[0].mxu0
        %6006 = vmatprep.mubr.f32.mxu0 0.0
        %6007 = vmatmul.mubr.f32.gmra.mrb[0].mxu0 %v5864
        %v6008 = vpop.f32.mrb[0].mxu0
        %v6009 = vadd.f32 0.0, %v6008
        %v6010 = vpop.f32.mrb[0].mxu0
        %6011 = vmatprep.mubr.f32.mxu0 0.0
        %6012 = vmatmul.mubr.f32.gmra.mrb[0].mxu0 %v5866
        %v6013 = vpop.f32.mrb[0].mxu0
        %v6014 = vadd.f32 0.0, %v6013
        %v6015 = vpop.f32.mrb[0].mxu0
        %6016 = vmatprep.mubr.f32.mxu0 0.0
        %6017 = vmatmul.mubr.f32.gmra.mrb[0].mxu0 %v5868
        %v6018 = vpop.f32.mrb[0].mxu0
        %v6019 = vadd.f32 0.0, %v6018
        %v6020 = vpop.f32.mrb[0].mxu0
        %6021 = vmatprep.mubr.f32.mxu0 0.0
        %6022 = vmatmul.mubr.f32.gmra.mrb[0].mxu0 %v5871
        %v6023 = vpop.f32.mrb[0].mxu0
        %v6024 = vadd.f32 0.0, %v6023
        %v6025 = vpop.f32.mrb[0].mxu0
        %6026 = vmatprep.mubr.f32.mxu0 0.0
        %6027 = vmatmul.mubr.f32.gmra.mrb[0].mxu0 %v5874
        %v6028 = vpop.f32.mrb[0].mxu0
        %v6029 = vadd.f32 0.0, %v6028
        %v6030 = vpop.f32.mrb[0].mxu0
        %6031 = vmatprep.mubr.f32.mxu0 0.0
        %6032 = vmatmul.mubr.f32.gmra.mrb[0].mxu0 %v5877
        %v6033 = vpop.f32.mrb[0].mxu0
        %v6034 = vadd.f32 0.0, %v6033
        %v6035 = vpop.f32.mrb[0].mxu0
        %6036 = vdwg.mxu0
        %v6037 = vadd.f32 %v5821, %v5949
        %v6038 = vadd.f32 %v5822, %v5954
        %v6039 = vadd.f32 %v5823, %v5959
        %v6040 = vadd.f32 %v5824, %v5964
        %v6041 = vadd.f32 %v5825, %v5969
        %v6042 = vadd.f32 %v5826, %v5974
        %v6043 = vadd.f32 %v5827, %v5979
        %v6044 = vadd.f32 %v5828, %v5984
        %v6045 = vadd.f32 %v5829, %v5989
        %v6046 = vadd.f32 %v5830, %v5994
        %v6047 = vadd.f32 %v5831, %v5999
        %v6048 = vadd.f32 %v5832, %v6004
        %v6049 = vadd.f32 %v5833, %v6009
        %v6050 = vadd.f32 %v5834, %v6014
        %v6051 = vadd.f32 %v5835, %v6019
        %v6052 = vadd.f32 %v5836, %v6024
        %v6053 = vadd.f32 %v5837, %v6029
        %v6054 = vadd.f32 %v5838, %v6034
        %v6055 = vadd.f32 %v6037, %v3763
        %v6056 = vadd.f32 %v6038, %v3763
        %v6057 = vadd.f32 %v6039, %v3763
        %v6058 = vadd.f32 %v6040, %v3763
        %v6059 = vadd.f32 %v6041, %v3763
        %v6060 = vadd.f32 %v6042, %v3763
        %v6061 = vadd.f32 %v6043, %v3763
        %v6062 = vadd.f32 %v6044, %v3763
        %v6063 = vadd.f32 %v6045, %v3763
        %v6064 = vadd.f32 %v6046, %v3763
        %v6065 = vadd.f32 %v6047, %v3763
        %v6066 = vadd.f32 %v6048, %v3763
        %v6067 = vadd.f32 %v6049, %v3763
        %v6068 = vadd.f32 %v6050, %v3763
        %v6069 = vadd.f32 %v6051, %v3763
        %v6070 = vadd.f32 %v6052, %v3763
        %v6071 = vadd.f32 %v6053, %v3763
        %v6072 = vadd.f32 %v6054, %v3763
        %6073 = vst [vmem:[%s316 + $0x100] sm:$0xff] %v6055
        %6074 = vst [vmem:[%s316 + $0x108] sm:$0xff] %v6056
        %6075 = vst [vmem:[%s316 + $0x110] sm:$0xff] %v6057
        %6076 = vst [vmem:[%s316 + $0x118] sm:$0xff] %v6058
        %6077 = vst [vmem:[%s316 + $0x120] sm:$0xff] %v6059
        %6078 = vst [vmem:[%s316 + $0x128] sm:$0xff] %v6060
        %6079 = vst [vmem:[%s316 + $0x130] sm:$0xff] %v6061
        %6080 = vst [vmem:[%s316 + $0x138] sm:$0xff] %v6062
        %6081 = vst [vmem:[%s316 + $0x140] sm:$0xff] %v6063
        %6082 = vst [vmem:[%s316 + $0x148] sm:$0xff] %v6064
        %6083 = vst [vmem:[%s316 + $0x150] sm:$0xff] %v6065
        %6084 = vst [vmem:[%s316 + $0x158] sm:$0xff] %v6066
        %6085 = vst [vmem:[%s316 + $0x160] sm:$0xff] %v6067
        %6086 = vst [vmem:[%s316 + $0x168] sm:$0xff] %v6068
        %6087 = vst [vmem:[%s316 + $0x170] sm:$0xff] %v6069
        %6088 = vst [vmem:[%s316 + $0x178] sm:$0xff] %v6070
        %6089 = vst [vmem:[%s316 + $0x180] sm:$0xff] %v6071
        %6090 = vst [vmem:[%s316 + $0x188] sm:$0xff] %v6072
        %s6091 = sand.u32 %s149, 1
        %s6092 = scalar_lea.sflag [#allocation4], %s6091
        %s6093 = sand.u32 %s149, 1
        %s6094 = smul.addr %s6093, 400
        %s6095 = scalar_lea.vmem [#allocation10], %s6094
        // Predicated region
        $region53: #{unit_tcn_forward.1} parent=35 // pred_check
          %p6096 = pneg %p159
        $region54: #{unit_tcn_forward.1} parent=35 // pred_check_branch
          %6098 = sbr.rel (%p6096) target = $region56
        $region55: #{unit_tcn_forward.1} parent=35 // pred_region
          %s6099 = smul.u32 50, %s30
          %s6101 = ssub.s32 6400, 6400
          %6102 = vsyncadd %s6092, %s6101
          %s6103 = smul.addr %s29, 50
          %s6104 = sadd.s32 %s6099, %s6103
          %s6105 = smul.addr %s6104, 128
          %s6106 = scalar_lea.hbm %s4, %s6105
          %s6107 = sshll.u32 %s6095, 4
          %s6108 = int_to_ptr.vmem [resolvable:$true] %s6107
          %6113 = dma.vmem_to_hbm [thread:$0]  %s6108, 6400, %s6106, %s6092, 128, 128, 8
        $region56: #{unit_tcn_forward.1} parent=35 // pred_fallthru
          _
      $region36: #{unit_tcn_forward.1} parent=5 // pred_fallthru
        _
      %p6114 = scmp.le.s32.totalorder 2, %s20
      // Predicated region
      $region57: #{unit_tcn_forward.1} parent=5 // pred_check
        %p6115 = pneg %p6114
      $region58: #{unit_tcn_forward.1} parent=5 // pred_check_branch
        %6117 = sbr.rel (%p6115) target = $region60
      $region59: #{unit_tcn_forward.1} parent=5 // pred_region
        %s6118 = ssub.s32 %s20, 2
        // Predicated region
        $region61: #{unit_tcn_forward.1} parent=59 // pred_check
          %p6119 = pneg %p165
        $region62: #{unit_tcn_forward.1} parent=59 // pred_check_branch
          %6121 = sbr.rel (%p6119) target = $region64
        $region63: #{unit_tcn_forward.1} parent=59 // pred_region
          %s6122 = sand.u32 %s150, 1
          %s6123 = scalar_lea.sflag [#allocation4], %s6122
          %s6124 = sand.u32 %s150, 1
          %s6125 = smul.addr %s6124, 400
          %s6126 = scalar_lea.vmem [#allocation10], %s6125
          %6127 = dma.done %s6123, 6400
        $region64: #{unit_tcn_forward.1} parent=59 // pred_fallthru
          _
      $region60: #{unit_tcn_forward.1} parent=5 // pred_fallthru
        _
    $region6: #{unit_tcn_forward.1} parent=1 // loop_footer
      %s24 = sadd.s32 1, %s20
    $region7: #{unit_tcn_forward.1} parent=1 // loop_footer_branch
      %19 = sbr.rel target = $region3
    $region8: #{unit_tcn_forward.1} parent=1 // loop_exit
      _
    %6128 = vsyncpa [#allocation3], 1
    %s6129 = scalar_lea.sflag [#allocation3], 1
    %6130 = vsyncpa %s6129, 1
    %6131 = vsyncpa [#allocation6], 1
    %s6132 = scalar_lea.sflag [#allocation6], 1
    %6133 = vsyncpa %s6132, 1
    %6134 = vsyncpa [#allocation9], 1
    %6135 = vsyncpa [#allocation4], 1
    %s6136 = scalar_lea.sflag [#allocation4], 1
    %6137 = vsyncpa %s6136, 1

</llo_original>
